<compile_context>
chip_gen: v7x
topology: tpu7x:2x2x1
jax: 0.10.0
libtpu: 0.0.40
codegen_flags: <defaults>
</compile_context>

<pallas_src>
import jax
import jax.numpy as jnp
from jax.experimental import pallas as pl
from jax.experimental.pallas import tpu as pltpu


def _round_up(a, m):
    return -(-a // m) * m


# ----------------------------------------------------------------------------
# Kernel: fused im2row-GEMM (both conv branches) + bias + ReLU + time max-pool.
# ----------------------------------------------------------------------------
def conv_block_kernel(p_ref, w_ref, b_ref, o_ref):
    # p_ref: (TB*HOp, K) bf16   im2row patches for one batch tile (already 2D — no relayout)
    # w_ref: (K, CT)     bf16   conv1|conv2 weights, BN folded
    # b_ref: (1, CT)     f32    conv1|conv2 bias, BN folded
    # o_ref: (TB, CT)    f32    pooled output
    M = p_ref.shape[0]
    TB, CT = o_ref.shape
    HOp = M // TB
    y = jnp.dot(p_ref[...], w_ref[...], preferred_element_type=jnp.float32)  # MXU, f32 acc
    y = jnp.maximum(y + b_ref[...], 0.0)                                     # bias + ReLU (VPU)
    # HOp % 8 == 0 -> this reshape is a free view; axis-1 max is a sublane reduce.
    # Padded time rows are edge-replicas of the last real window, so the max is unchanged.
    o_ref[...] = jnp.max(y.reshape(TB, HOp, CT), axis=1)


# ----------------------------------------------------------------------------
# Parameter init: PyTorch-style conv init, eval-mode BN folded, branches fused.
# ----------------------------------------------------------------------------
def _fold_conv_bn(conv_w, conv_b, gamma, beta, mean, var, eps=1e-5):
    """conv_w: (OC, 1, KH, E).  Returns GEMM weight (KH*E, OC) and bias (OC,).

    Width: padding=1 and out-width=1 mean conv column kw multiplies embed column kw-1
    (kw=0 hits the zero pad; the last embed column E-1 is never covered).
    """
    OC, _, KH, E = conv_w.shape
    scale = gamma * jax.lax.rsqrt(var + eps)                       # (OC,)
    w = conv_w[:, 0, :, 1:]                                        # drop kw=0 (pad col)
    w = jnp.pad(w, ((0, 0), (0, 0), (0, 1)))                       # (OC, KH, E), last col unused
    w = w * scale[:, None, None]
    w_gemm = jnp.transpose(w, (1, 2, 0)).reshape(KH * E, OC)       # (KH*E, OC)
    b_gemm = (conv_b - mean) * scale + beta
    return w_gemm, b_gemm


def init_params(key, embed_dim=768, out_channels=128, kernel_h=3,
                param_dtype=jnp.bfloat16):
    fan_in = 1 * kernel_h * embed_dim
    k = 1.0 / float(fan_in) ** 0.5
    keys = jax.random.split(key, 4)
    ws, bs = [], []
    for i in range(2):                                             # conv1, conv2
        cw = jax.random.uniform(keys[2 * i], (out_channels, 1, kernel_h, embed_dim),
                                jnp.float32, -k, k)
        cb = jax.random.uniform(keys[2 * i + 1], (out_channels,), jnp.float32, -k, k)
        gamma = jnp.ones((out_channels,), jnp.float32)             # eval-mode BN stats
        beta = jnp.zeros((out_channels,), jnp.float32)
        mean = jnp.zeros((out_channels,), jnp.float32)
        var = jnp.ones((out_channels,), jnp.float32)
        wg, bg = _fold_conv_bn(cw, cb, gamma, beta, mean, var)
        ws.append(wg)
        bs.append(bg)
    w_both = jnp.concatenate(ws, axis=1).astype(param_dtype)       # (3E, 2*OC)
    b_both = jnp.concatenate(bs, axis=0)[None, :].astype(jnp.float32)  # (1, 2*OC)
    return {"w": w_both, "b": b_both}


# ----------------------------------------------------------------------------
# Forward wrapper: im2row (pad + free reshape), VMEM-aware batch tiling, one pallas_call.
# ----------------------------------------------------------------------------
def conv_block_forward(x, params, vmem_budget_bytes=12 * 1024 * 1024):
    """x: (B, S, E) with E == embed_dim (768).  Returns (B, 256) = cat(max1, max2).

    vmem_budget_bytes defaults to a v5e-safe 12 MiB; raise toward 24-48 MiB on v6e/v7x
    (with pltpu.CompilerParams(vmem_limit_bytes=...) if above the default scoped limit)
    to get larger batch tiles.
    """
    B, S, E = x.shape
    HO = (S - 1) // 3 + 1                        # Conv2d out length (pad=1, k=3, stride=3)
    HOp = _round_up(HO, 8)                       # f32 sublane alignment for in-kernel pooling
    K = 3 * E
    w, b = params["w"], params["b"]
    C = w.shape[1]

    # im2row: stride == kernel_height == 3 -> contiguous, non-overlapping windows of padded x.
    xp = jnp.pad(x, ((0, 0), (1, 1), (0, 0)))[:, :3 * HO, :]
    patches = xp.reshape(B, HO, K).astype(w.dtype)        # (B, HO, 3E) bf16, one fused XLA pass
    # TODO(synk): this pad+cast pre-pass is one extra HBM pass over x; keeping activations bf16
    # end-to-end upstream (or fusing the im2row into the producer) roughly halves its bytes.

    # Batch tile sized from the VMEM budget (double-buffered bf16 patches + resident weights +
    # f32 GEMM/ReLU intermediate + double-buffered output).
    per_tb = 2 * HOp * K * 2 + HOp * C * 4 + 2 * C * 4
    fixed = 2 * K * C * 2 + (1 << 12)
    tb_cap = max(8, (vmem_budget_bytes - fixed) // per_tb)
    tb_cap = min(tb_cap, 512)
    if tb_cap >= 32:
        tb_cap = (tb_cap // 32) * 32             # TB*HOp multiple of 256 -> full MXU rows
    else:
        tb_cap = (tb_cap // 8) * 8
    if B <= tb_cap:
        TB, Bp = B, B                            # single batch step, no batch padding
    else:
        TB = tb_cap
        Bp = _round_up(B, TB)

    # Pad HO->HOp and batch->Bp by EDGE replication: replicated windows reproduce the last real
    # window, so ReLU + max-pool is unchanged (no masking needed); padded batch rows are sliced
    # off at the end.
    patches = jnp.pad(patches, ((0, Bp - B), (0, HOp - HO), (0, 0)), mode="edge")
    patches2d = patches.reshape(Bp * HOp, K)     # free metadata reshape of contiguous HBM array

    nb = Bp // TB
    # v7x megacore: if the batch grid collapses to one step, split the two 128-channel branches
    # across a second parallel grid axis so both TensorCores are busy.  For nb >= 2 keep a single
    # channel block so the fused weights stay VMEM-resident (fetched once, index never changes).
    nc = 2 if (nb < 2 and C % 256 == 0) else 1
    CT = C // nc

    out = pl.pallas_call(
        conv_block_kernel,
        out_shape=jax.ShapeDtypeStruct((Bp, C), jnp.float32),
        grid_spec=pltpu.PrefetchScalarGridSpec(
            num_scalar_prefetch=0,
            grid=(nb, nc),
            in_specs=[
                pl.BlockSpec((TB * HOp, K), lambda i, j: (i, 0)),   # streamed patch tile (2D)
                pl.BlockSpec((K, CT), lambda i, j: (0, j)),         # fused weights
                pl.BlockSpec((1, CT), lambda i, j: (0, j)),         # fused bias
            ],
            out_specs=pl.BlockSpec((TB, CT), lambda i, j: (i, j)),  # lane-dense pooled output
        ),
        compiler_params=pltpu.CompilerParams(
            dimension_semantics=("parallel", "parallel")),          # megacore-shardable
    )(patches2d, w, b)
    return out[:B]


if __name__ == "__main__":
    B, S = 2, 16
    embed_dim = 768                 # fixed by the module (conv kernel width == embed_dim)

    key = jax.random.PRNGKey(0)
    kx, kp = jax.random.split(key)
    x = jax.random.normal(kx, (B, S, embed_dim), jnp.float32)
    params = init_params(kp, embed_dim=embed_dim)

    fwd = jax.jit(lambda xx: conv_block_forward(xx, params))
    y = fwd(x)
    y = jax.block_until_ready(y)
    assert y.shape == (B, 256) and y.dtype == jnp.float32
    print("KERNEL_OK")
</pallas_src>

<mosaic_0001>
module attributes {stable_mosaic.version = 11 : i64} {
  func.func @conv_block_kernel(%arg0: i32, %arg1: i32, %arg2: memref<16x2304xbf16, #tpu.memory_space<vmem>>, %arg3: memref<2304x128xbf16, #tpu.memory_space<vmem>>, %arg4: memref<1x128xf32, #tpu.memory_space<vmem>>, %arg5: memref<2x128xf32, #tpu.memory_space<vmem>>) attributes {dimension_semantics = [#tpu.dimension_semantics<parallel>, #tpu.dimension_semantics<parallel>], iteration_bounds = array<i64: 1, 2>, scalar_prefetch = 0 : i64, scratch_operands = 0 : i64, tpu.core_type = #tpu.core_type<tc>, window_params = [{transform_indices = @transform_0, window_bounds = array<i64: 16, 2304>}, {transform_indices = @transform_1, window_bounds = array<i64: 2304, 128>}, {transform_indices = @transform_2, window_bounds = array<i64: 1, 128>}, {transform_indices = @transform_3, window_bounds = array<i64: 2, 128>}]} {
    %c0 = arith.constant 0 : index
    %c0_0 = arith.constant 0 : index
    %0 = vector.load %arg2[%c0, %c0_0] : memref<16x2304xbf16, #tpu.memory_space<vmem>>, vector<16x2304xbf16>
    %c0_1 = arith.constant 0 : index
    %c0_2 = arith.constant 0 : index
    %1 = vector.load %arg3[%c0_1, %c0_2] : memref<2304x128xbf16, #tpu.memory_space<vmem>>, vector<2304x128xbf16>
    %cst = arith.constant dense<0.000000e+00> : vector<16x128xf32>
    %2 = tpu.matmul %0, %1, %cst {dimension_numbers = #tpu.dot_dimension_numbers<[1], [0], [0], [1], [0, 0, 1, 1], [], []>} : vector<16x2304xbf16>, vector<2304x128xbf16>, vector<16x128xf32> -> vector<16x128xf32>
    %c0_3 = arith.constant 0 : index
    %c0_4 = arith.constant 0 : index
    %3 = vector.load %arg4[%c0_3, %c0_4] : memref<1x128xf32, #tpu.memory_space<vmem>>, vector<1x128xf32>
    %4 = vector.broadcast %3 : vector<1x128xf32> to vector<16x128xf32>
    %5 = arith.addf %2, %4 : vector<16x128xf32>
    %cst_5 = arith.constant 0.000000e+00 : f32
    %6 = vector.broadcast %cst_5 : f32 to vector<16x128xf32>
    %7 = arith.maximumf %5, %6 : vector<16x128xf32>
    %8 = vector.shape_cast %7 : vector<16x128xf32> to vector<2x8x128xf32>
    %cst_6 = arith.constant dense<0xFF800000> : vector<2x128xf32>
    %9 = vector.multi_reduction <maximumf>, %8, %cst_6 [1] : vector<2x8x128xf32> to vector<2x128xf32>
    %c0_7 = arith.constant 0 : index
    %c0_8 = arith.constant 0 : index
    %10 = vector.load %arg5[%c0_7, %c0_8] : memref<2x128xf32, #tpu.memory_space<vmem>>, vector<2x128xf32>
    tpu.vector_store %arg5[%c0_7, %c0_8], %9 {strides = array<i32>} : memref<2x128xf32, #tpu.memory_space<vmem>>, vector<2x128xf32>,
    return
  }
  func.func @transform_0(%arg0: i32, %arg1: i32) -> (i32, i32) {
    %c0_i32 = arith.constant 0 : i32
    %c0_i32_0 = arith.constant 0 : i32
    return %arg0, %c0_i32 : i32, i32
  }
  func.func @transform_1(%arg0: i32, %arg1: i32) -> (i32, i32) {
    %c0_i32 = arith.constant 0 : i32
    %c0_i32_0 = arith.constant 0 : i32
    return %c0_i32, %arg1 : i32, i32
  }
  func.func @transform_2(%arg0: i32, %arg1: i32) -> (i32, i32) {
    %c0_i32 = arith.constant 0 : i32
    %c0_i32_0 = arith.constant 0 : i32
    return %c0_i32, %arg1 : i32, i32
  }
  func.func @transform_3(%arg0: i32, %arg1: i32) -> (i32, i32) {
    %c0_i32 = arith.constant 0 : i32
    return %arg0, %arg1 : i32, i32
  }
}

</mosaic_0001>

<llo_original>
// kernel: _lambda_.1
$region0: #{_lambda_.1}
  #allocation0 [shape = 'u32[]', space=smem, size = 0x4, offset = 0x4, fixed_abs, tag = 'smem constant byte address 0x4 - core index']
  #allocation1 [shape = 'u32[144,128]{1,0:T(1,128)}', space=vmem, size = 0x12000, scoped, tag = 'internal scratch']
  %s0 = inlined_call_operand.vmem [shape: bf16[16,2304], index: 0, kind: input, shape index: {}]
  %s1 = inlined_call_operand.vmem [shape: bf16[2304,256], index: 1, kind: input, shape index: {}]
  %s2 = inlined_call_operand.vmem [shape: f32[1,256], index: 2, kind: input, shape index: {}]
  %s3 = inlined_call_operand.hbm [shape: f32[2,256], index: 3, kind: output, shape index: {}]
  %s4 = sld [smem:[#allocation0]]
  $region86: #{_lambda_.1} parent=0
    _
  %s6 = ssub.s32 1, %s4
  %s7 = scalar_select 0, %s6, %s4
  $region1: #{_lambda_.1} parent=0
    #allocation2 [shape = 'u8[1179648]{0}', space=vmem, size = 0x120000, scoped, tag = 'input window, operand 1']
    #allocation3 [shape = 'u8[2048]{0}', space=vmem, size = 0x800, scoped, tag = 'output window, operand 0']
    #allocation4 [shape = 's32[2]{0}', space=sflag, size = 0x8, scoped, tag = 'scoped memory for _lambda_.1']
    %8 = vsyncpa [#allocation4], 0
    %s9 = scalar_lea.sflag [#allocation4], 1
    %10 = vsyncpa %s9, 0
    loop: start=0, step=1, limit=4
    $region2: #{_lambda_.1} parent=1 // loop_pre_header
      _
    $region3: #{_lambda_.1} parent=1 // loop_header
      %s12 = sphi 0, %s16
      %p13 = scmp.ge.s32.totalorder %s12, 4
      %s19 = sphi 0, %s31
      %s20 = sphi 0, %s27
      %s21 = sphi 0, %s19
      %s22 = sphi 0, %s20
      %s23 = sphi 0, %s21
      %s24 = sphi 0, %s22
      %s34 = sphi 0, %s36
      %s37 = sphi 0, %s34
      %s38 = sphi 0, %s37
      %s54 = sphi 0, %s38
      %s60 = sphi 0, %s62
      %s63 = sphi 0, %s60
      %s64 = sphi 0, %s63
      %s80 = sphi 0, %s64
      %s86 = sphi 0, %s88
      %s89 = sphi 0, %s86
      %s90 = sphi 0, %s89
      %s106 = sphi 0, %s90
      %s114 = sphi 0, %s116
      %s117 = sphi 0, %s114
      %s118 = sphi 0, %s117
      %s134 = sphi 0, %s118
    $region4: #{_lambda_.1} parent=1 // loop_header_branch
      %15 = sbr.rel (%p13) target = $region8
    $region5: #{_lambda_.1} parent=1 // loop_body
      %s17 = ssub.s32 %s12, 1
      %s18 = ssub.s32 %s12, 2
      %s25 = sadd.s32 1, %s20
      %p26 = scmp.ge.s32.totalorder %s25, 2
      %s27 = scalar_select %p26, 0, %s25
      %s28 = sadd.s32 1, %s19
      %s29 = scalar_select %p26, %s28, %s19
      %p30 = scmp.ge.s32.totalorder %s29, 1
      %s31 = scalar_select %p30, 0, %s29
      %s32 = ssub.s32 %s19, %s31
      %p33 = scmp.eq.s32.totalorder %s32, 0
      %s35 = sadd.s32 %s34, 1
      %s36 = scalar_select %p33, %s34, %s35
      %p39 = pneg %p33
      %p40 = scmp.eq.s32.totalorder %s12, 1
      %p41 = por %p39, %p40
      %p42 = scmp.ne.s32.totalorder %s34, %s37
      %p43 = scmp.eq.s32.totalorder %s12, 0
      %p44 = por %p42, %p43
      %p45 = scmp.ne.s32.totalorder %s34, %s37
      %p46 = scmp.eq.s32.totalorder %s17, 1
      %p47 = por %p45, %p46
      %p48 = scmp.ne.s32.totalorder %s37, %s38
      %p49 = scmp.eq.s32.totalorder %s17, 0
      %p50 = por %p48, %p49
      %p51 = scmp.ne.s32.totalorder %s37, %s38
      %p52 = scmp.eq.s32.totalorder %s18, 1
      %p53 = por %p51, %p52
      %p55 = scmp.ne.s32.totalorder %s38, %s54
      %p56 = scmp.eq.s32.totalorder %s18, 0
      %p57 = por %p55, %p56
      %s58 = ssub.s32 %s20, %s27
      %p59 = scmp.eq.s32.totalorder %s58, 0
      %s61 = sadd.s32 %s60, 1
      %s62 = scalar_select %p59, %s60, %s61
      %p65 = pneg %p59
      %p66 = scmp.eq.s32.totalorder %s12, 1
      %p67 = por %p65, %p66
      %p68 = scmp.ne.s32.totalorder %s60, %s63
      %p69 = scmp.eq.s32.totalorder %s12, 0
      %p70 = por %p68, %p69
      %p71 = scmp.ne.s32.totalorder %s60, %s63
      %p72 = scmp.eq.s32.totalorder %s17, 1
      %p73 = por %p71, %p72
      %p74 = scmp.ne.s32.totalorder %s63, %s64
      %p75 = scmp.eq.s32.totalorder %s17, 0
      %p76 = por %p74, %p75
      %p77 = scmp.ne.s32.totalorder %s63, %s64
      %p78 = scmp.eq.s32.totalorder %s18, 1
      %p79 = por %p77, %p78
      %p81 = scmp.ne.s32.totalorder %s64, %s80
      %p82 = scmp.eq.s32.totalorder %s18, 0
      %p83 = por %p81, %p82
      %s84 = ssub.s32 %s20, %s27
      %p85 = scmp.eq.s32.totalorder %s84, 0
      %s87 = sadd.s32 %s86, 1
      %s88 = scalar_select %p85, %s86, %s87
      %p91 = pneg %p85
      %p92 = scmp.eq.s32.totalorder %s12, 1
      %p93 = por %p91, %p92
      %p94 = scmp.ne.s32.totalorder %s86, %s89
      %p95 = scmp.eq.s32.totalorder %s12, 0
      %p96 = por %p94, %p95
      %p97 = scmp.ne.s32.totalorder %s86, %s89
      %p98 = scmp.eq.s32.totalorder %s17, 1
      %p99 = por %p97, %p98
      %p100 = scmp.ne.s32.totalorder %s89, %s90
      %p101 = scmp.eq.s32.totalorder %s17, 0
      %p102 = por %p100, %p101
      %p103 = scmp.ne.s32.totalorder %s89, %s90
      %p104 = scmp.eq.s32.totalorder %s18, 1
      %p105 = por %p103, %p104
      %p107 = scmp.ne.s32.totalorder %s90, %s106
      %p108 = scmp.eq.s32.totalorder %s18, 0
      %p109 = por %p107, %p108
      %s110 = ssub.s32 %s19, %s31
      %s111 = ssub.s32 %s20, %s27
      %s112 = sor.u32 %s110, %s111
      %p113 = scmp.eq.s32.totalorder %s112, 0
      %s115 = sadd.s32 %s114, 1
      %s116 = scalar_select %p113, %s114, %s115
      %p119 = pneg %p113
      %p120 = scmp.eq.s32.totalorder %s12, 1
      %p121 = por %p119, %p120
      %p122 = scmp.ne.s32.totalorder %s114, %s117
      %p123 = scmp.eq.s32.totalorder %s12, 0
      %p124 = por %p122, %p123
      %p125 = scmp.ne.s32.totalorder %s114, %s117
      %p126 = scmp.eq.s32.totalorder %s17, 1
      %p127 = por %p125, %p126
      %p128 = scmp.ne.s32.totalorder %s117, %s118
      %p129 = scmp.eq.s32.totalorder %s17, 0
      %p130 = por %p128, %p129
      %p131 = scmp.ne.s32.totalorder %s117, %s118
      %p132 = scmp.eq.s32.totalorder %s18, 1
      %p133 = por %p131, %p132
      %p135 = scmp.ne.s32.totalorder %s118, %s134
      %p136 = scmp.eq.s32.totalorder %s18, 0
      %p137 = por %p135, %p136
      %p138 = scmp.le.s32.totalorder 1, %s12
      %p139 = scmp.lt.s32.totalorder %s12, 3
      %p140 = pnand %p138, %p139
      %p141 = pneg %p140
      // Predicated region
      $region9: #{_lambda_.1} parent=5 // pred_check
        _
      $region10: #{_lambda_.1} parent=5 // pred_check_branch
        %143 = sbr.rel (%p140) target = $region12
      $region11: #{_lambda_.1} parent=5 // pred_region
        %s144 = ssub.s32 %s12, 1
        // Predicated region
        $region13: #{_lambda_.1} parent=11 // pred_check
          %p145 = pneg %p50
        $region14: #{_lambda_.1} parent=11 // pred_check_branch
          %147 = sbr.rel (%p145) target = $region16
        $region15: #{_lambda_.1} parent=11 // pred_region
          %s148 = smul.u32 2, %s21
          %p149 = scmp.lt.s32.totalorder %s148, 1
          %s150 = scalar_select %p149, %s148, 1
          %s151 = smul.addr %s150, 18
          %s152 = smul.addr %s151, 4
          %s153 = scalar_lea.vmem %s0, %s152
          %s154 = smul.u32 2, %s21
        $region16: #{_lambda_.1} parent=11 // pred_fallthru
          _
      $region12: #{_lambda_.1} parent=5 // pred_fallthru
        _
      %p155 = scmp.lt.s32.totalorder %s12, 2
      // Predicated region
      $region17: #{_lambda_.1} parent=5 // pred_check
        %p156 = pneg %p155
      $region18: #{_lambda_.1} parent=5 // pred_check_branch
        %158 = sbr.rel (%p156) target = $region20
      $region19: #{_lambda_.1} parent=5 // pred_region
        // Predicated region
        $region21: #{_lambda_.1} parent=19 // pred_check
          %p159 = pneg %p70
        $region22: #{_lambda_.1} parent=19 // pred_check_branch
          %161 = sbr.rel (%p159) target = $region24
        $region23: #{_lambda_.1} parent=19 // pred_region
          %s162 = sand.u32 %s60, 1
          %s163 = sand.u32 %s60, 1
          %s164 = smul.addr %s163, 1152
          %s165 = scalar_lea.vmem [#allocation2], %s164
          %s166 = smul.addr %s20, 4
          %s167 = scalar_lea.vmem %s1, %s166
          // Predicated region
          $region25: #{_lambda_.1} parent=23 // pred_check
            _
          $region26: #{_lambda_.1} parent=23 // pred_check_branch
            %169 = sbr.rel (0) target = $region28
          $region27: #{_lambda_.1} parent=23 // pred_region
            // Predicated region
            $region29: #{_lambda_.1} parent=27 // pred_check
              _
            $region30: #{_lambda_.1} parent=27 // pred_check_branch
              %171 = sbr.rel target = $region32
            $region31: #{_lambda_.1} parent=27 // pred_region
              // Predicated region
              $region44: #{_lambda_.1} parent=31 // pred_check
                _
              $region45: #{_lambda_.1} parent=31 // pred_check_branch
                %760 = sbr.rel (0) target = $region47
              $region46: #{_lambda_.1} parent=31 // pred_region
                loop: start=0, step=1, limit=1
                $region48: #{_lambda_.1} parent=46 // loop_pre_header
                  _
                $region49: #{_lambda_.1} parent=46 // loop_header
                  %s762 = sphi 0, %s766
                  %p763 = scmp.ge.s32.totalorder %s762, 1
                  %s767 = sphi %s167, %s167
                  %s768 = sphi %s165, %s165
                $region50: #{_lambda_.1} parent=46 // loop_header_branch
                  %765 = sbr.rel (%p763) target = $region54
                $region51: #{_lambda_.1} parent=46 // loop_body
                  _
                $region52: #{_lambda_.1} parent=46 // loop_footer
                  %s766 = sadd.s32 1, %s762
                $region53: #{_lambda_.1} parent=46 // loop_footer_branch
                  %761 = sbr.rel target = $region49
                $region54: #{_lambda_.1} parent=46 // loop_exit
                  _
                loop: start=0, step=1, limit=1
                $region55: #{_lambda_.1} parent=46 // loop_pre_header
                  _
                $region56: #{_lambda_.1} parent=46 // loop_header
                  %s771 = sphi 0, %s775
                  %p772 = scmp.ge.s32.totalorder %s771, 1
                  %s776 = sphi %s167, %s167
                  %s777 = sphi %s165, %s165
                $region57: #{_lambda_.1} parent=46 // loop_header_branch
                  %774 = sbr.rel (%p772) target = $region61
                $region58: #{_lambda_.1} parent=46 // loop_body
                  %v778 = vld [vmem:[%s776] sm:$0xf]
                  %779 = vst [vmem:[%s777] sm:$0xf] %v778
                  %v780 = vld [vmem:[%s776 + $0x8] sm:$0xf]
                  %781 = vst [vmem:[%s777 + $0x4] sm:$0xf] %v780
                  %v782 = vld [vmem:[%s776 + $0x10] sm:$0xf]
                  %783 = vst [vmem:[%s777 + $0x8] sm:$0xf] %v782
                  %v784 = vld [vmem:[%s776 + $0x18] sm:$0xf]
                  %785 = vst [vmem:[%s777 + $0xc] sm:$0xf] %v784
                  %v786 = vld [vmem:[%s776 + $0x20] sm:$0xf]
                  %787 = vst [vmem:[%s777 + $0x10] sm:$0xf] %v786
                  %v788 = vld [vmem:[%s776 + $0x28] sm:$0xf]
                  %789 = vst [vmem:[%s777 + $0x14] sm:$0xf] %v788
                  %v790 = vld [vmem:[%s776 + $0x30] sm:$0xf]
                  %791 = vst [vmem:[%s777 + $0x18] sm:$0xf] %v790
                  %v792 = vld [vmem:[%s776 + $0x38] sm:$0xf]
                  %793 = vst [vmem:[%s777 + $0x1c] sm:$0xf] %v792
                  %v794 = vld [vmem:[%s776 + $0x40] sm:$0xf]
                  %795 = vst [vmem:[%s777 + $0x20] sm:$0xf] %v794
                  %v796 = vld [vmem:[%s776 + $0x48] sm:$0xf]
                  %797 = vst [vmem:[%s777 + $0x24] sm:$0xf] %v796
                  %v798 = vld [vmem:[%s776 + $0x50] sm:$0xf]
                  %799 = vst [vmem:[%s777 + $0x28] sm:$0xf] %v798
                  %v800 = vld [vmem:[%s776 + $0x58] sm:$0xf]
                  %801 = vst [vmem:[%s777 + $0x2c] sm:$0xf] %v800
                  %v802 = vld [vmem:[%s776 + $0x60] sm:$0xf]
                  %803 = vst [vmem:[%s777 + $0x30] sm:$0xf] %v802
                  %v804 = vld [vmem:[%s776 + $0x68] sm:$0xf]
                  %805 = vst [vmem:[%s777 + $0x34] sm:$0xf] %v804
                  %v806 = vld [vmem:[%s776 + $0x70] sm:$0xf]
                  %807 = vst [vmem:[%s777 + $0x38] sm:$0xf] %v806
                  %v808 = vld [vmem:[%s776 + $0x78] sm:$0xf]
                  %809 = vst [vmem:[%s777 + $0x3c] sm:$0xf] %v808
                  %v810 = vld [vmem:[%s776 + $0x80] sm:$0xf]
                  %811 = vst [vmem:[%s777 + $0x40] sm:$0xf] %v810
                  %v812 = vld [vmem:[%s776 + $0x88] sm:$0xf]
                  %813 = vst [vmem:[%s777 + $0x44] sm:$0xf] %v812
                  %v814 = vld [vmem:[%s776 + $0x90] sm:$0xf]
                  %815 = vst [vmem:[%s777 + $0x48] sm:$0xf] %v814
                  %v816 = vld [vmem:[%s776 + $0x98] sm:$0xf]
                  %817 = vst [vmem:[%s777 + $0x4c] sm:$0xf] %v816
                  %v818 = vld [vmem:[%s776 + $0xa0] sm:$0xf]
                  %819 = vst [vmem:[%s777 + $0x50] sm:$0xf] %v818
                  %v820 = vld [vmem:[%s776 + $0xa8] sm:$0xf]
                  %821 = vst [vmem:[%s777 + $0x54] sm:$0xf] %v820
                  %v822 = vld [vmem:[%s776 + $0xb0] sm:$0xf]
                  %823 = vst [vmem:[%s777 + $0x58] sm:$0xf] %v822
                  %v824 = vld [vmem:[%s776 + $0xb8] sm:$0xf]
                  %825 = vst [vmem:[%s777 + $0x5c] sm:$0xf] %v824
                  %v826 = vld [vmem:[%s776 + $0xc0] sm:$0xf]
                  %827 = vst [vmem:[%s777 + $0x60] sm:$0xf] %v826
                  %v828 = vld [vmem:[%s776 + $0xc8] sm:$0xf]
                  %829 = vst [vmem:[%s777 + $0x64] sm:$0xf] %v828
                  %v830 = vld [vmem:[%s776 + $0xd0] sm:$0xf]
                  %831 = vst [vmem:[%s777 + $0x68] sm:$0xf] %v830
                  %v832 = vld [vmem:[%s776 + $0xd8] sm:$0xf]
                  %833 = vst [vmem:[%s777 + $0x6c] sm:$0xf] %v832
                  %v834 = vld [vmem:[%s776 + $0xe0] sm:$0xf]
                  %835 = vst [vmem:[%s777 + $0x70] sm:$0xf] %v834
                  %v836 = vld [vmem:[%s776 + $0xe8] sm:$0xf]
                  %837 = vst [vmem:[%s777 + $0x74] sm:$0xf] %v836
                  %v838 = vld [vmem:[%s776 + $0xf0] sm:$0xf]
                  %839 = vst [vmem:[%s777 + $0x78] sm:$0xf] %v838
                  %v840 = vld [vmem:[%s776 + $0xf8] sm:$0xf]
                  %841 = vst [vmem:[%s777 + $0x7c] sm:$0xf] %v840
                  %v842 = vld [vmem:[%s776 + $0x100] sm:$0xf]
                  %843 = vst [vmem:[%s777 + $0x80] sm:$0xf] %v842
                  %v844 = vld [vmem:[%s776 + $0x108] sm:$0xf]
                  %845 = vst [vmem:[%s777 + $0x84] sm:$0xf] %v844
                  %v846 = vld [vmem:[%s776 + $0x110] sm:$0xf]
                  %847 = vst [vmem:[%s777 + $0x88] sm:$0xf] %v846
                  %v848 = vld [vmem:[%s776 + $0x118] sm:$0xf]
                  %849 = vst [vmem:[%s777 + $0x8c] sm:$0xf] %v848
                  %v850 = vld [vmem:[%s776 + $0x120] sm:$0xf]
                  %851 = vst [vmem:[%s777 + $0x90] sm:$0xf] %v850
                  %v852 = vld [vmem:[%s776 + $0x128] sm:$0xf]
                  %853 = vst [vmem:[%s777 + $0x94] sm:$0xf] %v852
                  %v854 = vld [vmem:[%s776 + $0x130] sm:$0xf]
                  %855 = vst [vmem:[%s777 + $0x98] sm:$0xf] %v854
                  %v856 = vld [vmem:[%s776 + $0x138] sm:$0xf]
                  %857 = vst [vmem:[%s777 + $0x9c] sm:$0xf] %v856
                  %v858 = vld [vmem:[%s776 + $0x140] sm:$0xf]
                  %859 = vst [vmem:[%s777 + $0xa0] sm:$0xf] %v858
                  %v860 = vld [vmem:[%s776 + $0x148] sm:$0xf]
                  %861 = vst [vmem:[%s777 + $0xa4] sm:$0xf] %v860
                  %v862 = vld [vmem:[%s776 + $0x150] sm:$0xf]
                  %863 = vst [vmem:[%s777 + $0xa8] sm:$0xf] %v862
                  %v864 = vld [vmem:[%s776 + $0x158] sm:$0xf]
                  %865 = vst [vmem:[%s777 + $0xac] sm:$0xf] %v864
                  %v866 = vld [vmem:[%s776 + $0x160] sm:$0xf]
                  %867 = vst [vmem:[%s777 + $0xb0] sm:$0xf] %v866
                  %v868 = vld [vmem:[%s776 + $0x168] sm:$0xf]
                  %869 = vst [vmem:[%s777 + $0xb4] sm:$0xf] %v868
                  %v870 = vld [vmem:[%s776 + $0x170] sm:$0xf]
                  %871 = vst [vmem:[%s777 + $0xb8] sm:$0xf] %v870
                  %v872 = vld [vmem:[%s776 + $0x178] sm:$0xf]
                  %873 = vst [vmem:[%s777 + $0xbc] sm:$0xf] %v872
                  %v874 = vld [vmem:[%s776 + $0x180] sm:$0xf]
                  %875 = vst [vmem:[%s777 + $0xc0] sm:$0xf] %v874
                  %v876 = vld [vmem:[%s776 + $0x188] sm:$0xf]
                  %877 = vst [vmem:[%s777 + $0xc4] sm:$0xf] %v876
                  %v878 = vld [vmem:[%s776 + $0x190] sm:$0xf]
                  %879 = vst [vmem:[%s777 + $0xc8] sm:$0xf] %v878
                  %v880 = vld [vmem:[%s776 + $0x198] sm:$0xf]
                  %881 = vst [vmem:[%s777 + $0xcc] sm:$0xf] %v880
                  %v882 = vld [vmem:[%s776 + $0x1a0] sm:$0xf]
                  %883 = vst [vmem:[%s777 + $0xd0] sm:$0xf] %v882
                  %v884 = vld [vmem:[%s776 + $0x1a8] sm:$0xf]
                  %885 = vst [vmem:[%s777 + $0xd4] sm:$0xf] %v884
                  %v886 = vld [vmem:[%s776 + $0x1b0] sm:$0xf]
                  %887 = vst [vmem:[%s777 + $0xd8] sm:$0xf] %v886
                  %v888 = vld [vmem:[%s776 + $0x1b8] sm:$0xf]
                  %889 = vst [vmem:[%s777 + $0xdc] sm:$0xf] %v888
                  %v890 = vld [vmem:[%s776 + $0x1c0] sm:$0xf]
                  %891 = vst [vmem:[%s777 + $0xe0] sm:$0xf] %v890
                  %v892 = vld [vmem:[%s776 + $0x1c8] sm:$0xf]
                  %893 = vst [vmem:[%s777 + $0xe4] sm:$0xf] %v892
                  %v894 = vld [vmem:[%s776 + $0x1d0] sm:$0xf]
                  %895 = vst [vmem:[%s777 + $0xe8] sm:$0xf] %v894
                  %v896 = vld [vmem:[%s776 + $0x1d8] sm:$0xf]
                  %897 = vst [vmem:[%s777 + $0xec] sm:$0xf] %v896
                  %v898 = vld [vmem:[%s776 + $0x1e0] sm:$0xf]
                  %899 = vst [vmem:[%s777 + $0xf0] sm:$0xf] %v898
                  %v900 = vld [vmem:[%s776 + $0x1e8] sm:$0xf]
                  %901 = vst [vmem:[%s777 + $0xf4] sm:$0xf] %v900
                  %v902 = vld [vmem:[%s776 + $0x1f0] sm:$0xf]
                  %903 = vst [vmem:[%s777 + $0xf8] sm:$0xf] %v902
                  %v904 = vld [vmem:[%s776 + $0x1f8] sm:$0xf]
                  %905 = vst [vmem:[%s777 + $0xfc] sm:$0xf] %v904
                  %v906 = vld [vmem:[%s776 + $0x200] sm:$0xf]
                  %907 = vst [vmem:[%s777 + $0x100] sm:$0xf] %v906
                  %v908 = vld [vmem:[%s776 + $0x208] sm:$0xf]
                  %909 = vst [vmem:[%s777 + $0x104] sm:$0xf] %v908
                  %v910 = vld [vmem:[%s776 + $0x210] sm:$0xf]
                  %911 = vst [vmem:[%s777 + $0x108] sm:$0xf] %v910
                  %v912 = vld [vmem:[%s776 + $0x218] sm:$0xf]
                  %913 = vst [vmem:[%s777 + $0x10c] sm:$0xf] %v912
                  %v914 = vld [vmem:[%s776 + $0x220] sm:$0xf]
                  %915 = vst [vmem:[%s777 + $0x110] sm:$0xf] %v914
                  %v916 = vld [vmem:[%s776 + $0x228] sm:$0xf]
                  %917 = vst [vmem:[%s777 + $0x114] sm:$0xf] %v916
                  %v918 = vld [vmem:[%s776 + $0x230] sm:$0xf]
                  %919 = vst [vmem:[%s777 + $0x118] sm:$0xf] %v918
                  %v920 = vld [vmem:[%s776 + $0x238] sm:$0xf]
                  %921 = vst [vmem:[%s777 + $0x11c] sm:$0xf] %v920
                  %v922 = vld [vmem:[%s776 + $0x240] sm:$0xf]
                  %923 = vst [vmem:[%s777 + $0x120] sm:$0xf] %v922
                  %v924 = vld [vmem:[%s776 + $0x248] sm:$0xf]
                  %925 = vst [vmem:[%s777 + $0x124] sm:$0xf] %v924
                  %v926 = vld [vmem:[%s776 + $0x250] sm:$0xf]
                  %927 = vst [vmem:[%s777 + $0x128] sm:$0xf] %v926
                  %v928 = vld [vmem:[%s776 + $0x258] sm:$0xf]
                  %929 = vst [vmem:[%s777 + $0x12c] sm:$0xf] %v928
                  %v930 = vld [vmem:[%s776 + $0x260] sm:$0xf]
                  %931 = vst [vmem:[%s777 + $0x130] sm:$0xf] %v930
                  %v932 = vld [vmem:[%s776 + $0x268] sm:$0xf]
                  %933 = vst [vmem:[%s777 + $0x134] sm:$0xf] %v932
                  %v934 = vld [vmem:[%s776 + $0x270] sm:$0xf]
                  %935 = vst [vmem:[%s777 + $0x138] sm:$0xf] %v934
                  %v936 = vld [vmem:[%s776 + $0x278] sm:$0xf]
                  %937 = vst [vmem:[%s777 + $0x13c] sm:$0xf] %v936
                  %v938 = vld [vmem:[%s776 + $0x280] sm:$0xf]
                  %939 = vst [vmem:[%s777 + $0x140] sm:$0xf] %v938
                  %v940 = vld [vmem:[%s776 + $0x288] sm:$0xf]
                  %941 = vst [vmem:[%s777 + $0x144] sm:$0xf] %v940
                  %v942 = vld [vmem:[%s776 + $0x290] sm:$0xf]
                  %943 = vst [vmem:[%s777 + $0x148] sm:$0xf] %v942
                  %v944 = vld [vmem:[%s776 + $0x298] sm:$0xf]
                  %945 = vst [vmem:[%s777 + $0x14c] sm:$0xf] %v944
                  %v946 = vld [vmem:[%s776 + $0x2a0] sm:$0xf]
                  %947 = vst [vmem:[%s777 + $0x150] sm:$0xf] %v946
                  %v948 = vld [vmem:[%s776 + $0x2a8] sm:$0xf]
                  %949 = vst [vmem:[%s777 + $0x154] sm:$0xf] %v948
                  %v950 = vld [vmem:[%s776 + $0x2b0] sm:$0xf]
                  %951 = vst [vmem:[%s777 + $0x158] sm:$0xf] %v950
                  %v952 = vld [vmem:[%s776 + $0x2b8] sm:$0xf]
                  %953 = vst [vmem:[%s777 + $0x15c] sm:$0xf] %v952
                  %v954 = vld [vmem:[%s776 + $0x2c0] sm:$0xf]
                  %955 = vst [vmem:[%s777 + $0x160] sm:$0xf] %v954
                  %v956 = vld [vmem:[%s776 + $0x2c8] sm:$0xf]
                  %957 = vst [vmem:[%s777 + $0x164] sm:$0xf] %v956
                  %v958 = vld [vmem:[%s776 + $0x2d0] sm:$0xf]
                  %959 = vst [vmem:[%s777 + $0x168] sm:$0xf] %v958
                  %v960 = vld [vmem:[%s776 + $0x2d8] sm:$0xf]
                  %961 = vst [vmem:[%s777 + $0x16c] sm:$0xf] %v960
                  %v962 = vld [vmem:[%s776 + $0x2e0] sm:$0xf]
                  %963 = vst [vmem:[%s777 + $0x170] sm:$0xf] %v962
                  %v964 = vld [vmem:[%s776 + $0x2e8] sm:$0xf]
                  %965 = vst [vmem:[%s777 + $0x174] sm:$0xf] %v964
                  %v966 = vld [vmem:[%s776 + $0x2f0] sm:$0xf]
                  %967 = vst [vmem:[%s777 + $0x178] sm:$0xf] %v966
                  %v968 = vld [vmem:[%s776 + $0x2f8] sm:$0xf]
                  %969 = vst [vmem:[%s777 + $0x17c] sm:$0xf] %v968
                  %v970 = vld [vmem:[%s776 + $0x300] sm:$0xf]
                  %971 = vst [vmem:[%s777 + $0x180] sm:$0xf] %v970
                  %v972 = vld [vmem:[%s776 + $0x308] sm:$0xf]
                  %973 = vst [vmem:[%s777 + $0x184] sm:$0xf] %v972
                  %v974 = vld [vmem:[%s776 + $0x310] sm:$0xf]
                  %975 = vst [vmem:[%s777 + $0x188] sm:$0xf] %v974
                  %v976 = vld [vmem:[%s776 + $0x318] sm:$0xf]
                  %977 = vst [vmem:[%s777 + $0x18c] sm:$0xf] %v976
                  %v978 = vld [vmem:[%s776 + $0x320] sm:$0xf]
                  %979 = vst [vmem:[%s777 + $0x190] sm:$0xf] %v978
                  %v980 = vld [vmem:[%s776 + $0x328] sm:$0xf]
                  %981 = vst [vmem:[%s777 + $0x194] sm:$0xf] %v980
                  %v982 = vld [vmem:[%s776 + $0x330] sm:$0xf]
                  %983 = vst [vmem:[%s777 + $0x198] sm:$0xf] %v982
                  %v984 = vld [vmem:[%s776 + $0x338] sm:$0xf]
                  %985 = vst [vmem:[%s777 + $0x19c] sm:$0xf] %v984
                  %v986 = vld [vmem:[%s776 + $0x340] sm:$0xf]
                  %987 = vst [vmem:[%s777 + $0x1a0] sm:$0xf] %v986
                  %v988 = vld [vmem:[%s776 + $0x348] sm:$0xf]
                  %989 = vst [vmem:[%s777 + $0x1a4] sm:$0xf] %v988
                  %v990 = vld [vmem:[%s776 + $0x350] sm:$0xf]
                  %991 = vst [vmem:[%s777 + $0x1a8] sm:$0xf] %v990
                  %v992 = vld [vmem:[%s776 + $0x358] sm:$0xf]
                  %993 = vst [vmem:[%s777 + $0x1ac] sm:$0xf] %v992
                  %v994 = vld [vmem:[%s776 + $0x360] sm:$0xf]
                  %995 = vst [vmem:[%s777 + $0x1b0] sm:$0xf] %v994
                  %v996 = vld [vmem:[%s776 + $0x368] sm:$0xf]
                  %997 = vst [vmem:[%s777 + $0x1b4] sm:$0xf] %v996
                  %v998 = vld [vmem:[%s776 + $0x370] sm:$0xf]
                  %999 = vst [vmem:[%s777 + $0x1b8] sm:$0xf] %v998
                  %v1000 = vld [vmem:[%s776 + $0x378] sm:$0xf]
                  %1001 = vst [vmem:[%s777 + $0x1bc] sm:$0xf] %v1000
                  %v1002 = vld [vmem:[%s776 + $0x380] sm:$0xf]
                  %1003 = vst [vmem:[%s777 + $0x1c0] sm:$0xf] %v1002
                  %v1004 = vld [vmem:[%s776 + $0x388] sm:$0xf]
                  %1005 = vst [vmem:[%s777 + $0x1c4] sm:$0xf] %v1004
                  %v1006 = vld [vmem:[%s776 + $0x390] sm:$0xf]
                  %1007 = vst [vmem:[%s777 + $0x1c8] sm:$0xf] %v1006
                  %v1008 = vld [vmem:[%s776 + $0x398] sm:$0xf]
                  %1009 = vst [vmem:[%s777 + $0x1cc] sm:$0xf] %v1008
                  %v1010 = vld [vmem:[%s776 + $0x3a0] sm:$0xf]
                  %1011 = vst [vmem:[%s777 + $0x1d0] sm:$0xf] %v1010
                  %v1012 = vld [vmem:[%s776 + $0x3a8] sm:$0xf]
                  %1013 = vst [vmem:[%s777 + $0x1d4] sm:$0xf] %v1012
                  %v1014 = vld [vmem:[%s776 + $0x3b0] sm:$0xf]
                  %1015 = vst [vmem:[%s777 + $0x1d8] sm:$0xf] %v1014
                  %v1016 = vld [vmem:[%s776 + $0x3b8] sm:$0xf]
                  %1017 = vst [vmem:[%s777 + $0x1dc] sm:$0xf] %v1016
                  %v1018 = vld [vmem:[%s776 + $0x3c0] sm:$0xf]
                  %1019 = vst [vmem:[%s777 + $0x1e0] sm:$0xf] %v1018
                  %v1020 = vld [vmem:[%s776 + $0x3c8] sm:$0xf]
                  %1021 = vst [vmem:[%s777 + $0x1e4] sm:$0xf] %v1020
                  %v1022 = vld [vmem:[%s776 + $0x3d0] sm:$0xf]
                  %1023 = vst [vmem:[%s777 + $0x1e8] sm:$0xf] %v1022
                  %v1024 = vld [vmem:[%s776 + $0x3d8] sm:$0xf]
                  %1025 = vst [vmem:[%s777 + $0x1ec] sm:$0xf] %v1024
                  %v1026 = vld [vmem:[%s776 + $0x3e0] sm:$0xf]
                  %1027 = vst [vmem:[%s777 + $0x1f0] sm:$0xf] %v1026
                  %v1028 = vld [vmem:[%s776 + $0x3e8] sm:$0xf]
                  %1029 = vst [vmem:[%s777 + $0x1f4] sm:$0xf] %v1028
                  %v1030 = vld [vmem:[%s776 + $0x3f0] sm:$0xf]
                  %1031 = vst [vmem:[%s777 + $0x1f8] sm:$0xf] %v1030
                  %v1032 = vld [vmem:[%s776 + $0x3f8] sm:$0xf]
                  %1033 = vst [vmem:[%s777 + $0x1fc] sm:$0xf] %v1032
                  %v1034 = vld [vmem:[%s776 + $0x400] sm:$0xf]
                  %1035 = vst [vmem:[%s777 + $0x200] sm:$0xf] %v1034
                  %v1036 = vld [vmem:[%s776 + $0x408] sm:$0xf]
                  %1037 = vst [vmem:[%s777 + $0x204] sm:$0xf] %v1036
                  %v1038 = vld [vmem:[%s776 + $0x410] sm:$0xf]
                  %1039 = vst [vmem:[%s777 + $0x208] sm:$0xf] %v1038
                  %v1040 = vld [vmem:[%s776 + $0x418] sm:$0xf]
                  %1041 = vst [vmem:[%s777 + $0x20c] sm:$0xf] %v1040
                  %v1042 = vld [vmem:[%s776 + $0x420] sm:$0xf]
                  %1043 = vst [vmem:[%s777 + $0x210] sm:$0xf] %v1042
                  %v1044 = vld [vmem:[%s776 + $0x428] sm:$0xf]
                  %1045 = vst [vmem:[%s777 + $0x214] sm:$0xf] %v1044
                  %v1046 = vld [vmem:[%s776 + $0x430] sm:$0xf]
                  %1047 = vst [vmem:[%s777 + $0x218] sm:$0xf] %v1046
                  %v1048 = vld [vmem:[%s776 + $0x438] sm:$0xf]
                  %1049 = vst [vmem:[%s777 + $0x21c] sm:$0xf] %v1048
                  %v1050 = vld [vmem:[%s776 + $0x440] sm:$0xf]
                  %1051 = vst [vmem:[%s777 + $0x220] sm:$0xf] %v1050
                  %v1052 = vld [vmem:[%s776 + $0x448] sm:$0xf]
                  %1053 = vst [vmem:[%s777 + $0x224] sm:$0xf] %v1052
                  %v1054 = vld [vmem:[%s776 + $0x450] sm:$0xf]
                  %1055 = vst [vmem:[%s777 + $0x228] sm:$0xf] %v1054
                  %v1056 = vld [vmem:[%s776 + $0x458] sm:$0xf]
                  %1057 = vst [vmem:[%s777 + $0x22c] sm:$0xf] %v1056
                  %v1058 = vld [vmem:[%s776 + $0x460] sm:$0xf]
                  %1059 = vst [vmem:[%s777 + $0x230] sm:$0xf] %v1058
                  %v1060 = vld [vmem:[%s776 + $0x468] sm:$0xf]
                  %1061 = vst [vmem:[%s777 + $0x234] sm:$0xf] %v1060
                  %v1062 = vld [vmem:[%s776 + $0x470] sm:$0xf]
                  %1063 = vst [vmem:[%s777 + $0x238] sm:$0xf] %v1062
                  %v1064 = vld [vmem:[%s776 + $0x478] sm:$0xf]
                  %1065 = vst [vmem:[%s777 + $0x23c] sm:$0xf] %v1064
                  %v1066 = vld [vmem:[%s776 + $0x480] sm:$0xf]
                  %1067 = vst [vmem:[%s777 + $0x240] sm:$0xf] %v1066
                  %v1068 = vld [vmem:[%s776 + $0x488] sm:$0xf]
                  %1069 = vst [vmem:[%s777 + $0x244] sm:$0xf] %v1068
                  %v1070 = vld [vmem:[%s776 + $0x490] sm:$0xf]
                  %1071 = vst [vmem:[%s777 + $0x248] sm:$0xf] %v1070
                  %v1072 = vld [vmem:[%s776 + $0x498] sm:$0xf]
                  %1073 = vst [vmem:[%s777 + $0x24c] sm:$0xf] %v1072
                  %v1074 = vld [vmem:[%s776 + $0x4a0] sm:$0xf]
                  %1075 = vst [vmem:[%s777 + $0x250] sm:$0xf] %v1074
                  %v1076 = vld [vmem:[%s776 + $0x4a8] sm:$0xf]
                  %1077 = vst [vmem:[%s777 + $0x254] sm:$0xf] %v1076
                  %v1078 = vld [vmem:[%s776 + $0x4b0] sm:$0xf]
                  %1079 = vst [vmem:[%s777 + $0x258] sm:$0xf] %v1078
                  %v1080 = vld [vmem:[%s776 + $0x4b8] sm:$0xf]
                  %1081 = vst [vmem:[%s777 + $0x25c] sm:$0xf] %v1080
                  %v1082 = vld [vmem:[%s776 + $0x4c0] sm:$0xf]
                  %1083 = vst [vmem:[%s777 + $0x260] sm:$0xf] %v1082
                  %v1084 = vld [vmem:[%s776 + $0x4c8] sm:$0xf]
                  %1085 = vst [vmem:[%s777 + $0x264] sm:$0xf] %v1084
                  %v1086 = vld [vmem:[%s776 + $0x4d0] sm:$0xf]
                  %1087 = vst [vmem:[%s777 + $0x268] sm:$0xf] %v1086
                  %v1088 = vld [vmem:[%s776 + $0x4d8] sm:$0xf]
                  %1089 = vst [vmem:[%s777 + $0x26c] sm:$0xf] %v1088
                  %v1090 = vld [vmem:[%s776 + $0x4e0] sm:$0xf]
                  %1091 = vst [vmem:[%s777 + $0x270] sm:$0xf] %v1090
                  %v1092 = vld [vmem:[%s776 + $0x4e8] sm:$0xf]
                  %1093 = vst [vmem:[%s777 + $0x274] sm:$0xf] %v1092
                  %v1094 = vld [vmem:[%s776 + $0x4f0] sm:$0xf]
                  %1095 = vst [vmem:[%s777 + $0x278] sm:$0xf] %v1094
                  %v1096 = vld [vmem:[%s776 + $0x4f8] sm:$0xf]
                  %1097 = vst [vmem:[%s777 + $0x27c] sm:$0xf] %v1096
                  %v1098 = vld [vmem:[%s776 + $0x500] sm:$0xf]
                  %1099 = vst [vmem:[%s777 + $0x280] sm:$0xf] %v1098
                  %v1100 = vld [vmem:[%s776 + $0x508] sm:$0xf]
                  %1101 = vst [vmem:[%s777 + $0x284] sm:$0xf] %v1100
                  %v1102 = vld [vmem:[%s776 + $0x510] sm:$0xf]
                  %1103 = vst [vmem:[%s777 + $0x288] sm:$0xf] %v1102
                  %v1104 = vld [vmem:[%s776 + $0x518] sm:$0xf]
                  %1105 = vst [vmem:[%s777 + $0x28c] sm:$0xf] %v1104
                  %v1106 = vld [vmem:[%s776 + $0x520] sm:$0xf]
                  %1107 = vst [vmem:[%s777 + $0x290] sm:$0xf] %v1106
                  %v1108 = vld [vmem:[%s776 + $0x528] sm:$0xf]
                  %1109 = vst [vmem:[%s777 + $0x294] sm:$0xf] %v1108
                  %v1110 = vld [vmem:[%s776 + $0x530] sm:$0xf]
                  %1111 = vst [vmem:[%s777 + $0x298] sm:$0xf] %v1110
                  %v1112 = vld [vmem:[%s776 + $0x538] sm:$0xf]
                  %1113 = vst [vmem:[%s777 + $0x29c] sm:$0xf] %v1112
                  %v1114 = vld [vmem:[%s776 + $0x540] sm:$0xf]
                  %1115 = vst [vmem:[%s777 + $0x2a0] sm:$0xf] %v1114
                  %v1116 = vld [vmem:[%s776 + $0x548] sm:$0xf]
                  %1117 = vst [vmem:[%s777 + $0x2a4] sm:$0xf] %v1116
                  %v1118 = vld [vmem:[%s776 + $0x550] sm:$0xf]
                  %1119 = vst [vmem:[%s777 + $0x2a8] sm:$0xf] %v1118
                  %v1120 = vld [vmem:[%s776 + $0x558] sm:$0xf]
                  %1121 = vst [vmem:[%s777 + $0x2ac] sm:$0xf] %v1120
                  %v1122 = vld [vmem:[%s776 + $0x560] sm:$0xf]
                  %1123 = vst [vmem:[%s777 + $0x2b0] sm:$0xf] %v1122
                  %v1124 = vld [vmem:[%s776 + $0x568] sm:$0xf]
                  %1125 = vst [vmem:[%s777 + $0x2b4] sm:$0xf] %v1124
                  %v1126 = vld [vmem:[%s776 + $0x570] sm:$0xf]
                  %1127 = vst [vmem:[%s777 + $0x2b8] sm:$0xf] %v1126
                  %v1128 = vld [vmem:[%s776 + $0x578] sm:$0xf]
                  %1129 = vst [vmem:[%s777 + $0x2bc] sm:$0xf] %v1128
                  %v1130 = vld [vmem:[%s776 + $0x580] sm:$0xf]
                  %1131 = vst [vmem:[%s777 + $0x2c0] sm:$0xf] %v1130
                  %v1132 = vld [vmem:[%s776 + $0x588] sm:$0xf]
                  %1133 = vst [vmem:[%s777 + $0x2c4] sm:$0xf] %v1132
                  %v1134 = vld [vmem:[%s776 + $0x590] sm:$0xf]
                  %1135 = vst [vmem:[%s777 + $0x2c8] sm:$0xf] %v1134
                  %v1136 = vld [vmem:[%s776 + $0x598] sm:$0xf]
                  %1137 = vst [vmem:[%s777 + $0x2cc] sm:$0xf] %v1136
                  %v1138 = vld [vmem:[%s776 + $0x5a0] sm:$0xf]
                  %1139 = vst [vmem:[%s777 + $0x2d0] sm:$0xf] %v1138
                  %v1140 = vld [vmem:[%s776 + $0x5a8] sm:$0xf]
                  %1141 = vst [vmem:[%s777 + $0x2d4] sm:$0xf] %v1140
                  %v1142 = vld [vmem:[%s776 + $0x5b0] sm:$0xf]
                  %1143 = vst [vmem:[%s777 + $0x2d8] sm:$0xf] %v1142
                  %v1144 = vld [vmem:[%s776 + $0x5b8] sm:$0xf]
                  %1145 = vst [vmem:[%s777 + $0x2dc] sm:$0xf] %v1144
                  %v1146 = vld [vmem:[%s776 + $0x5c0] sm:$0xf]
                  %1147 = vst [vmem:[%s777 + $0x2e0] sm:$0xf] %v1146
                  %v1148 = vld [vmem:[%s776 + $0x5c8] sm:$0xf]
                  %1149 = vst [vmem:[%s777 + $0x2e4] sm:$0xf] %v1148
                  %v1150 = vld [vmem:[%s776 + $0x5d0] sm:$0xf]
                  %1151 = vst [vmem:[%s777 + $0x2e8] sm:$0xf] %v1150
                  %v1152 = vld [vmem:[%s776 + $0x5d8] sm:$0xf]
                  %1153 = vst [vmem:[%s777 + $0x2ec] sm:$0xf] %v1152
                  %v1154 = vld [vmem:[%s776 + $0x5e0] sm:$0xf]
                  %1155 = vst [vmem:[%s777 + $0x2f0] sm:$0xf] %v1154
                  %v1156 = vld [vmem:[%s776 + $0x5e8] sm:$0xf]
                  %1157 = vst [vmem:[%s777 + $0x2f4] sm:$0xf] %v1156
                  %v1158 = vld [vmem:[%s776 + $0x5f0] sm:$0xf]
                  %1159 = vst [vmem:[%s777 + $0x2f8] sm:$0xf] %v1158
                  %v1160 = vld [vmem:[%s776 + $0x5f8] sm:$0xf]
                  %1161 = vst [vmem:[%s777 + $0x2fc] sm:$0xf] %v1160
                  %v1162 = vld [vmem:[%s776 + $0x600] sm:$0xf]
                  %1163 = vst [vmem:[%s777 + $0x300] sm:$0xf] %v1162
                  %v1164 = vld [vmem:[%s776 + $0x608] sm:$0xf]
                  %1165 = vst [vmem:[%s777 + $0x304] sm:$0xf] %v1164
                  %v1166 = vld [vmem:[%s776 + $0x610] sm:$0xf]
                  %1167 = vst [vmem:[%s777 + $0x308] sm:$0xf] %v1166
                  %v1168 = vld [vmem:[%s776 + $0x618] sm:$0xf]
                  %1169 = vst [vmem:[%s777 + $0x30c] sm:$0xf] %v1168
                  %v1170 = vld [vmem:[%s776 + $0x620] sm:$0xf]
                  %1171 = vst [vmem:[%s777 + $0x310] sm:$0xf] %v1170
                  %v1172 = vld [vmem:[%s776 + $0x628] sm:$0xf]
                  %1173 = vst [vmem:[%s777 + $0x314] sm:$0xf] %v1172
                  %v1174 = vld [vmem:[%s776 + $0x630] sm:$0xf]
                  %1175 = vst [vmem:[%s777 + $0x318] sm:$0xf] %v1174
                  %v1176 = vld [vmem:[%s776 + $0x638] sm:$0xf]
                  %1177 = vst [vmem:[%s777 + $0x31c] sm:$0xf] %v1176
                  %v1178 = vld [vmem:[%s776 + $0x640] sm:$0xf]
                  %1179 = vst [vmem:[%s777 + $0x320] sm:$0xf] %v1178
                  %v1180 = vld [vmem:[%s776 + $0x648] sm:$0xf]
                  %1181 = vst [vmem:[%s777 + $0x324] sm:$0xf] %v1180
                  %v1182 = vld [vmem:[%s776 + $0x650] sm:$0xf]
                  %1183 = vst [vmem:[%s777 + $0x328] sm:$0xf] %v1182
                  %v1184 = vld [vmem:[%s776 + $0x658] sm:$0xf]
                  %1185 = vst [vmem:[%s777 + $0x32c] sm:$0xf] %v1184
                  %v1186 = vld [vmem:[%s776 + $0x660] sm:$0xf]
                  %1187 = vst [vmem:[%s777 + $0x330] sm:$0xf] %v1186
                  %v1188 = vld [vmem:[%s776 + $0x668] sm:$0xf]
                  %1189 = vst [vmem:[%s777 + $0x334] sm:$0xf] %v1188
                  %v1190 = vld [vmem:[%s776 + $0x670] sm:$0xf]
                  %1191 = vst [vmem:[%s777 + $0x338] sm:$0xf] %v1190
                  %v1192 = vld [vmem:[%s776 + $0x678] sm:$0xf]
                  %1193 = vst [vmem:[%s777 + $0x33c] sm:$0xf] %v1192
                  %v1194 = vld [vmem:[%s776 + $0x680] sm:$0xf]
                  %1195 = vst [vmem:[%s777 + $0x340] sm:$0xf] %v1194
                  %v1196 = vld [vmem:[%s776 + $0x688] sm:$0xf]
                  %1197 = vst [vmem:[%s777 + $0x344] sm:$0xf] %v1196
                  %v1198 = vld [vmem:[%s776 + $0x690] sm:$0xf]
                  %1199 = vst [vmem:[%s777 + $0x348] sm:$0xf] %v1198
                  %v1200 = vld [vmem:[%s776 + $0x698] sm:$0xf]
                  %1201 = vst [vmem:[%s777 + $0x34c] sm:$0xf] %v1200
                  %v1202 = vld [vmem:[%s776 + $0x6a0] sm:$0xf]
                  %1203 = vst [vmem:[%s777 + $0x350] sm:$0xf] %v1202
                  %v1204 = vld [vmem:[%s776 + $0x6a8] sm:$0xf]
                  %1205 = vst [vmem:[%s777 + $0x354] sm:$0xf] %v1204
                  %v1206 = vld [vmem:[%s776 + $0x6b0] sm:$0xf]
                  %1207 = vst [vmem:[%s777 + $0x358] sm:$0xf] %v1206
                  %v1208 = vld [vmem:[%s776 + $0x6b8] sm:$0xf]
                  %1209 = vst [vmem:[%s777 + $0x35c] sm:$0xf] %v1208
                  %v1210 = vld [vmem:[%s776 + $0x6c0] sm:$0xf]
                  %1211 = vst [vmem:[%s777 + $0x360] sm:$0xf] %v1210
                  %v1212 = vld [vmem:[%s776 + $0x6c8] sm:$0xf]
                  %1213 = vst [vmem:[%s777 + $0x364] sm:$0xf] %v1212
                  %v1214 = vld [vmem:[%s776 + $0x6d0] sm:$0xf]
                  %1215 = vst [vmem:[%s777 + $0x368] sm:$0xf] %v1214
                  %v1216 = vld [vmem:[%s776 + $0x6d8] sm:$0xf]
                  %1217 = vst [vmem:[%s777 + $0x36c] sm:$0xf] %v1216
                  %v1218 = vld [vmem:[%s776 + $0x6e0] sm:$0xf]
                  %1219 = vst [vmem:[%s777 + $0x370] sm:$0xf] %v1218
                  %v1220 = vld [vmem:[%s776 + $0x6e8] sm:$0xf]
                  %1221 = vst [vmem:[%s777 + $0x374] sm:$0xf] %v1220
                  %v1222 = vld [vmem:[%s776 + $0x6f0] sm:$0xf]
                  %1223 = vst [vmem:[%s777 + $0x378] sm:$0xf] %v1222
                  %v1224 = vld [vmem:[%s776 + $0x6f8] sm:$0xf]
                  %1225 = vst [vmem:[%s777 + $0x37c] sm:$0xf] %v1224
                  %v1226 = vld [vmem:[%s776 + $0x700] sm:$0xf]
                  %1227 = vst [vmem:[%s777 + $0x380] sm:$0xf] %v1226
                  %v1228 = vld [vmem:[%s776 + $0x708] sm:$0xf]
                  %1229 = vst [vmem:[%s777 + $0x384] sm:$0xf] %v1228
                  %v1230 = vld [vmem:[%s776 + $0x710] sm:$0xf]
                  %1231 = vst [vmem:[%s777 + $0x388] sm:$0xf] %v1230
                  %v1232 = vld [vmem:[%s776 + $0x718] sm:$0xf]
                  %1233 = vst [vmem:[%s777 + $0x38c] sm:$0xf] %v1232
                  %v1234 = vld [vmem:[%s776 + $0x720] sm:$0xf]
                  %1235 = vst [vmem:[%s777 + $0x390] sm:$0xf] %v1234
                  %v1236 = vld [vmem:[%s776 + $0x728] sm:$0xf]
                  %1237 = vst [vmem:[%s777 + $0x394] sm:$0xf] %v1236
                  %v1238 = vld [vmem:[%s776 + $0x730] sm:$0xf]
                  %1239 = vst [vmem:[%s777 + $0x398] sm:$0xf] %v1238
                  %v1240 = vld [vmem:[%s776 + $0x738] sm:$0xf]
                  %1241 = vst [vmem:[%s777 + $0x39c] sm:$0xf] %v1240
                  %v1242 = vld [vmem:[%s776 + $0x740] sm:$0xf]
                  %1243 = vst [vmem:[%s777 + $0x3a0] sm:$0xf] %v1242
                  %v1244 = vld [vmem:[%s776 + $0x748] sm:$0xf]
                  %1245 = vst [vmem:[%s777 + $0x3a4] sm:$0xf] %v1244
                  %v1246 = vld [vmem:[%s776 + $0x750] sm:$0xf]
                  %1247 = vst [vmem:[%s777 + $0x3a8] sm:$0xf] %v1246
                  %v1248 = vld [vmem:[%s776 + $0x758] sm:$0xf]
                  %1249 = vst [vmem:[%s777 + $0x3ac] sm:$0xf] %v1248
                  %v1250 = vld [vmem:[%s776 + $0x760] sm:$0xf]
                  %1251 = vst [vmem:[%s777 + $0x3b0] sm:$0xf] %v1250
                  %v1252 = vld [vmem:[%s776 + $0x768] sm:$0xf]
                  %1253 = vst [vmem:[%s777 + $0x3b4] sm:$0xf] %v1252
                  %v1254 = vld [vmem:[%s776 + $0x770] sm:$0xf]
                  %1255 = vst [vmem:[%s777 + $0x3b8] sm:$0xf] %v1254
                  %v1256 = vld [vmem:[%s776 + $0x778] sm:$0xf]
                  %1257 = vst [vmem:[%s777 + $0x3bc] sm:$0xf] %v1256
                  %v1258 = vld [vmem:[%s776 + $0x780] sm:$0xf]
                  %1259 = vst [vmem:[%s777 + $0x3c0] sm:$0xf] %v1258
                  %v1260 = vld [vmem:[%s776 + $0x788] sm:$0xf]
                  %1261 = vst [vmem:[%s777 + $0x3c4] sm:$0xf] %v1260
                  %v1262 = vld [vmem:[%s776 + $0x790] sm:$0xf]
                  %1263 = vst [vmem:[%s777 + $0x3c8] sm:$0xf] %v1262
                  %v1264 = vld [vmem:[%s776 + $0x798] sm:$0xf]
                  %1265 = vst [vmem:[%s777 + $0x3cc] sm:$0xf] %v1264
                  %v1266 = vld [vmem:[%s776 + $0x7a0] sm:$0xf]
                  %1267 = vst [vmem:[%s777 + $0x3d0] sm:$0xf] %v1266
                  %v1268 = vld [vmem:[%s776 + $0x7a8] sm:$0xf]
                  %1269 = vst [vmem:[%s777 + $0x3d4] sm:$0xf] %v1268
                  %v1270 = vld [vmem:[%s776 + $0x7b0] sm:$0xf]
                  %1271 = vst [vmem:[%s777 + $0x3d8] sm:$0xf] %v1270
                  %v1272 = vld [vmem:[%s776 + $0x7b8] sm:$0xf]
                  %1273 = vst [vmem:[%s777 + $0x3dc] sm:$0xf] %v1272
                  %v1274 = vld [vmem:[%s776 + $0x7c0] sm:$0xf]
                  %1275 = vst [vmem:[%s777 + $0x3e0] sm:$0xf] %v1274
                  %v1276 = vld [vmem:[%s776 + $0x7c8] sm:$0xf]
                  %1277 = vst [vmem:[%s777 + $0x3e4] sm:$0xf] %v1276
                  %v1278 = vld [vmem:[%s776 + $0x7d0] sm:$0xf]
                  %1279 = vst [vmem:[%s777 + $0x3e8] sm:$0xf] %v1278
                  %v1280 = vld [vmem:[%s776 + $0x7d8] sm:$0xf]
                  %1281 = vst [vmem:[%s777 + $0x3ec] sm:$0xf] %v1280
                  %v1282 = vld [vmem:[%s776 + $0x7e0] sm:$0xf]
                  %1283 = vst [vmem:[%s777 + $0x3f0] sm:$0xf] %v1282
                  %v1284 = vld [vmem:[%s776 + $0x7e8] sm:$0xf]
                  %1285 = vst [vmem:[%s777 + $0x3f4] sm:$0xf] %v1284
                  %v1286 = vld [vmem:[%s776 + $0x7f0] sm:$0xf]
                  %1287 = vst [vmem:[%s777 + $0x3f8] sm:$0xf] %v1286
                  %v1288 = vld [vmem:[%s776 + $0x7f8] sm:$0xf]
                  %1289 = vst [vmem:[%s777 + $0x3fc] sm:$0xf] %v1288
                  %v1290 = vld [vmem:[%s776 + $0x800] sm:$0xf]
                  %1291 = vst [vmem:[%s777 + $0x400] sm:$0xf] %v1290
                  %v1292 = vld [vmem:[%s776 + $0x808] sm:$0xf]
                  %1293 = vst [vmem:[%s777 + $0x404] sm:$0xf] %v1292
                  %v1294 = vld [vmem:[%s776 + $0x810] sm:$0xf]
                  %1295 = vst [vmem:[%s777 + $0x408] sm:$0xf] %v1294
                  %v1296 = vld [vmem:[%s776 + $0x818] sm:$0xf]
                  %1297 = vst [vmem:[%s777 + $0x40c] sm:$0xf] %v1296
                  %v1298 = vld [vmem:[%s776 + $0x820] sm:$0xf]
                  %1299 = vst [vmem:[%s777 + $0x410] sm:$0xf] %v1298
                  %v1300 = vld [vmem:[%s776 + $0x828] sm:$0xf]
                  %1301 = vst [vmem:[%s777 + $0x414] sm:$0xf] %v1300
                  %v1302 = vld [vmem:[%s776 + $0x830] sm:$0xf]
                  %1303 = vst [vmem:[%s777 + $0x418] sm:$0xf] %v1302
                  %v1304 = vld [vmem:[%s776 + $0x838] sm:$0xf]
                  %1305 = vst [vmem:[%s777 + $0x41c] sm:$0xf] %v1304
                  %v1306 = vld [vmem:[%s776 + $0x840] sm:$0xf]
                  %1307 = vst [vmem:[%s777 + $0x420] sm:$0xf] %v1306
                  %v1308 = vld [vmem:[%s776 + $0x848] sm:$0xf]
                  %1309 = vst [vmem:[%s777 + $0x424] sm:$0xf] %v1308
                  %v1310 = vld [vmem:[%s776 + $0x850] sm:$0xf]
                  %1311 = vst [vmem:[%s777 + $0x428] sm:$0xf] %v1310
                  %v1312 = vld [vmem:[%s776 + $0x858] sm:$0xf]
                  %1313 = vst [vmem:[%s777 + $0x42c] sm:$0xf] %v1312
                  %v1314 = vld [vmem:[%s776 + $0x860] sm:$0xf]
                  %1315 = vst [vmem:[%s777 + $0x430] sm:$0xf] %v1314
                  %v1316 = vld [vmem:[%s776 + $0x868] sm:$0xf]
                  %1317 = vst [vmem:[%s777 + $0x434] sm:$0xf] %v1316
                  %v1318 = vld [vmem:[%s776 + $0x870] sm:$0xf]
                  %1319 = vst [vmem:[%s777 + $0x438] sm:$0xf] %v1318
                  %v1320 = vld [vmem:[%s776 + $0x878] sm:$0xf]
                  %1321 = vst [vmem:[%s777 + $0x43c] sm:$0xf] %v1320
                  %v1322 = vld [vmem:[%s776 + $0x880] sm:$0xf]
                  %1323 = vst [vmem:[%s777 + $0x440] sm:$0xf] %v1322
                  %v1324 = vld [vmem:[%s776 + $0x888] sm:$0xf]
                  %1325 = vst [vmem:[%s777 + $0x444] sm:$0xf] %v1324
                  %v1326 = vld [vmem:[%s776 + $0x890] sm:$0xf]
                  %1327 = vst [vmem:[%s777 + $0x448] sm:$0xf] %v1326
                  %v1328 = vld [vmem:[%s776 + $0x898] sm:$0xf]
                  %1329 = vst [vmem:[%s777 + $0x44c] sm:$0xf] %v1328
                  %v1330 = vld [vmem:[%s776 + $0x8a0] sm:$0xf]
                  %1331 = vst [vmem:[%s777 + $0x450] sm:$0xf] %v1330
                  %v1332 = vld [vmem:[%s776 + $0x8a8] sm:$0xf]
                  %1333 = vst [vmem:[%s777 + $0x454] sm:$0xf] %v1332
                  %v1334 = vld [vmem:[%s776 + $0x8b0] sm:$0xf]
                  %1335 = vst [vmem:[%s777 + $0x458] sm:$0xf] %v1334
                  %v1336 = vld [vmem:[%s776 + $0x8b8] sm:$0xf]
                  %1337 = vst [vmem:[%s777 + $0x45c] sm:$0xf] %v1336
                  %v1338 = vld [vmem:[%s776 + $0x8c0] sm:$0xf]
                  %1339 = vst [vmem:[%s777 + $0x460] sm:$0xf] %v1338
                  %v1340 = vld [vmem:[%s776 + $0x8c8] sm:$0xf]
                  %1341 = vst [vmem:[%s777 + $0x464] sm:$0xf] %v1340
                  %v1342 = vld [vmem:[%s776 + $0x8d0] sm:$0xf]
                  %1343 = vst [vmem:[%s777 + $0x468] sm:$0xf] %v1342
                  %v1344 = vld [vmem:[%s776 + $0x8d8] sm:$0xf]
                  %1345 = vst [vmem:[%s777 + $0x46c] sm:$0xf] %v1344
                  %v1346 = vld [vmem:[%s776 + $0x8e0] sm:$0xf]
                  %1347 = vst [vmem:[%s777 + $0x470] sm:$0xf] %v1346
                  %v1348 = vld [vmem:[%s776 + $0x8e8] sm:$0xf]
                  %1349 = vst [vmem:[%s777 + $0x474] sm:$0xf] %v1348
                  %v1350 = vld [vmem:[%s776 + $0x8f0] sm:$0xf]
                  %1351 = vst [vmem:[%s777 + $0x478] sm:$0xf] %v1350
                  %v1352 = vld [vmem:[%s776 + $0x8f8] sm:$0xf]
                  %1353 = vst [vmem:[%s777 + $0x47c] sm:$0xf] %v1352
                $region59: #{_lambda_.1} parent=46 // loop_footer
                  %s775 = sadd.s32 1, %s771
                $region60: #{_lambda_.1} parent=46 // loop_footer_branch
                  %770 = sbr.rel target = $region56
                $region61: #{_lambda_.1} parent=46 // loop_exit
                  _
              $region47: #{_lambda_.1} parent=31 // pred_fallthru
                _
            $region32: #{_lambda_.1} parent=27 // pred_fallthru
              _
            // Predicated region
            $region33: #{_lambda_.1} parent=27 // pred_check
              _
            $region34: #{_lambda_.1} parent=27 // pred_check_branch
              %173 = sbr.rel (0) target = $region36
            $region35: #{_lambda_.1} parent=27 // pred_region
              loop: start=0, step=1, limit=1
              $region37: #{_lambda_.1} parent=35 // loop_pre_header
                _
              $region38: #{_lambda_.1} parent=35 // loop_header
                %s176 = sphi 0, %s180
                %p177 = scmp.ge.s32.totalorder %s176, 1
                %s181 = sphi %s167, %s167
                %s182 = sphi %s165, %s165
              $region39: #{_lambda_.1} parent=35 // loop_header_branch
                %179 = sbr.rel (%p177) target = $region43
              $region40: #{_lambda_.1} parent=35 // loop_body
                %v183 = vld [vmem:[%s181] sm:$0xf]
                %184 = vst [vmem:[%s182] sm:$0xf] %v183
                %v185 = vld [vmem:[%s181 + $0x8] sm:$0xf]
                %186 = vst [vmem:[%s182 + $0x4] sm:$0xf] %v185
                %v187 = vld [vmem:[%s181 + $0x10] sm:$0xf]
                %188 = vst [vmem:[%s182 + $0x8] sm:$0xf] %v187
                %v189 = vld [vmem:[%s181 + $0x18] sm:$0xf]
                %190 = vst [vmem:[%s182 + $0xc] sm:$0xf] %v189
                %v191 = vld [vmem:[%s181 + $0x20] sm:$0xf]
                %192 = vst [vmem:[%s182 + $0x10] sm:$0xf] %v191
                %v193 = vld [vmem:[%s181 + $0x28] sm:$0xf]
                %194 = vst [vmem:[%s182 + $0x14] sm:$0xf] %v193
                %v195 = vld [vmem:[%s181 + $0x30] sm:$0xf]
                %196 = vst [vmem:[%s182 + $0x18] sm:$0xf] %v195
                %v197 = vld [vmem:[%s181 + $0x38] sm:$0xf]
                %198 = vst [vmem:[%s182 + $0x1c] sm:$0xf] %v197
                %v199 = vld [vmem:[%s181 + $0x40] sm:$0xf]
                %200 = vst [vmem:[%s182 + $0x20] sm:$0xf] %v199
                %v201 = vld [vmem:[%s181 + $0x48] sm:$0xf]
                %202 = vst [vmem:[%s182 + $0x24] sm:$0xf] %v201
                %v203 = vld [vmem:[%s181 + $0x50] sm:$0xf]
                %204 = vst [vmem:[%s182 + $0x28] sm:$0xf] %v203
                %v205 = vld [vmem:[%s181 + $0x58] sm:$0xf]
                %206 = vst [vmem:[%s182 + $0x2c] sm:$0xf] %v205
                %v207 = vld [vmem:[%s181 + $0x60] sm:$0xf]
                %208 = vst [vmem:[%s182 + $0x30] sm:$0xf] %v207
                %v209 = vld [vmem:[%s181 + $0x68] sm:$0xf]
                %210 = vst [vmem:[%s182 + $0x34] sm:$0xf] %v209
                %v211 = vld [vmem:[%s181 + $0x70] sm:$0xf]
                %212 = vst [vmem:[%s182 + $0x38] sm:$0xf] %v211
                %v213 = vld [vmem:[%s181 + $0x78] sm:$0xf]
                %214 = vst [vmem:[%s182 + $0x3c] sm:$0xf] %v213
                %v215 = vld [vmem:[%s181 + $0x80] sm:$0xf]
                %216 = vst [vmem:[%s182 + $0x40] sm:$0xf] %v215
                %v217 = vld [vmem:[%s181 + $0x88] sm:$0xf]
                %218 = vst [vmem:[%s182 + $0x44] sm:$0xf] %v217
                %v219 = vld [vmem:[%s181 + $0x90] sm:$0xf]
                %220 = vst [vmem:[%s182 + $0x48] sm:$0xf] %v219
                %v221 = vld [vmem:[%s181 + $0x98] sm:$0xf]
                %222 = vst [vmem:[%s182 + $0x4c] sm:$0xf] %v221
                %v223 = vld [vmem:[%s181 + $0xa0] sm:$0xf]
                %224 = vst [vmem:[%s182 + $0x50] sm:$0xf] %v223
                %v225 = vld [vmem:[%s181 + $0xa8] sm:$0xf]
                %226 = vst [vmem:[%s182 + $0x54] sm:$0xf] %v225
                %v227 = vld [vmem:[%s181 + $0xb0] sm:$0xf]
                %228 = vst [vmem:[%s182 + $0x58] sm:$0xf] %v227
                %v229 = vld [vmem:[%s181 + $0xb8] sm:$0xf]
                %230 = vst [vmem:[%s182 + $0x5c] sm:$0xf] %v229
                %v231 = vld [vmem:[%s181 + $0xc0] sm:$0xf]
                %232 = vst [vmem:[%s182 + $0x60] sm:$0xf] %v231
                %v233 = vld [vmem:[%s181 + $0xc8] sm:$0xf]
                %234 = vst [vmem:[%s182 + $0x64] sm:$0xf] %v233
                %v235 = vld [vmem:[%s181 + $0xd0] sm:$0xf]
                %236 = vst [vmem:[%s182 + $0x68] sm:$0xf] %v235
                %v237 = vld [vmem:[%s181 + $0xd8] sm:$0xf]
                %238 = vst [vmem:[%s182 + $0x6c] sm:$0xf] %v237
                %v239 = vld [vmem:[%s181 + $0xe0] sm:$0xf]
                %240 = vst [vmem:[%s182 + $0x70] sm:$0xf] %v239
                %v241 = vld [vmem:[%s181 + $0xe8] sm:$0xf]
                %242 = vst [vmem:[%s182 + $0x74] sm:$0xf] %v241
                %v243 = vld [vmem:[%s181 + $0xf0] sm:$0xf]
                %244 = vst [vmem:[%s182 + $0x78] sm:$0xf] %v243
                %v245 = vld [vmem:[%s181 + $0xf8] sm:$0xf]
                %246 = vst [vmem:[%s182 + $0x7c] sm:$0xf] %v245
                %v247 = vld [vmem:[%s181 + $0x100] sm:$0xf]
                %248 = vst [vmem:[%s182 + $0x80] sm:$0xf] %v247
                %v249 = vld [vmem:[%s181 + $0x108] sm:$0xf]
                %250 = vst [vmem:[%s182 + $0x84] sm:$0xf] %v249
                %v251 = vld [vmem:[%s181 + $0x110] sm:$0xf]
                %252 = vst [vmem:[%s182 + $0x88] sm:$0xf] %v251
                %v253 = vld [vmem:[%s181 + $0x118] sm:$0xf]
                %254 = vst [vmem:[%s182 + $0x8c] sm:$0xf] %v253
                %v255 = vld [vmem:[%s181 + $0x120] sm:$0xf]
                %256 = vst [vmem:[%s182 + $0x90] sm:$0xf] %v255
                %v257 = vld [vmem:[%s181 + $0x128] sm:$0xf]
                %258 = vst [vmem:[%s182 + $0x94] sm:$0xf] %v257
                %v259 = vld [vmem:[%s181 + $0x130] sm:$0xf]
                %260 = vst [vmem:[%s182 + $0x98] sm:$0xf] %v259
                %v261 = vld [vmem:[%s181 + $0x138] sm:$0xf]
                %262 = vst [vmem:[%s182 + $0x9c] sm:$0xf] %v261
                %v263 = vld [vmem:[%s181 + $0x140] sm:$0xf]
                %264 = vst [vmem:[%s182 + $0xa0] sm:$0xf] %v263
                %v265 = vld [vmem:[%s181 + $0x148] sm:$0xf]
                %266 = vst [vmem:[%s182 + $0xa4] sm:$0xf] %v265
                %v267 = vld [vmem:[%s181 + $0x150] sm:$0xf]
                %268 = vst [vmem:[%s182 + $0xa8] sm:$0xf] %v267
                %v269 = vld [vmem:[%s181 + $0x158] sm:$0xf]
                %270 = vst [vmem:[%s182 + $0xac] sm:$0xf] %v269
                %v271 = vld [vmem:[%s181 + $0x160] sm:$0xf]
                %272 = vst [vmem:[%s182 + $0xb0] sm:$0xf] %v271
                %v273 = vld [vmem:[%s181 + $0x168] sm:$0xf]
                %274 = vst [vmem:[%s182 + $0xb4] sm:$0xf] %v273
                %v275 = vld [vmem:[%s181 + $0x170] sm:$0xf]
                %276 = vst [vmem:[%s182 + $0xb8] sm:$0xf] %v275
                %v277 = vld [vmem:[%s181 + $0x178] sm:$0xf]
                %278 = vst [vmem:[%s182 + $0xbc] sm:$0xf] %v277
                %v279 = vld [vmem:[%s181 + $0x180] sm:$0xf]
                %280 = vst [vmem:[%s182 + $0xc0] sm:$0xf] %v279
                %v281 = vld [vmem:[%s181 + $0x188] sm:$0xf]
                %282 = vst [vmem:[%s182 + $0xc4] sm:$0xf] %v281
                %v283 = vld [vmem:[%s181 + $0x190] sm:$0xf]
                %284 = vst [vmem:[%s182 + $0xc8] sm:$0xf] %v283
                %v285 = vld [vmem:[%s181 + $0x198] sm:$0xf]
                %286 = vst [vmem:[%s182 + $0xcc] sm:$0xf] %v285
                %v287 = vld [vmem:[%s181 + $0x1a0] sm:$0xf]
                %288 = vst [vmem:[%s182 + $0xd0] sm:$0xf] %v287
                %v289 = vld [vmem:[%s181 + $0x1a8] sm:$0xf]
                %290 = vst [vmem:[%s182 + $0xd4] sm:$0xf] %v289
                %v291 = vld [vmem:[%s181 + $0x1b0] sm:$0xf]
                %292 = vst [vmem:[%s182 + $0xd8] sm:$0xf] %v291
                %v293 = vld [vmem:[%s181 + $0x1b8] sm:$0xf]
                %294 = vst [vmem:[%s182 + $0xdc] sm:$0xf] %v293
                %v295 = vld [vmem:[%s181 + $0x1c0] sm:$0xf]
                %296 = vst [vmem:[%s182 + $0xe0] sm:$0xf] %v295
                %v297 = vld [vmem:[%s181 + $0x1c8] sm:$0xf]
                %298 = vst [vmem:[%s182 + $0xe4] sm:$0xf] %v297
                %v299 = vld [vmem:[%s181 + $0x1d0] sm:$0xf]
                %300 = vst [vmem:[%s182 + $0xe8] sm:$0xf] %v299
                %v301 = vld [vmem:[%s181 + $0x1d8] sm:$0xf]
                %302 = vst [vmem:[%s182 + $0xec] sm:$0xf] %v301
                %v303 = vld [vmem:[%s181 + $0x1e0] sm:$0xf]
                %304 = vst [vmem:[%s182 + $0xf0] sm:$0xf] %v303
                %v305 = vld [vmem:[%s181 + $0x1e8] sm:$0xf]
                %306 = vst [vmem:[%s182 + $0xf4] sm:$0xf] %v305
                %v307 = vld [vmem:[%s181 + $0x1f0] sm:$0xf]
                %308 = vst [vmem:[%s182 + $0xf8] sm:$0xf] %v307
                %v309 = vld [vmem:[%s181 + $0x1f8] sm:$0xf]
                %310 = vst [vmem:[%s182 + $0xfc] sm:$0xf] %v309
                %v311 = vld [vmem:[%s181 + $0x200] sm:$0xf]
                %312 = vst [vmem:[%s182 + $0x100] sm:$0xf] %v311
                %v313 = vld [vmem:[%s181 + $0x208] sm:$0xf]
                %314 = vst [vmem:[%s182 + $0x104] sm:$0xf] %v313
                %v315 = vld [vmem:[%s181 + $0x210] sm:$0xf]
                %316 = vst [vmem:[%s182 + $0x108] sm:$0xf] %v315
                %v317 = vld [vmem:[%s181 + $0x218] sm:$0xf]
                %318 = vst [vmem:[%s182 + $0x10c] sm:$0xf] %v317
                %v319 = vld [vmem:[%s181 + $0x220] sm:$0xf]
                %320 = vst [vmem:[%s182 + $0x110] sm:$0xf] %v319
                %v321 = vld [vmem:[%s181 + $0x228] sm:$0xf]
                %322 = vst [vmem:[%s182 + $0x114] sm:$0xf] %v321
                %v323 = vld [vmem:[%s181 + $0x230] sm:$0xf]
                %324 = vst [vmem:[%s182 + $0x118] sm:$0xf] %v323
                %v325 = vld [vmem:[%s181 + $0x238] sm:$0xf]
                %326 = vst [vmem:[%s182 + $0x11c] sm:$0xf] %v325
                %v327 = vld [vmem:[%s181 + $0x240] sm:$0xf]
                %328 = vst [vmem:[%s182 + $0x120] sm:$0xf] %v327
                %v329 = vld [vmem:[%s181 + $0x248] sm:$0xf]
                %330 = vst [vmem:[%s182 + $0x124] sm:$0xf] %v329
                %v331 = vld [vmem:[%s181 + $0x250] sm:$0xf]
                %332 = vst [vmem:[%s182 + $0x128] sm:$0xf] %v331
                %v333 = vld [vmem:[%s181 + $0x258] sm:$0xf]
                %334 = vst [vmem:[%s182 + $0x12c] sm:$0xf] %v333
                %v335 = vld [vmem:[%s181 + $0x260] sm:$0xf]
                %336 = vst [vmem:[%s182 + $0x130] sm:$0xf] %v335
                %v337 = vld [vmem:[%s181 + $0x268] sm:$0xf]
                %338 = vst [vmem:[%s182 + $0x134] sm:$0xf] %v337
                %v339 = vld [vmem:[%s181 + $0x270] sm:$0xf]
                %340 = vst [vmem:[%s182 + $0x138] sm:$0xf] %v339
                %v341 = vld [vmem:[%s181 + $0x278] sm:$0xf]
                %342 = vst [vmem:[%s182 + $0x13c] sm:$0xf] %v341
                %v343 = vld [vmem:[%s181 + $0x280] sm:$0xf]
                %344 = vst [vmem:[%s182 + $0x140] sm:$0xf] %v343
                %v345 = vld [vmem:[%s181 + $0x288] sm:$0xf]
                %346 = vst [vmem:[%s182 + $0x144] sm:$0xf] %v345
                %v347 = vld [vmem:[%s181 + $0x290] sm:$0xf]
                %348 = vst [vmem:[%s182 + $0x148] sm:$0xf] %v347
                %v349 = vld [vmem:[%s181 + $0x298] sm:$0xf]
                %350 = vst [vmem:[%s182 + $0x14c] sm:$0xf] %v349
                %v351 = vld [vmem:[%s181 + $0x2a0] sm:$0xf]
                %352 = vst [vmem:[%s182 + $0x150] sm:$0xf] %v351
                %v353 = vld [vmem:[%s181 + $0x2a8] sm:$0xf]
                %354 = vst [vmem:[%s182 + $0x154] sm:$0xf] %v353
                %v355 = vld [vmem:[%s181 + $0x2b0] sm:$0xf]
                %356 = vst [vmem:[%s182 + $0x158] sm:$0xf] %v355
                %v357 = vld [vmem:[%s181 + $0x2b8] sm:$0xf]
                %358 = vst [vmem:[%s182 + $0x15c] sm:$0xf] %v357
                %v359 = vld [vmem:[%s181 + $0x2c0] sm:$0xf]
                %360 = vst [vmem:[%s182 + $0x160] sm:$0xf] %v359
                %v361 = vld [vmem:[%s181 + $0x2c8] sm:$0xf]
                %362 = vst [vmem:[%s182 + $0x164] sm:$0xf] %v361
                %v363 = vld [vmem:[%s181 + $0x2d0] sm:$0xf]
                %364 = vst [vmem:[%s182 + $0x168] sm:$0xf] %v363
                %v365 = vld [vmem:[%s181 + $0x2d8] sm:$0xf]
                %366 = vst [vmem:[%s182 + $0x16c] sm:$0xf] %v365
                %v367 = vld [vmem:[%s181 + $0x2e0] sm:$0xf]
                %368 = vst [vmem:[%s182 + $0x170] sm:$0xf] %v367
                %v369 = vld [vmem:[%s181 + $0x2e8] sm:$0xf]
                %370 = vst [vmem:[%s182 + $0x174] sm:$0xf] %v369
                %v371 = vld [vmem:[%s181 + $0x2f0] sm:$0xf]
                %372 = vst [vmem:[%s182 + $0x178] sm:$0xf] %v371
                %v373 = vld [vmem:[%s181 + $0x2f8] sm:$0xf]
                %374 = vst [vmem:[%s182 + $0x17c] sm:$0xf] %v373
                %v375 = vld [vmem:[%s181 + $0x300] sm:$0xf]
                %376 = vst [vmem:[%s182 + $0x180] sm:$0xf] %v375
                %v377 = vld [vmem:[%s181 + $0x308] sm:$0xf]
                %378 = vst [vmem:[%s182 + $0x184] sm:$0xf] %v377
                %v379 = vld [vmem:[%s181 + $0x310] sm:$0xf]
                %380 = vst [vmem:[%s182 + $0x188] sm:$0xf] %v379
                %v381 = vld [vmem:[%s181 + $0x318] sm:$0xf]
                %382 = vst [vmem:[%s182 + $0x18c] sm:$0xf] %v381
                %v383 = vld [vmem:[%s181 + $0x320] sm:$0xf]
                %384 = vst [vmem:[%s182 + $0x190] sm:$0xf] %v383
                %v385 = vld [vmem:[%s181 + $0x328] sm:$0xf]
                %386 = vst [vmem:[%s182 + $0x194] sm:$0xf] %v385
                %v387 = vld [vmem:[%s181 + $0x330] sm:$0xf]
                %388 = vst [vmem:[%s182 + $0x198] sm:$0xf] %v387
                %v389 = vld [vmem:[%s181 + $0x338] sm:$0xf]
                %390 = vst [vmem:[%s182 + $0x19c] sm:$0xf] %v389
                %v391 = vld [vmem:[%s181 + $0x340] sm:$0xf]
                %392 = vst [vmem:[%s182 + $0x1a0] sm:$0xf] %v391
                %v393 = vld [vmem:[%s181 + $0x348] sm:$0xf]
                %394 = vst [vmem:[%s182 + $0x1a4] sm:$0xf] %v393
                %v395 = vld [vmem:[%s181 + $0x350] sm:$0xf]
                %396 = vst [vmem:[%s182 + $0x1a8] sm:$0xf] %v395
                %v397 = vld [vmem:[%s181 + $0x358] sm:$0xf]
                %398 = vst [vmem:[%s182 + $0x1ac] sm:$0xf] %v397
                %v399 = vld [vmem:[%s181 + $0x360] sm:$0xf]
                %400 = vst [vmem:[%s182 + $0x1b0] sm:$0xf] %v399
                %v401 = vld [vmem:[%s181 + $0x368] sm:$0xf]
                %402 = vst [vmem:[%s182 + $0x1b4] sm:$0xf] %v401
                %v403 = vld [vmem:[%s181 + $0x370] sm:$0xf]
                %404 = vst [vmem:[%s182 + $0x1b8] sm:$0xf] %v403
                %v405 = vld [vmem:[%s181 + $0x378] sm:$0xf]
                %406 = vst [vmem:[%s182 + $0x1bc] sm:$0xf] %v405
                %v407 = vld [vmem:[%s181 + $0x380] sm:$0xf]
                %408 = vst [vmem:[%s182 + $0x1c0] sm:$0xf] %v407
                %v409 = vld [vmem:[%s181 + $0x388] sm:$0xf]
                %410 = vst [vmem:[%s182 + $0x1c4] sm:$0xf] %v409
                %v411 = vld [vmem:[%s181 + $0x390] sm:$0xf]
                %412 = vst [vmem:[%s182 + $0x1c8] sm:$0xf] %v411
                %v413 = vld [vmem:[%s181 + $0x398] sm:$0xf]
                %414 = vst [vmem:[%s182 + $0x1cc] sm:$0xf] %v413
                %v415 = vld [vmem:[%s181 + $0x3a0] sm:$0xf]
                %416 = vst [vmem:[%s182 + $0x1d0] sm:$0xf] %v415
                %v417 = vld [vmem:[%s181 + $0x3a8] sm:$0xf]
                %418 = vst [vmem:[%s182 + $0x1d4] sm:$0xf] %v417
                %v419 = vld [vmem:[%s181 + $0x3b0] sm:$0xf]
                %420 = vst [vmem:[%s182 + $0x1d8] sm:$0xf] %v419
                %v421 = vld [vmem:[%s181 + $0x3b8] sm:$0xf]
                %422 = vst [vmem:[%s182 + $0x1dc] sm:$0xf] %v421
                %v423 = vld [vmem:[%s181 + $0x3c0] sm:$0xf]
                %424 = vst [vmem:[%s182 + $0x1e0] sm:$0xf] %v423
                %v425 = vld [vmem:[%s181 + $0x3c8] sm:$0xf]
                %426 = vst [vmem:[%s182 + $0x1e4] sm:$0xf] %v425
                %v427 = vld [vmem:[%s181 + $0x3d0] sm:$0xf]
                %428 = vst [vmem:[%s182 + $0x1e8] sm:$0xf] %v427
                %v429 = vld [vmem:[%s181 + $0x3d8] sm:$0xf]
                %430 = vst [vmem:[%s182 + $0x1ec] sm:$0xf] %v429
                %v431 = vld [vmem:[%s181 + $0x3e0] sm:$0xf]
                %432 = vst [vmem:[%s182 + $0x1f0] sm:$0xf] %v431
                %v433 = vld [vmem:[%s181 + $0x3e8] sm:$0xf]
                %434 = vst [vmem:[%s182 + $0x1f4] sm:$0xf] %v433
                %v435 = vld [vmem:[%s181 + $0x3f0] sm:$0xf]
                %436 = vst [vmem:[%s182 + $0x1f8] sm:$0xf] %v435
                %v437 = vld [vmem:[%s181 + $0x3f8] sm:$0xf]
                %438 = vst [vmem:[%s182 + $0x1fc] sm:$0xf] %v437
                %v439 = vld [vmem:[%s181 + $0x400] sm:$0xf]
                %440 = vst [vmem:[%s182 + $0x200] sm:$0xf] %v439
                %v441 = vld [vmem:[%s181 + $0x408] sm:$0xf]
                %442 = vst [vmem:[%s182 + $0x204] sm:$0xf] %v441
                %v443 = vld [vmem:[%s181 + $0x410] sm:$0xf]
                %444 = vst [vmem:[%s182 + $0x208] sm:$0xf] %v443
                %v445 = vld [vmem:[%s181 + $0x418] sm:$0xf]
                %446 = vst [vmem:[%s182 + $0x20c] sm:$0xf] %v445
                %v447 = vld [vmem:[%s181 + $0x420] sm:$0xf]
                %448 = vst [vmem:[%s182 + $0x210] sm:$0xf] %v447
                %v449 = vld [vmem:[%s181 + $0x428] sm:$0xf]
                %450 = vst [vmem:[%s182 + $0x214] sm:$0xf] %v449
                %v451 = vld [vmem:[%s181 + $0x430] sm:$0xf]
                %452 = vst [vmem:[%s182 + $0x218] sm:$0xf] %v451
                %v453 = vld [vmem:[%s181 + $0x438] sm:$0xf]
                %454 = vst [vmem:[%s182 + $0x21c] sm:$0xf] %v453
                %v455 = vld [vmem:[%s181 + $0x440] sm:$0xf]
                %456 = vst [vmem:[%s182 + $0x220] sm:$0xf] %v455
                %v457 = vld [vmem:[%s181 + $0x448] sm:$0xf]
                %458 = vst [vmem:[%s182 + $0x224] sm:$0xf] %v457
                %v459 = vld [vmem:[%s181 + $0x450] sm:$0xf]
                %460 = vst [vmem:[%s182 + $0x228] sm:$0xf] %v459
                %v461 = vld [vmem:[%s181 + $0x458] sm:$0xf]
                %462 = vst [vmem:[%s182 + $0x22c] sm:$0xf] %v461
                %v463 = vld [vmem:[%s181 + $0x460] sm:$0xf]
                %464 = vst [vmem:[%s182 + $0x230] sm:$0xf] %v463
                %v465 = vld [vmem:[%s181 + $0x468] sm:$0xf]
                %466 = vst [vmem:[%s182 + $0x234] sm:$0xf] %v465
                %v467 = vld [vmem:[%s181 + $0x470] sm:$0xf]
                %468 = vst [vmem:[%s182 + $0x238] sm:$0xf] %v467
                %v469 = vld [vmem:[%s181 + $0x478] sm:$0xf]
                %470 = vst [vmem:[%s182 + $0x23c] sm:$0xf] %v469
                %v471 = vld [vmem:[%s181 + $0x480] sm:$0xf]
                %472 = vst [vmem:[%s182 + $0x240] sm:$0xf] %v471
                %v473 = vld [vmem:[%s181 + $0x488] sm:$0xf]
                %474 = vst [vmem:[%s182 + $0x244] sm:$0xf] %v473
                %v475 = vld [vmem:[%s181 + $0x490] sm:$0xf]
                %476 = vst [vmem:[%s182 + $0x248] sm:$0xf] %v475
                %v477 = vld [vmem:[%s181 + $0x498] sm:$0xf]
                %478 = vst [vmem:[%s182 + $0x24c] sm:$0xf] %v477
                %v479 = vld [vmem:[%s181 + $0x4a0] sm:$0xf]
                %480 = vst [vmem:[%s182 + $0x250] sm:$0xf] %v479
                %v481 = vld [vmem:[%s181 + $0x4a8] sm:$0xf]
                %482 = vst [vmem:[%s182 + $0x254] sm:$0xf] %v481
                %v483 = vld [vmem:[%s181 + $0x4b0] sm:$0xf]
                %484 = vst [vmem:[%s182 + $0x258] sm:$0xf] %v483
                %v485 = vld [vmem:[%s181 + $0x4b8] sm:$0xf]
                %486 = vst [vmem:[%s182 + $0x25c] sm:$0xf] %v485
                %v487 = vld [vmem:[%s181 + $0x4c0] sm:$0xf]
                %488 = vst [vmem:[%s182 + $0x260] sm:$0xf] %v487
                %v489 = vld [vmem:[%s181 + $0x4c8] sm:$0xf]
                %490 = vst [vmem:[%s182 + $0x264] sm:$0xf] %v489
                %v491 = vld [vmem:[%s181 + $0x4d0] sm:$0xf]
                %492 = vst [vmem:[%s182 + $0x268] sm:$0xf] %v491
                %v493 = vld [vmem:[%s181 + $0x4d8] sm:$0xf]
                %494 = vst [vmem:[%s182 + $0x26c] sm:$0xf] %v493
                %v495 = vld [vmem:[%s181 + $0x4e0] sm:$0xf]
                %496 = vst [vmem:[%s182 + $0x270] sm:$0xf] %v495
                %v497 = vld [vmem:[%s181 + $0x4e8] sm:$0xf]
                %498 = vst [vmem:[%s182 + $0x274] sm:$0xf] %v497
                %v499 = vld [vmem:[%s181 + $0x4f0] sm:$0xf]
                %500 = vst [vmem:[%s182 + $0x278] sm:$0xf] %v499
                %v501 = vld [vmem:[%s181 + $0x4f8] sm:$0xf]
                %502 = vst [vmem:[%s182 + $0x27c] sm:$0xf] %v501
                %v503 = vld [vmem:[%s181 + $0x500] sm:$0xf]
                %504 = vst [vmem:[%s182 + $0x280] sm:$0xf] %v503
                %v505 = vld [vmem:[%s181 + $0x508] sm:$0xf]
                %506 = vst [vmem:[%s182 + $0x284] sm:$0xf] %v505
                %v507 = vld [vmem:[%s181 + $0x510] sm:$0xf]
                %508 = vst [vmem:[%s182 + $0x288] sm:$0xf] %v507
                %v509 = vld [vmem:[%s181 + $0x518] sm:$0xf]
                %510 = vst [vmem:[%s182 + $0x28c] sm:$0xf] %v509
                %v511 = vld [vmem:[%s181 + $0x520] sm:$0xf]
                %512 = vst [vmem:[%s182 + $0x290] sm:$0xf] %v511
                %v513 = vld [vmem:[%s181 + $0x528] sm:$0xf]
                %514 = vst [vmem:[%s182 + $0x294] sm:$0xf] %v513
                %v515 = vld [vmem:[%s181 + $0x530] sm:$0xf]
                %516 = vst [vmem:[%s182 + $0x298] sm:$0xf] %v515
                %v517 = vld [vmem:[%s181 + $0x538] sm:$0xf]
                %518 = vst [vmem:[%s182 + $0x29c] sm:$0xf] %v517
                %v519 = vld [vmem:[%s181 + $0x540] sm:$0xf]
                %520 = vst [vmem:[%s182 + $0x2a0] sm:$0xf] %v519
                %v521 = vld [vmem:[%s181 + $0x548] sm:$0xf]
                %522 = vst [vmem:[%s182 + $0x2a4] sm:$0xf] %v521
                %v523 = vld [vmem:[%s181 + $0x550] sm:$0xf]
                %524 = vst [vmem:[%s182 + $0x2a8] sm:$0xf] %v523
                %v525 = vld [vmem:[%s181 + $0x558] sm:$0xf]
                %526 = vst [vmem:[%s182 + $0x2ac] sm:$0xf] %v525
                %v527 = vld [vmem:[%s181 + $0x560] sm:$0xf]
                %528 = vst [vmem:[%s182 + $0x2b0] sm:$0xf] %v527
                %v529 = vld [vmem:[%s181 + $0x568] sm:$0xf]
                %530 = vst [vmem:[%s182 + $0x2b4] sm:$0xf] %v529
                %v531 = vld [vmem:[%s181 + $0x570] sm:$0xf]
                %532 = vst [vmem:[%s182 + $0x2b8] sm:$0xf] %v531
                %v533 = vld [vmem:[%s181 + $0x578] sm:$0xf]
                %534 = vst [vmem:[%s182 + $0x2bc] sm:$0xf] %v533
                %v535 = vld [vmem:[%s181 + $0x580] sm:$0xf]
                %536 = vst [vmem:[%s182 + $0x2c0] sm:$0xf] %v535
                %v537 = vld [vmem:[%s181 + $0x588] sm:$0xf]
                %538 = vst [vmem:[%s182 + $0x2c4] sm:$0xf] %v537
                %v539 = vld [vmem:[%s181 + $0x590] sm:$0xf]
                %540 = vst [vmem:[%s182 + $0x2c8] sm:$0xf] %v539
                %v541 = vld [vmem:[%s181 + $0x598] sm:$0xf]
                %542 = vst [vmem:[%s182 + $0x2cc] sm:$0xf] %v541
                %v543 = vld [vmem:[%s181 + $0x5a0] sm:$0xf]
                %544 = vst [vmem:[%s182 + $0x2d0] sm:$0xf] %v543
                %v545 = vld [vmem:[%s181 + $0x5a8] sm:$0xf]
                %546 = vst [vmem:[%s182 + $0x2d4] sm:$0xf] %v545
                %v547 = vld [vmem:[%s181 + $0x5b0] sm:$0xf]
                %548 = vst [vmem:[%s182 + $0x2d8] sm:$0xf] %v547
                %v549 = vld [vmem:[%s181 + $0x5b8] sm:$0xf]
                %550 = vst [vmem:[%s182 + $0x2dc] sm:$0xf] %v549
                %v551 = vld [vmem:[%s181 + $0x5c0] sm:$0xf]
                %552 = vst [vmem:[%s182 + $0x2e0] sm:$0xf] %v551
                %v553 = vld [vmem:[%s181 + $0x5c8] sm:$0xf]
                %554 = vst [vmem:[%s182 + $0x2e4] sm:$0xf] %v553
                %v555 = vld [vmem:[%s181 + $0x5d0] sm:$0xf]
                %556 = vst [vmem:[%s182 + $0x2e8] sm:$0xf] %v555
                %v557 = vld [vmem:[%s181 + $0x5d8] sm:$0xf]
                %558 = vst [vmem:[%s182 + $0x2ec] sm:$0xf] %v557
                %v559 = vld [vmem:[%s181 + $0x5e0] sm:$0xf]
                %560 = vst [vmem:[%s182 + $0x2f0] sm:$0xf] %v559
                %v561 = vld [vmem:[%s181 + $0x5e8] sm:$0xf]
                %562 = vst [vmem:[%s182 + $0x2f4] sm:$0xf] %v561
                %v563 = vld [vmem:[%s181 + $0x5f0] sm:$0xf]
                %564 = vst [vmem:[%s182 + $0x2f8] sm:$0xf] %v563
                %v565 = vld [vmem:[%s181 + $0x5f8] sm:$0xf]
                %566 = vst [vmem:[%s182 + $0x2fc] sm:$0xf] %v565
                %v567 = vld [vmem:[%s181 + $0x600] sm:$0xf]
                %568 = vst [vmem:[%s182 + $0x300] sm:$0xf] %v567
                %v569 = vld [vmem:[%s181 + $0x608] sm:$0xf]
                %570 = vst [vmem:[%s182 + $0x304] sm:$0xf] %v569
                %v571 = vld [vmem:[%s181 + $0x610] sm:$0xf]
                %572 = vst [vmem:[%s182 + $0x308] sm:$0xf] %v571
                %v573 = vld [vmem:[%s181 + $0x618] sm:$0xf]
                %574 = vst [vmem:[%s182 + $0x30c] sm:$0xf] %v573
                %v575 = vld [vmem:[%s181 + $0x620] sm:$0xf]
                %576 = vst [vmem:[%s182 + $0x310] sm:$0xf] %v575
                %v577 = vld [vmem:[%s181 + $0x628] sm:$0xf]
                %578 = vst [vmem:[%s182 + $0x314] sm:$0xf] %v577
                %v579 = vld [vmem:[%s181 + $0x630] sm:$0xf]
                %580 = vst [vmem:[%s182 + $0x318] sm:$0xf] %v579
                %v581 = vld [vmem:[%s181 + $0x638] sm:$0xf]
                %582 = vst [vmem:[%s182 + $0x31c] sm:$0xf] %v581
                %v583 = vld [vmem:[%s181 + $0x640] sm:$0xf]
                %584 = vst [vmem:[%s182 + $0x320] sm:$0xf] %v583
                %v585 = vld [vmem:[%s181 + $0x648] sm:$0xf]
                %586 = vst [vmem:[%s182 + $0x324] sm:$0xf] %v585
                %v587 = vld [vmem:[%s181 + $0x650] sm:$0xf]
                %588 = vst [vmem:[%s182 + $0x328] sm:$0xf] %v587
                %v589 = vld [vmem:[%s181 + $0x658] sm:$0xf]
                %590 = vst [vmem:[%s182 + $0x32c] sm:$0xf] %v589
                %v591 = vld [vmem:[%s181 + $0x660] sm:$0xf]
                %592 = vst [vmem:[%s182 + $0x330] sm:$0xf] %v591
                %v593 = vld [vmem:[%s181 + $0x668] sm:$0xf]
                %594 = vst [vmem:[%s182 + $0x334] sm:$0xf] %v593
                %v595 = vld [vmem:[%s181 + $0x670] sm:$0xf]
                %596 = vst [vmem:[%s182 + $0x338] sm:$0xf] %v595
                %v597 = vld [vmem:[%s181 + $0x678] sm:$0xf]
                %598 = vst [vmem:[%s182 + $0x33c] sm:$0xf] %v597
                %v599 = vld [vmem:[%s181 + $0x680] sm:$0xf]
                %600 = vst [vmem:[%s182 + $0x340] sm:$0xf] %v599
                %v601 = vld [vmem:[%s181 + $0x688] sm:$0xf]
                %602 = vst [vmem:[%s182 + $0x344] sm:$0xf] %v601
                %v603 = vld [vmem:[%s181 + $0x690] sm:$0xf]
                %604 = vst [vmem:[%s182 + $0x348] sm:$0xf] %v603
                %v605 = vld [vmem:[%s181 + $0x698] sm:$0xf]
                %606 = vst [vmem:[%s182 + $0x34c] sm:$0xf] %v605
                %v607 = vld [vmem:[%s181 + $0x6a0] sm:$0xf]
                %608 = vst [vmem:[%s182 + $0x350] sm:$0xf] %v607
                %v609 = vld [vmem:[%s181 + $0x6a8] sm:$0xf]
                %610 = vst [vmem:[%s182 + $0x354] sm:$0xf] %v609
                %v611 = vld [vmem:[%s181 + $0x6b0] sm:$0xf]
                %612 = vst [vmem:[%s182 + $0x358] sm:$0xf] %v611
                %v613 = vld [vmem:[%s181 + $0x6b8] sm:$0xf]
                %614 = vst [vmem:[%s182 + $0x35c] sm:$0xf] %v613
                %v615 = vld [vmem:[%s181 + $0x6c0] sm:$0xf]
                %616 = vst [vmem:[%s182 + $0x360] sm:$0xf] %v615
                %v617 = vld [vmem:[%s181 + $0x6c8] sm:$0xf]
                %618 = vst [vmem:[%s182 + $0x364] sm:$0xf] %v617
                %v619 = vld [vmem:[%s181 + $0x6d0] sm:$0xf]
                %620 = vst [vmem:[%s182 + $0x368] sm:$0xf] %v619
                %v621 = vld [vmem:[%s181 + $0x6d8] sm:$0xf]
                %622 = vst [vmem:[%s182 + $0x36c] sm:$0xf] %v621
                %v623 = vld [vmem:[%s181 + $0x6e0] sm:$0xf]
                %624 = vst [vmem:[%s182 + $0x370] sm:$0xf] %v623
                %v625 = vld [vmem:[%s181 + $0x6e8] sm:$0xf]
                %626 = vst [vmem:[%s182 + $0x374] sm:$0xf] %v625
                %v627 = vld [vmem:[%s181 + $0x6f0] sm:$0xf]
                %628 = vst [vmem:[%s182 + $0x378] sm:$0xf] %v627
                %v629 = vld [vmem:[%s181 + $0x6f8] sm:$0xf]
                %630 = vst [vmem:[%s182 + $0x37c] sm:$0xf] %v629
                %v631 = vld [vmem:[%s181 + $0x700] sm:$0xf]
                %632 = vst [vmem:[%s182 + $0x380] sm:$0xf] %v631
                %v633 = vld [vmem:[%s181 + $0x708] sm:$0xf]
                %634 = vst [vmem:[%s182 + $0x384] sm:$0xf] %v633
                %v635 = vld [vmem:[%s181 + $0x710] sm:$0xf]
                %636 = vst [vmem:[%s182 + $0x388] sm:$0xf] %v635
                %v637 = vld [vmem:[%s181 + $0x718] sm:$0xf]
                %638 = vst [vmem:[%s182 + $0x38c] sm:$0xf] %v637
                %v639 = vld [vmem:[%s181 + $0x720] sm:$0xf]
                %640 = vst [vmem:[%s182 + $0x390] sm:$0xf] %v639
                %v641 = vld [vmem:[%s181 + $0x728] sm:$0xf]
                %642 = vst [vmem:[%s182 + $0x394] sm:$0xf] %v641
                %v643 = vld [vmem:[%s181 + $0x730] sm:$0xf]
                %644 = vst [vmem:[%s182 + $0x398] sm:$0xf] %v643
                %v645 = vld [vmem:[%s181 + $0x738] sm:$0xf]
                %646 = vst [vmem:[%s182 + $0x39c] sm:$0xf] %v645
                %v647 = vld [vmem:[%s181 + $0x740] sm:$0xf]
                %648 = vst [vmem:[%s182 + $0x3a0] sm:$0xf] %v647
                %v649 = vld [vmem:[%s181 + $0x748] sm:$0xf]
                %650 = vst [vmem:[%s182 + $0x3a4] sm:$0xf] %v649
                %v651 = vld [vmem:[%s181 + $0x750] sm:$0xf]
                %652 = vst [vmem:[%s182 + $0x3a8] sm:$0xf] %v651
                %v653 = vld [vmem:[%s181 + $0x758] sm:$0xf]
                %654 = vst [vmem:[%s182 + $0x3ac] sm:$0xf] %v653
                %v655 = vld [vmem:[%s181 + $0x760] sm:$0xf]
                %656 = vst [vmem:[%s182 + $0x3b0] sm:$0xf] %v655
                %v657 = vld [vmem:[%s181 + $0x768] sm:$0xf]
                %658 = vst [vmem:[%s182 + $0x3b4] sm:$0xf] %v657
                %v659 = vld [vmem:[%s181 + $0x770] sm:$0xf]
                %660 = vst [vmem:[%s182 + $0x3b8] sm:$0xf] %v659
                %v661 = vld [vmem:[%s181 + $0x778] sm:$0xf]
                %662 = vst [vmem:[%s182 + $0x3bc] sm:$0xf] %v661
                %v663 = vld [vmem:[%s181 + $0x780] sm:$0xf]
                %664 = vst [vmem:[%s182 + $0x3c0] sm:$0xf] %v663
                %v665 = vld [vmem:[%s181 + $0x788] sm:$0xf]
                %666 = vst [vmem:[%s182 + $0x3c4] sm:$0xf] %v665
                %v667 = vld [vmem:[%s181 + $0x790] sm:$0xf]
                %668 = vst [vmem:[%s182 + $0x3c8] sm:$0xf] %v667
                %v669 = vld [vmem:[%s181 + $0x798] sm:$0xf]
                %670 = vst [vmem:[%s182 + $0x3cc] sm:$0xf] %v669
                %v671 = vld [vmem:[%s181 + $0x7a0] sm:$0xf]
                %672 = vst [vmem:[%s182 + $0x3d0] sm:$0xf] %v671
                %v673 = vld [vmem:[%s181 + $0x7a8] sm:$0xf]
                %674 = vst [vmem:[%s182 + $0x3d4] sm:$0xf] %v673
                %v675 = vld [vmem:[%s181 + $0x7b0] sm:$0xf]
                %676 = vst [vmem:[%s182 + $0x3d8] sm:$0xf] %v675
                %v677 = vld [vmem:[%s181 + $0x7b8] sm:$0xf]
                %678 = vst [vmem:[%s182 + $0x3dc] sm:$0xf] %v677
                %v679 = vld [vmem:[%s181 + $0x7c0] sm:$0xf]
                %680 = vst [vmem:[%s182 + $0x3e0] sm:$0xf] %v679
                %v681 = vld [vmem:[%s181 + $0x7c8] sm:$0xf]
                %682 = vst [vmem:[%s182 + $0x3e4] sm:$0xf] %v681
                %v683 = vld [vmem:[%s181 + $0x7d0] sm:$0xf]
                %684 = vst [vmem:[%s182 + $0x3e8] sm:$0xf] %v683
                %v685 = vld [vmem:[%s181 + $0x7d8] sm:$0xf]
                %686 = vst [vmem:[%s182 + $0x3ec] sm:$0xf] %v685
                %v687 = vld [vmem:[%s181 + $0x7e0] sm:$0xf]
                %688 = vst [vmem:[%s182 + $0x3f0] sm:$0xf] %v687
                %v689 = vld [vmem:[%s181 + $0x7e8] sm:$0xf]
                %690 = vst [vmem:[%s182 + $0x3f4] sm:$0xf] %v689
                %v691 = vld [vmem:[%s181 + $0x7f0] sm:$0xf]
                %692 = vst [vmem:[%s182 + $0x3f8] sm:$0xf] %v691
                %v693 = vld [vmem:[%s181 + $0x7f8] sm:$0xf]
                %694 = vst [vmem:[%s182 + $0x3fc] sm:$0xf] %v693
                %v695 = vld [vmem:[%s181 + $0x800] sm:$0xf]
                %696 = vst [vmem:[%s182 + $0x400] sm:$0xf] %v695
                %v697 = vld [vmem:[%s181 + $0x808] sm:$0xf]
                %698 = vst [vmem:[%s182 + $0x404] sm:$0xf] %v697
                %v699 = vld [vmem:[%s181 + $0x810] sm:$0xf]
                %700 = vst [vmem:[%s182 + $0x408] sm:$0xf] %v699
                %v701 = vld [vmem:[%s181 + $0x818] sm:$0xf]
                %702 = vst [vmem:[%s182 + $0x40c] sm:$0xf] %v701
                %v703 = vld [vmem:[%s181 + $0x820] sm:$0xf]
                %704 = vst [vmem:[%s182 + $0x410] sm:$0xf] %v703
                %v705 = vld [vmem:[%s181 + $0x828] sm:$0xf]
                %706 = vst [vmem:[%s182 + $0x414] sm:$0xf] %v705
                %v707 = vld [vmem:[%s181 + $0x830] sm:$0xf]
                %708 = vst [vmem:[%s182 + $0x418] sm:$0xf] %v707
                %v709 = vld [vmem:[%s181 + $0x838] sm:$0xf]
                %710 = vst [vmem:[%s182 + $0x41c] sm:$0xf] %v709
                %v711 = vld [vmem:[%s181 + $0x840] sm:$0xf]
                %712 = vst [vmem:[%s182 + $0x420] sm:$0xf] %v711
                %v713 = vld [vmem:[%s181 + $0x848] sm:$0xf]
                %714 = vst [vmem:[%s182 + $0x424] sm:$0xf] %v713
                %v715 = vld [vmem:[%s181 + $0x850] sm:$0xf]
                %716 = vst [vmem:[%s182 + $0x428] sm:$0xf] %v715
                %v717 = vld [vmem:[%s181 + $0x858] sm:$0xf]
                %718 = vst [vmem:[%s182 + $0x42c] sm:$0xf] %v717
                %v719 = vld [vmem:[%s181 + $0x860] sm:$0xf]
                %720 = vst [vmem:[%s182 + $0x430] sm:$0xf] %v719
                %v721 = vld [vmem:[%s181 + $0x868] sm:$0xf]
                %722 = vst [vmem:[%s182 + $0x434] sm:$0xf] %v721
                %v723 = vld [vmem:[%s181 + $0x870] sm:$0xf]
                %724 = vst [vmem:[%s182 + $0x438] sm:$0xf] %v723
                %v725 = vld [vmem:[%s181 + $0x878] sm:$0xf]
                %726 = vst [vmem:[%s182 + $0x43c] sm:$0xf] %v725
                %v727 = vld [vmem:[%s181 + $0x880] sm:$0xf]
                %728 = vst [vmem:[%s182 + $0x440] sm:$0xf] %v727
                %v729 = vld [vmem:[%s181 + $0x888] sm:$0xf]
                %730 = vst [vmem:[%s182 + $0x444] sm:$0xf] %v729
                %v731 = vld [vmem:[%s181 + $0x890] sm:$0xf]
                %732 = vst [vmem:[%s182 + $0x448] sm:$0xf] %v731
                %v733 = vld [vmem:[%s181 + $0x898] sm:$0xf]
                %734 = vst [vmem:[%s182 + $0x44c] sm:$0xf] %v733
                %v735 = vld [vmem:[%s181 + $0x8a0] sm:$0xf]
                %736 = vst [vmem:[%s182 + $0x450] sm:$0xf] %v735
                %v737 = vld [vmem:[%s181 + $0x8a8] sm:$0xf]
                %738 = vst [vmem:[%s182 + $0x454] sm:$0xf] %v737
                %v739 = vld [vmem:[%s181 + $0x8b0] sm:$0xf]
                %740 = vst [vmem:[%s182 + $0x458] sm:$0xf] %v739
                %v741 = vld [vmem:[%s181 + $0x8b8] sm:$0xf]
                %742 = vst [vmem:[%s182 + $0x45c] sm:$0xf] %v741
                %v743 = vld [vmem:[%s181 + $0x8c0] sm:$0xf]
                %744 = vst [vmem:[%s182 + $0x460] sm:$0xf] %v743
                %v745 = vld [vmem:[%s181 + $0x8c8] sm:$0xf]
                %746 = vst [vmem:[%s182 + $0x464] sm:$0xf] %v745
                %v747 = vld [vmem:[%s181 + $0x8d0] sm:$0xf]
                %748 = vst [vmem:[%s182 + $0x468] sm:$0xf] %v747
                %v749 = vld [vmem:[%s181 + $0x8d8] sm:$0xf]
                %750 = vst [vmem:[%s182 + $0x46c] sm:$0xf] %v749
                %v751 = vld [vmem:[%s181 + $0x8e0] sm:$0xf]
                %752 = vst [vmem:[%s182 + $0x470] sm:$0xf] %v751
                %v753 = vld [vmem:[%s181 + $0x8e8] sm:$0xf]
                %754 = vst [vmem:[%s182 + $0x474] sm:$0xf] %v753
                %v755 = vld [vmem:[%s181 + $0x8f0] sm:$0xf]
                %756 = vst [vmem:[%s182 + $0x478] sm:$0xf] %v755
                %v757 = vld [vmem:[%s181 + $0x8f8] sm:$0xf]
                %758 = vst [vmem:[%s182 + $0x47c] sm:$0xf] %v757
              $region41: #{_lambda_.1} parent=35 // loop_footer
                %s180 = sadd.s32 1, %s176
              $region42: #{_lambda_.1} parent=35 // loop_footer_branch
                %175 = sbr.rel target = $region38
              $region43: #{_lambda_.1} parent=35 // loop_exit
                _
            $region36: #{_lambda_.1} parent=27 // pred_fallthru
              _
          $region28: #{_lambda_.1} parent=23 // pred_fallthru
            _
          %1354 = vnop
        $region24: #{_lambda_.1} parent=19 // pred_fallthru
          _
        // Predicated region
        $region62: #{_lambda_.1} parent=19 // pred_check
          %p1355 = pneg %p96
        $region63: #{_lambda_.1} parent=19 // pred_check_branch
          %1357 = sbr.rel (%p1355) target = $region65
        $region64: #{_lambda_.1} parent=19 // pred_region
          %p1358 = scmp.lt.s32.totalorder %s20, 1
          %s1359 = scalar_select %p1358, %s20, 1
          %s1360 = scalar_lea.vmem %s2, %s1359
        $region65: #{_lambda_.1} parent=19 // pred_fallthru
          _
      $region20: #{_lambda_.1} parent=5 // pred_fallthru
        _
      %p1361 = scmp.le.s32.totalorder 1, %s12
      %p1362 = scmp.lt.s32.totalorder %s12, 3
      %p1363 = pnand %p1361, %p1362
      %p1364 = pneg %p1363
      // Predicated region
      $region66: #{_lambda_.1} parent=5 // pred_check
        _
      $region67: #{_lambda_.1} parent=5 // pred_check_branch
        %1366 = sbr.rel (%p1363) target = $region69
      $region68: #{_lambda_.1} parent=5 // pred_region
        %s1367 = ssub.s32 %s12, 1
        %s1368 = sand.u32 %s63, 1
        %s1369 = sand.u32 %s63, 1
        %s1370 = smul.addr %s1369, 1152
        %s1371 = scalar_lea.vmem [#allocation2], %s1370
        // Predicated region
        $region70: #{_lambda_.1} parent=68 // pred_check
          %p1372 = pneg %p76
        $region71: #{_lambda_.1} parent=68 // pred_check_branch
          %1374 = sbr.rel (%p1372) target = $region73
        $region72: #{_lambda_.1} parent=68 // pred_region
          _
        $region73: #{_lambda_.1} parent=68 // pred_fallthru
          _
        %s1375 = smul.u32 2, %s21
        %p1376 = scmp.lt.s32.totalorder %s1375, 1
        %s1377 = scalar_select %p1376, %s1375, 1
        %s1378 = smul.addr %s1377, 18
        %s1379 = smul.addr %s1378, 4
        %s1380 = scalar_lea.vmem %s0, %s1379
        %p1381 = pneg %p50
        %p1382 = pneg %p47
        %s1383 = sand.u32 %s63, 1
        %s1384 = sand.u32 %s63, 1
        %s1385 = smul.addr %s1384, 1152
        %s1386 = scalar_lea.vmem [#allocation2], %s1385
        %p1387 = pneg %p76
        %p1388 = pneg %p73
        %p1389 = scmp.lt.s32.totalorder %s22, 1
        %s1390 = scalar_select %p1389, %s22, 1
        %s1391 = scalar_lea.vmem %s2, %s1390
        %p1392 = pneg %p102
        %p1393 = pneg %p99
        %p1394 = pneg %p130
        %p1395 = pneg %p127
        %s1396 = sand.u32 %s117, 1
        %s1397 = scalar_lea.sflag [#allocation4], %s1396
        %s1398 = sand.u32 %s117, 1
        %s1399 = smul.addr %s1398, 2
        %s1400 = scalar_lea.vmem [#allocation3], %s1399
        %s1401 = smul.u32 2, %s21
        %p1402 = scmp.lt.s32.totalorder %s1401, 1
        %s1403 = scalar_select %p1402, %s1401, 1
        %s1404 = smul.addr %s1403, 18
        %s1405 = smul.addr %s1404, 4
        %s1406 = scalar_lea.vmem %s0, %s1405
        %s1407 = smul.u32 2, %s21
        %p1408 = scmp.lt.s32.totalorder %s22, 1
        %s1409 = scalar_select %p1408, %s22, 1
        %s1410 = scalar_lea.vmem %s2, %s1409
        %v1412 = vld [vmem:[%s1406] sm:$0xff]
        %v1413 = vld [vmem:[%s1406 + $0x8] sm:$0xff]
        %v1414 = vld [vmem:[%s1406 + $0x10] sm:$0xff]
        %v1415 = vld [vmem:[%s1406 + $0x18] sm:$0xff]
        %v1416 = vld [vmem:[%s1406 + $0x20] sm:$0xff]
        %v1417 = vld [vmem:[%s1406 + $0x28] sm:$0xff]
        %v1418 = vld [vmem:[%s1406 + $0x30] sm:$0xff]
        %v1419 = vld [vmem:[%s1406 + $0x38] sm:$0xff]
        %v1420 = vld [vmem:[%s1406 + $0x40] sm:$0xff]
        %v1421 = vld [vmem:[%s1406 + $0x48] sm:$0xff]
        %v1422 = vld [vmem:[%s1406 + $0x50] sm:$0xff]
        %v1423 = vld [vmem:[%s1406 + $0x58] sm:$0xff]
        %v1424 = vld [vmem:[%s1406 + $0x60] sm:$0xff]
        %v1425 = vld [vmem:[%s1406 + $0x68] sm:$0xff]
        %v1426 = vld [vmem:[%s1406 + $0x70] sm:$0xff]
        %v1427 = vld [vmem:[%s1406 + $0x78] sm:$0xff]
        %v1428 = vld [vmem:[%s1406 + $0x80] sm:$0xff]
        %v1429 = vld [vmem:[%s1406 + $0x88] sm:$0xff]
        %v1430 = vld [vmem:[%s1371] sm:$0xf]
        %v1431 = vld [vmem:[%s1371 + $0x4] sm:$0xf]
        %v1432 = vld [vmem:[%s1371 + $0x8] sm:$0xf]
        %v1433 = vld [vmem:[%s1371 + $0xc] sm:$0xf]
        %v1434 = vld [vmem:[%s1371 + $0x10] sm:$0xf]
        %v1435 = vld [vmem:[%s1371 + $0x14] sm:$0xf]
        %v1436 = vld [vmem:[%s1371 + $0x18] sm:$0xf]
        %v1437 = vld [vmem:[%s1371 + $0x1c] sm:$0xf]
        %v1438 = vld [vmem:[%s1371 + $0x20] sm:$0xf]
        %v1439 = vld [vmem:[%s1371 + $0x24] sm:$0xf]
        %v1440 = vld [vmem:[%s1371 + $0x28] sm:$0xf]
        %v1441 = vld [vmem:[%s1371 + $0x2c] sm:$0xf]
        %v1442 = vld [vmem:[%s1371 + $0x30] sm:$0xf]
        %v1443 = vld [vmem:[%s1371 + $0x34] sm:$0xf]
        %v1444 = vld [vmem:[%s1371 + $0x38] sm:$0xf]
        %v1445 = vld [vmem:[%s1371 + $0x3c] sm:$0xf]
        %v1446 = vld [vmem:[%s1371 + $0x40] sm:$0xf]
        %v1447 = vld [vmem:[%s1371 + $0x44] sm:$0xf]
        %v1448 = vld [vmem:[%s1371 + $0x48] sm:$0xf]
        %v1449 = vld [vmem:[%s1371 + $0x4c] sm:$0xf]
        %v1450 = vld [vmem:[%s1371 + $0x50] sm:$0xf]
        %v1451 = vld [vmem:[%s1371 + $0x54] sm:$0xf]
        %v1452 = vld [vmem:[%s1371 + $0x58] sm:$0xf]
        %v1453 = vld [vmem:[%s1371 + $0x5c] sm:$0xf]
        %v1454 = vld [vmem:[%s1371 + $0x60] sm:$0xf]
        %v1455 = vld [vmem:[%s1371 + $0x64] sm:$0xf]
        %v1456 = vld [vmem:[%s1371 + $0x68] sm:$0xf]
        %v1457 = vld [vmem:[%s1371 + $0x6c] sm:$0xf]
        %v1458 = vld [vmem:[%s1371 + $0x70] sm:$0xf]
        %v1459 = vld [vmem:[%s1371 + $0x74] sm:$0xf]
        %v1460 = vld [vmem:[%s1371 + $0x78] sm:$0xf]
        %v1461 = vld [vmem:[%s1371 + $0x7c] sm:$0xf]
        %v1462 = vld [vmem:[%s1371 + $0x80] sm:$0xf]
        %v1463 = vld [vmem:[%s1371 + $0x84] sm:$0xf]
        %v1464 = vld [vmem:[%s1371 + $0x88] sm:$0xf]
        %v1465 = vld [vmem:[%s1371 + $0x8c] sm:$0xf]
        %v1466 = vld [vmem:[%s1371 + $0x90] sm:$0xf]
        %v1467 = vld [vmem:[%s1371 + $0x94] sm:$0xf]
        %v1468 = vld [vmem:[%s1371 + $0x98] sm:$0xf]
        %v1469 = vld [vmem:[%s1371 + $0x9c] sm:$0xf]
        %v1470 = vld [vmem:[%s1371 + $0xa0] sm:$0xf]
        %v1471 = vld [vmem:[%s1371 + $0xa4] sm:$0xf]
        %v1472 = vld [vmem:[%s1371 + $0xa8] sm:$0xf]
        %v1473 = vld [vmem:[%s1371 + $0xac] sm:$0xf]
        %v1474 = vld [vmem:[%s1371 + $0xb0] sm:$0xf]
        %v1475 = vld [vmem:[%s1371 + $0xb4] sm:$0xf]
        %v1476 = vld [vmem:[%s1371 + $0xb8] sm:$0xf]
        %v1477 = vld [vmem:[%s1371 + $0xbc] sm:$0xf]
        %v1478 = vld [vmem:[%s1371 + $0xc0] sm:$0xf]
        %v1479 = vld [vmem:[%s1371 + $0xc4] sm:$0xf]
        %v1480 = vld [vmem:[%s1371 + $0xc8] sm:$0xf]
        %v1481 = vld [vmem:[%s1371 + $0xcc] sm:$0xf]
        %v1482 = vld [vmem:[%s1371 + $0xd0] sm:$0xf]
        %v1483 = vld [vmem:[%s1371 + $0xd4] sm:$0xf]
        %v1484 = vld [vmem:[%s1371 + $0xd8] sm:$0xf]
        %v1485 = vld [vmem:[%s1371 + $0xdc] sm:$0xf]
        %v1486 = vld [vmem:[%s1371 + $0xe0] sm:$0xf]
        %v1487 = vld [vmem:[%s1371 + $0xe4] sm:$0xf]
        %v1488 = vld [vmem:[%s1371 + $0xe8] sm:$0xf]
        %v1489 = vld [vmem:[%s1371 + $0xec] sm:$0xf]
        %v1490 = vld [vmem:[%s1371 + $0xf0] sm:$0xf]
        %v1491 = vld [vmem:[%s1371 + $0xf4] sm:$0xf]
        %v1492 = vld [vmem:[%s1371 + $0xf8] sm:$0xf]
        %v1493 = vld [vmem:[%s1371 + $0xfc] sm:$0xf]
        %v1494 = vld [vmem:[%s1371 + $0x100] sm:$0xf]
        %v1495 = vld [vmem:[%s1371 + $0x104] sm:$0xf]
        %v1496 = vld [vmem:[%s1371 + $0x108] sm:$0xf]
        %v1497 = vld [vmem:[%s1371 + $0x10c] sm:$0xf]
        %v1498 = vld [vmem:[%s1371 + $0x110] sm:$0xf]
        %v1499 = vld [vmem:[%s1371 + $0x114] sm:$0xf]
        %v1500 = vld [vmem:[%s1371 + $0x118] sm:$0xf]
        %v1501 = vld [vmem:[%s1371 + $0x11c] sm:$0xf]
        %v1502 = vld [vmem:[%s1371 + $0x120] sm:$0xf]
        %v1503 = vld [vmem:[%s1371 + $0x124] sm:$0xf]
        %v1504 = vld [vmem:[%s1371 + $0x128] sm:$0xf]
        %v1505 = vld [vmem:[%s1371 + $0x12c] sm:$0xf]
        %v1506 = vld [vmem:[%s1371 + $0x130] sm:$0xf]
        %v1507 = vld [vmem:[%s1371 + $0x134] sm:$0xf]
        %v1508 = vld [vmem:[%s1371 + $0x138] sm:$0xf]
        %v1509 = vld [vmem:[%s1371 + $0x13c] sm:$0xf]
        %v1510 = vld [vmem:[%s1371 + $0x140] sm:$0xf]
        %v1511 = vld [vmem:[%s1371 + $0x144] sm:$0xf]
        %v1512 = vld [vmem:[%s1371 + $0x148] sm:$0xf]
        %v1513 = vld [vmem:[%s1371 + $0x14c] sm:$0xf]
        %v1514 = vld [vmem:[%s1371 + $0x150] sm:$0xf]
        %v1515 = vld [vmem:[%s1371 + $0x154] sm:$0xf]
        %v1516 = vld [vmem:[%s1371 + $0x158] sm:$0xf]
        %v1517 = vld [vmem:[%s1371 + $0x15c] sm:$0xf]
        %v1518 = vld [vmem:[%s1371 + $0x160] sm:$0xf]
        %v1519 = vld [vmem:[%s1371 + $0x164] sm:$0xf]
        %v1520 = vld [vmem:[%s1371 + $0x168] sm:$0xf]
        %v1521 = vld [vmem:[%s1371 + $0x16c] sm:$0xf]
        %v1522 = vld [vmem:[%s1371 + $0x170] sm:$0xf]
        %v1523 = vld [vmem:[%s1371 + $0x174] sm:$0xf]
        %v1524 = vld [vmem:[%s1371 + $0x178] sm:$0xf]
        %v1525 = vld [vmem:[%s1371 + $0x17c] sm:$0xf]
        %v1526 = vld [vmem:[%s1371 + $0x180] sm:$0xf]
        %v1527 = vld [vmem:[%s1371 + $0x184] sm:$0xf]
        %v1528 = vld [vmem:[%s1371 + $0x188] sm:$0xf]
        %v1529 = vld [vmem:[%s1371 + $0x18c] sm:$0xf]
        %v1530 = vld [vmem:[%s1371 + $0x190] sm:$0xf]
        %v1531 = vld [vmem:[%s1371 + $0x194] sm:$0xf]
        %v1532 = vld [vmem:[%s1371 + $0x198] sm:$0xf]
        %v1533 = vld [vmem:[%s1371 + $0x19c] sm:$0xf]
        %v1534 = vld [vmem:[%s1371 + $0x1a0] sm:$0xf]
        %v1535 = vld [vmem:[%s1371 + $0x1a4] sm:$0xf]
        %v1536 = vld [vmem:[%s1371 + $0x1a8] sm:$0xf]
        %v1537 = vld [vmem:[%s1371 + $0x1ac] sm:$0xf]
        %v1538 = vld [vmem:[%s1371 + $0x1b0] sm:$0xf]
        %v1539 = vld [vmem:[%s1371 + $0x1b4] sm:$0xf]
        %v1540 = vld [vmem:[%s1371 + $0x1b8] sm:$0xf]
        %v1541 = vld [vmem:[%s1371 + $0x1bc] sm:$0xf]
        %v1542 = vld [vmem:[%s1371 + $0x1c0] sm:$0xf]
        %v1543 = vld [vmem:[%s1371 + $0x1c4] sm:$0xf]
        %v1544 = vld [vmem:[%s1371 + $0x1c8] sm:$0xf]
        %v1545 = vld [vmem:[%s1371 + $0x1cc] sm:$0xf]
        %v1546 = vld [vmem:[%s1371 + $0x1d0] sm:$0xf]
        %v1547 = vld [vmem:[%s1371 + $0x1d4] sm:$0xf]
        %v1548 = vld [vmem:[%s1371 + $0x1d8] sm:$0xf]
        %v1549 = vld [vmem:[%s1371 + $0x1dc] sm:$0xf]
        %v1550 = vld [vmem:[%s1371 + $0x1e0] sm:$0xf]
        %v1551 = vld [vmem:[%s1371 + $0x1e4] sm:$0xf]
        %v1552 = vld [vmem:[%s1371 + $0x1e8] sm:$0xf]
        %v1553 = vld [vmem:[%s1371 + $0x1ec] sm:$0xf]
        %v1554 = vld [vmem:[%s1371 + $0x1f0] sm:$0xf]
        %v1555 = vld [vmem:[%s1371 + $0x1f4] sm:$0xf]
        %v1556 = vld [vmem:[%s1371 + $0x1f8] sm:$0xf]
        %v1557 = vld [vmem:[%s1371 + $0x1fc] sm:$0xf]
        %v1558 = vld [vmem:[%s1371 + $0x200] sm:$0xf]
        %v1559 = vld [vmem:[%s1371 + $0x204] sm:$0xf]
        %v1560 = vld [vmem:[%s1371 + $0x208] sm:$0xf]
        %v1561 = vld [vmem:[%s1371 + $0x20c] sm:$0xf]
        %v1562 = vld [vmem:[%s1371 + $0x210] sm:$0xf]
        %v1563 = vld [vmem:[%s1371 + $0x214] sm:$0xf]
        %v1564 = vld [vmem:[%s1371 + $0x218] sm:$0xf]
        %v1565 = vld [vmem:[%s1371 + $0x21c] sm:$0xf]
        %v1566 = vld [vmem:[%s1371 + $0x220] sm:$0xf]
        %v1567 = vld [vmem:[%s1371 + $0x224] sm:$0xf]
        %v1568 = vld [vmem:[%s1371 + $0x228] sm:$0xf]
        %v1569 = vld [vmem:[%s1371 + $0x22c] sm:$0xf]
        %v1570 = vld [vmem:[%s1371 + $0x230] sm:$0xf]
        %v1571 = vld [vmem:[%s1371 + $0x234] sm:$0xf]
        %v1572 = vld [vmem:[%s1371 + $0x238] sm:$0xf]
        %v1573 = vld [vmem:[%s1371 + $0x23c] sm:$0xf]
        %v1574 = vld [vmem:[%s1371 + $0x240] sm:$0xf]
        %v1575 = vld [vmem:[%s1371 + $0x244] sm:$0xf]
        %v1576 = vld [vmem:[%s1371 + $0x248] sm:$0xf]
        %v1577 = vld [vmem:[%s1371 + $0x24c] sm:$0xf]
        %v1578 = vld [vmem:[%s1371 + $0x250] sm:$0xf]
        %v1579 = vld [vmem:[%s1371 + $0x254] sm:$0xf]
        %v1580 = vld [vmem:[%s1371 + $0x258] sm:$0xf]
        %v1581 = vld [vmem:[%s1371 + $0x25c] sm:$0xf]
        %v1582 = vld [vmem:[%s1371 + $0x260] sm:$0xf]
        %v1583 = vld [vmem:[%s1371 + $0x264] sm:$0xf]
        %v1584 = vld [vmem:[%s1371 + $0x268] sm:$0xf]
        %v1585 = vld [vmem:[%s1371 + $0x26c] sm:$0xf]
        %v1586 = vld [vmem:[%s1371 + $0x270] sm:$0xf]
        %v1587 = vld [vmem:[%s1371 + $0x274] sm:$0xf]
        %v1588 = vld [vmem:[%s1371 + $0x278] sm:$0xf]
        %v1589 = vld [vmem:[%s1371 + $0x27c] sm:$0xf]
        %v1590 = vld [vmem:[%s1371 + $0x280] sm:$0xf]
        %v1591 = vld [vmem:[%s1371 + $0x284] sm:$0xf]
        %v1592 = vld [vmem:[%s1371 + $0x288] sm:$0xf]
        %v1593 = vld [vmem:[%s1371 + $0x28c] sm:$0xf]
        %v1594 = vld [vmem:[%s1371 + $0x290] sm:$0xf]
        %v1595 = vld [vmem:[%s1371 + $0x294] sm:$0xf]
        %v1596 = vld [vmem:[%s1371 + $0x298] sm:$0xf]
        %v1597 = vld [vmem:[%s1371 + $0x29c] sm:$0xf]
        %v1598 = vld [vmem:[%s1371 + $0x2a0] sm:$0xf]
        %v1599 = vld [vmem:[%s1371 + $0x2a4] sm:$0xf]
        %v1600 = vld [vmem:[%s1371 + $0x2a8] sm:$0xf]
        %v1601 = vld [vmem:[%s1371 + $0x2ac] sm:$0xf]
        %v1602 = vld [vmem:[%s1371 + $0x2b0] sm:$0xf]
        %v1603 = vld [vmem:[%s1371 + $0x2b4] sm:$0xf]
        %v1604 = vld [vmem:[%s1371 + $0x2b8] sm:$0xf]
        %v1605 = vld [vmem:[%s1371 + $0x2bc] sm:$0xf]
        %v1606 = vld [vmem:[%s1371 + $0x2c0] sm:$0xf]
        %v1607 = vld [vmem:[%s1371 + $0x2c4] sm:$0xf]
        %v1608 = vld [vmem:[%s1371 + $0x2c8] sm:$0xf]
        %v1609 = vld [vmem:[%s1371 + $0x2cc] sm:$0xf]
        %v1610 = vld [vmem:[%s1371 + $0x2d0] sm:$0xf]
        %v1611 = vld [vmem:[%s1371 + $0x2d4] sm:$0xf]
        %v1612 = vld [vmem:[%s1371 + $0x2d8] sm:$0xf]
        %v1613 = vld [vmem:[%s1371 + $0x2dc] sm:$0xf]
        %v1614 = vld [vmem:[%s1371 + $0x2e0] sm:$0xf]
        %v1615 = vld [vmem:[%s1371 + $0x2e4] sm:$0xf]
        %v1616 = vld [vmem:[%s1371 + $0x2e8] sm:$0xf]
        %v1617 = vld [vmem:[%s1371 + $0x2ec] sm:$0xf]
        %v1618 = vld [vmem:[%s1371 + $0x2f0] sm:$0xf]
        %v1619 = vld [vmem:[%s1371 + $0x2f4] sm:$0xf]
        %v1620 = vld [vmem:[%s1371 + $0x2f8] sm:$0xf]
        %v1621 = vld [vmem:[%s1371 + $0x2fc] sm:$0xf]
        %v1622 = vld [vmem:[%s1371 + $0x300] sm:$0xf]
        %v1623 = vld [vmem:[%s1371 + $0x304] sm:$0xf]
        %v1624 = vld [vmem:[%s1371 + $0x308] sm:$0xf]
        %v1625 = vld [vmem:[%s1371 + $0x30c] sm:$0xf]
        %v1626 = vld [vmem:[%s1371 + $0x310] sm:$0xf]
        %v1627 = vld [vmem:[%s1371 + $0x314] sm:$0xf]
        %v1628 = vld [vmem:[%s1371 + $0x318] sm:$0xf]
        %v1629 = vld [vmem:[%s1371 + $0x31c] sm:$0xf]
        %v1630 = vld [vmem:[%s1371 + $0x320] sm:$0xf]
        %v1631 = vld [vmem:[%s1371 + $0x324] sm:$0xf]
        %v1632 = vld [vmem:[%s1371 + $0x328] sm:$0xf]
        %v1633 = vld [vmem:[%s1371 + $0x32c] sm:$0xf]
        %v1634 = vld [vmem:[%s1371 + $0x330] sm:$0xf]
        %v1635 = vld [vmem:[%s1371 + $0x334] sm:$0xf]
        %v1636 = vld [vmem:[%s1371 + $0x338] sm:$0xf]
        %v1637 = vld [vmem:[%s1371 + $0x33c] sm:$0xf]
        %v1638 = vld [vmem:[%s1371 + $0x340] sm:$0xf]
        %v1639 = vld [vmem:[%s1371 + $0x344] sm:$0xf]
        %v1640 = vld [vmem:[%s1371 + $0x348] sm:$0xf]
        %v1641 = vld [vmem:[%s1371 + $0x34c] sm:$0xf]
        %v1642 = vld [vmem:[%s1371 + $0x350] sm:$0xf]
        %v1643 = vld [vmem:[%s1371 + $0x354] sm:$0xf]
        %v1644 = vld [vmem:[%s1371 + $0x358] sm:$0xf]
        %v1645 = vld [vmem:[%s1371 + $0x35c] sm:$0xf]
        %v1646 = vld [vmem:[%s1371 + $0x360] sm:$0xf]
        %v1647 = vld [vmem:[%s1371 + $0x364] sm:$0xf]
        %v1648 = vld [vmem:[%s1371 + $0x368] sm:$0xf]
        %v1649 = vld [vmem:[%s1371 + $0x36c] sm:$0xf]
        %v1650 = vld [vmem:[%s1371 + $0x370] sm:$0xf]
        %v1651 = vld [vmem:[%s1371 + $0x374] sm:$0xf]
        %v1652 = vld [vmem:[%s1371 + $0x378] sm:$0xf]
        %v1653 = vld [vmem:[%s1371 + $0x37c] sm:$0xf]
        %v1654 = vld [vmem:[%s1371 + $0x380] sm:$0xf]
        %v1655 = vld [vmem:[%s1371 + $0x384] sm:$0xf]
        %v1656 = vld [vmem:[%s1371 + $0x388] sm:$0xf]
        %v1657 = vld [vmem:[%s1371 + $0x38c] sm:$0xf]
        %v1658 = vld [vmem:[%s1371 + $0x390] sm:$0xf]
        %v1659 = vld [vmem:[%s1371 + $0x394] sm:$0xf]
        %v1660 = vld [vmem:[%s1371 + $0x398] sm:$0xf]
        %v1661 = vld [vmem:[%s1371 + $0x39c] sm:$0xf]
        %v1662 = vld [vmem:[%s1371 + $0x3a0] sm:$0xf]
        %v1663 = vld [vmem:[%s1371 + $0x3a4] sm:$0xf]
        %v1664 = vld [vmem:[%s1371 + $0x3a8] sm:$0xf]
        %v1665 = vld [vmem:[%s1371 + $0x3ac] sm:$0xf]
        %v1666 = vld [vmem:[%s1371 + $0x3b0] sm:$0xf]
        %v1667 = vld [vmem:[%s1371 + $0x3b4] sm:$0xf]
        %v1668 = vld [vmem:[%s1371 + $0x3b8] sm:$0xf]
        %v1669 = vld [vmem:[%s1371 + $0x3bc] sm:$0xf]
        %v1670 = vld [vmem:[%s1371 + $0x3c0] sm:$0xf]
        %v1671 = vld [vmem:[%s1371 + $0x3c4] sm:$0xf]
        %v1672 = vld [vmem:[%s1371 + $0x3c8] sm:$0xf]
        %v1673 = vld [vmem:[%s1371 + $0x3cc] sm:$0xf]
        %v1674 = vld [vmem:[%s1371 + $0x3d0] sm:$0xf]
        %v1675 = vld [vmem:[%s1371 + $0x3d4] sm:$0xf]
        %v1676 = vld [vmem:[%s1371 + $0x3d8] sm:$0xf]
        %v1677 = vld [vmem:[%s1371 + $0x3dc] sm:$0xf]
        %v1678 = vld [vmem:[%s1371 + $0x3e0] sm:$0xf]
        %v1679 = vld [vmem:[%s1371 + $0x3e4] sm:$0xf]
        %v1680 = vld [vmem:[%s1371 + $0x3e8] sm:$0xf]
        %v1681 = vld [vmem:[%s1371 + $0x3ec] sm:$0xf]
        %v1682 = vld [vmem:[%s1371 + $0x3f0] sm:$0xf]
        %v1683 = vld [vmem:[%s1371 + $0x3f4] sm:$0xf]
        %v1684 = vld [vmem:[%s1371 + $0x3f8] sm:$0xf]
        %v1685 = vld [vmem:[%s1371 + $0x3fc] sm:$0xf]
        %v1686 = vld [vmem:[%s1371 + $0x400] sm:$0xf]
        %v1687 = vld [vmem:[%s1371 + $0x404] sm:$0xf]
        %v1688 = vld [vmem:[%s1371 + $0x408] sm:$0xf]
        %v1689 = vld [vmem:[%s1371 + $0x40c] sm:$0xf]
        %v1690 = vld [vmem:[%s1371 + $0x410] sm:$0xf]
        %v1691 = vld [vmem:[%s1371 + $0x414] sm:$0xf]
        %v1692 = vld [vmem:[%s1371 + $0x418] sm:$0xf]
        %v1693 = vld [vmem:[%s1371 + $0x41c] sm:$0xf]
        %v1694 = vld [vmem:[%s1371 + $0x420] sm:$0xf]
        %v1695 = vld [vmem:[%s1371 + $0x424] sm:$0xf]
        %v1696 = vld [vmem:[%s1371 + $0x428] sm:$0xf]
        %v1697 = vld [vmem:[%s1371 + $0x42c] sm:$0xf]
        %v1698 = vld [vmem:[%s1371 + $0x430] sm:$0xf]
        %v1699 = vld [vmem:[%s1371 + $0x434] sm:$0xf]
        %v1700 = vld [vmem:[%s1371 + $0x438] sm:$0xf]
        %v1701 = vld [vmem:[%s1371 + $0x43c] sm:$0xf]
        %v1702 = vld [vmem:[%s1371 + $0x440] sm:$0xf]
        %v1703 = vld [vmem:[%s1371 + $0x444] sm:$0xf]
        %v1704 = vld [vmem:[%s1371 + $0x448] sm:$0xf]
        %v1705 = vld [vmem:[%s1371 + $0x44c] sm:$0xf]
        %v1706 = vld [vmem:[%s1371 + $0x450] sm:$0xf]
        %v1707 = vld [vmem:[%s1371 + $0x454] sm:$0xf]
        %v1708 = vld [vmem:[%s1371 + $0x458] sm:$0xf]
        %v1709 = vld [vmem:[%s1371 + $0x45c] sm:$0xf]
        %v1710 = vld [vmem:[%s1371 + $0x460] sm:$0xf]
        %v1711 = vld [vmem:[%s1371 + $0x464] sm:$0xf]
        %v1712 = vld [vmem:[%s1371 + $0x468] sm:$0xf]
        %v1713 = vld [vmem:[%s1371 + $0x46c] sm:$0xf]
        %v1714 = vld [vmem:[%s1371 + $0x470] sm:$0xf]
        %v1715 = vld [vmem:[%s1371 + $0x474] sm:$0xf]
        %v1716 = vld [vmem:[%s1371 + $0x478] sm:$0xf]
        %v1717 = vld [vmem:[%s1371 + $0x47c] sm:$0xf]
        %v1718 = vld [vmem:[%s1410] sm:$0x1]
        %v1720 = vlaneseq
        %v1721 = vshrl.u32 %v1720, 7
        %v1722 = vsub.s32 0, %v1721
        %v1723 = vrot.slane %v1718, %v1722
        %v1743 = vunpack.c.l.b16 %v1412
        %v1744 = vunpack.c.h.b16 %v1412
        %v1745 = vunpack.c.l.b16 %v1413
        %v1746 = vunpack.c.h.b16 %v1413
        %v1747 = vunpack.c.l.b16 %v1414
        %v1748 = vunpack.c.h.b16 %v1414
        %v1749 = vunpack.c.l.b16 %v1415
        %v1750 = vunpack.c.h.b16 %v1415
        %v1751 = vunpack.c.l.b16 %v1416
        %v1752 = vunpack.c.h.b16 %v1416
        %v1753 = vunpack.c.l.b16 %v1417
        %v1754 = vunpack.c.h.b16 %v1417
        %v1755 = vunpack.c.l.b16 %v1418
        %v1756 = vunpack.c.h.b16 %v1418
        %v1757 = vunpack.c.l.b16 %v1419
        %v1758 = vunpack.c.h.b16 %v1419
        %v1759 = vunpack.c.l.b16 %v1420
        %v1760 = vunpack.c.h.b16 %v1420
        %v1761 = vunpack.c.l.b16 %v1421
        %v1762 = vunpack.c.h.b16 %v1421
        %v1763 = vunpack.c.l.b16 %v1422
        %v1764 = vunpack.c.h.b16 %v1422
        %v1765 = vunpack.c.l.b16 %v1423
        %v1766 = vunpack.c.h.b16 %v1423
        %v1767 = vunpack.c.l.b16 %v1424
        %v1768 = vunpack.c.h.b16 %v1424
        %v1769 = vunpack.c.l.b16 %v1425
        %v1770 = vunpack.c.h.b16 %v1425
        %v1771 = vunpack.c.l.b16 %v1426
        %v1772 = vunpack.c.h.b16 %v1426
        %v1773 = vunpack.c.l.b16 %v1427
        %v1774 = vunpack.c.h.b16 %v1427
        %v1775 = vunpack.c.l.b16 %v1428
        %v1776 = vunpack.c.h.b16 %v1428
        %v1777 = vunpack.c.l.b16 %v1429
        %v1778 = vunpack.c.h.b16 %v1429
        %v1779 = vpack.c.b16 %v1761, %v1743
        %v1780 = vpack.c.b16 %v1762, %v1744
        %v1781 = vpack.c.b16 %v1763, %v1745
        %v1782 = vpack.c.b16 %v1764, %v1746
        %v1783 = vpack.c.b16 %v1765, %v1747
        %v1784 = vpack.c.b16 %v1766, %v1748
        %v1785 = vpack.c.b16 %v1767, %v1749
        %v1786 = vpack.c.b16 %v1768, %v1750
        %v1787 = vpack.c.b16 %v1769, %v1751
        %v1788 = vpack.c.b16 %v1770, %v1752
        %v1789 = vpack.c.b16 %v1771, %v1753
        %v1790 = vpack.c.b16 %v1772, %v1754
        %v1791 = vpack.c.b16 %v1773, %v1755
        %v1792 = vpack.c.b16 %v1774, %v1756
        %v1793 = vpack.c.b16 %v1775, %v1757
        %v1794 = vpack.c.b16 %v1776, %v1758
        %v1795 = vpack.c.b16 %v1777, %v1759
        %v1796 = vpack.c.b16 %v1778, %v1760
        %v2103 = vunpack.c.l.b16 %v1430
        %v2104 = vunpack.c.l.b16 %v1431
        %v2105 = vunpack.c.l.b16 %v1432
        %v2106 = vunpack.c.l.b16 %v1433
        %v2107 = vunpack.c.l.b16 %v1434
        %v2108 = vunpack.c.l.b16 %v1435
        %v2109 = vunpack.c.l.b16 %v1436
        %v2110 = vunpack.c.l.b16 %v1437
        %v2111 = vunpack.c.l.b16 %v1438
        %v2112 = vunpack.c.l.b16 %v1439
        %v2113 = vunpack.c.l.b16 %v1440
        %v2114 = vunpack.c.l.b16 %v1441
        %v2115 = vunpack.c.l.b16 %v1442
        %v2116 = vunpack.c.l.b16 %v1443
        %v2117 = vunpack.c.l.b16 %v1444
        %v2118 = vunpack.c.l.b16 %v1445
        %v2119 = vunpack.c.l.b16 %v1446
        %v2120 = vunpack.c.l.b16 %v1447
        %v2121 = vunpack.c.l.b16 %v1448
        %v2122 = vunpack.c.l.b16 %v1449
        %v2123 = vunpack.c.l.b16 %v1450
        %v2124 = vunpack.c.l.b16 %v1451
        %v2125 = vunpack.c.l.b16 %v1452
        %v2126 = vunpack.c.l.b16 %v1453
        %v2127 = vunpack.c.l.b16 %v1454
        %v2128 = vunpack.c.l.b16 %v1455
        %v2129 = vunpack.c.l.b16 %v1456
        %v2130 = vunpack.c.l.b16 %v1457
        %v2131 = vunpack.c.l.b16 %v1458
        %v2132 = vunpack.c.l.b16 %v1459
        %v2133 = vunpack.c.l.b16 %v1460
        %v2134 = vunpack.c.l.b16 %v1461
        %v2135 = vunpack.c.l.b16 %v1462
        %v2136 = vunpack.c.l.b16 %v1463
        %v2137 = vunpack.c.l.b16 %v1464
        %v2138 = vunpack.c.l.b16 %v1465
        %v2139 = vunpack.c.l.b16 %v1466
        %v2140 = vunpack.c.l.b16 %v1467
        %v2141 = vunpack.c.l.b16 %v1468
        %v2142 = vunpack.c.l.b16 %v1469
        %v2143 = vunpack.c.l.b16 %v1470
        %v2144 = vunpack.c.l.b16 %v1471
        %v2145 = vunpack.c.l.b16 %v1472
        %v2146 = vunpack.c.l.b16 %v1473
        %v2147 = vunpack.c.l.b16 %v1474
        %v2148 = vunpack.c.l.b16 %v1475
        %v2149 = vunpack.c.l.b16 %v1476
        %v2150 = vunpack.c.l.b16 %v1477
        %v2151 = vunpack.c.l.b16 %v1478
        %v2152 = vunpack.c.l.b16 %v1479
        %v2153 = vunpack.c.l.b16 %v1480
        %v2154 = vunpack.c.l.b16 %v1481
        %v2155 = vunpack.c.l.b16 %v1482
        %v2156 = vunpack.c.l.b16 %v1483
        %v2157 = vunpack.c.l.b16 %v1484
        %v2158 = vunpack.c.l.b16 %v1485
        %v2159 = vunpack.c.l.b16 %v1486
        %v2160 = vunpack.c.l.b16 %v1487
        %v2161 = vunpack.c.l.b16 %v1488
        %v2162 = vunpack.c.l.b16 %v1489
        %v2163 = vunpack.c.l.b16 %v1490
        %v2164 = vunpack.c.l.b16 %v1491
        %v2165 = vunpack.c.l.b16 %v1492
        %v2166 = vunpack.c.l.b16 %v1493
        %v2167 = vunpack.c.l.b16 %v1494
        %v2168 = vunpack.c.l.b16 %v1495
        %v2169 = vunpack.c.l.b16 %v1496
        %v2170 = vunpack.c.l.b16 %v1497
        %v2171 = vunpack.c.l.b16 %v1498
        %v2172 = vunpack.c.l.b16 %v1499
        %v2173 = vunpack.c.l.b16 %v1500
        %v2174 = vunpack.c.l.b16 %v1501
        %v2175 = vunpack.c.l.b16 %v1502
        %v2176 = vunpack.c.l.b16 %v1503
        %v2177 = vunpack.c.l.b16 %v1504
        %v2178 = vunpack.c.l.b16 %v1505
        %v2179 = vunpack.c.l.b16 %v1506
        %v2180 = vunpack.c.l.b16 %v1507
        %v2181 = vunpack.c.l.b16 %v1508
        %v2182 = vunpack.c.l.b16 %v1509
        %v2183 = vunpack.c.l.b16 %v1510
        %v2184 = vunpack.c.l.b16 %v1511
        %v2185 = vunpack.c.l.b16 %v1512
        %v2186 = vunpack.c.l.b16 %v1513
        %v2187 = vunpack.c.l.b16 %v1514
        %v2188 = vunpack.c.l.b16 %v1515
        %v2189 = vunpack.c.l.b16 %v1516
        %v2190 = vunpack.c.l.b16 %v1517
        %v2191 = vunpack.c.l.b16 %v1518
        %v2192 = vunpack.c.l.b16 %v1519
        %v2193 = vunpack.c.l.b16 %v1520
        %v2194 = vunpack.c.l.b16 %v1521
        %v2195 = vunpack.c.l.b16 %v1522
        %v2196 = vunpack.c.l.b16 %v1523
        %v2197 = vunpack.c.l.b16 %v1524
        %v2198 = vunpack.c.l.b16 %v1525
        %v2199 = vunpack.c.l.b16 %v1526
        %v2200 = vunpack.c.l.b16 %v1527
        %v2201 = vunpack.c.l.b16 %v1528
        %v2202 = vunpack.c.l.b16 %v1529
        %v2203 = vunpack.c.l.b16 %v1530
        %v2204 = vunpack.c.l.b16 %v1531
        %v2205 = vunpack.c.l.b16 %v1532
        %v2206 = vunpack.c.l.b16 %v1533
        %v2207 = vunpack.c.l.b16 %v1534
        %v2208 = vunpack.c.l.b16 %v1535
        %v2209 = vunpack.c.l.b16 %v1536
        %v2210 = vunpack.c.l.b16 %v1537
        %v2211 = vunpack.c.l.b16 %v1538
        %v2212 = vunpack.c.l.b16 %v1539
        %v2213 = vunpack.c.l.b16 %v1540
        %v2214 = vunpack.c.l.b16 %v1541
        %v2215 = vunpack.c.l.b16 %v1542
        %v2216 = vunpack.c.l.b16 %v1543
        %v2217 = vunpack.c.l.b16 %v1544
        %v2218 = vunpack.c.l.b16 %v1545
        %v2219 = vunpack.c.l.b16 %v1546
        %v2220 = vunpack.c.l.b16 %v1547
        %v2221 = vunpack.c.l.b16 %v1548
        %v2222 = vunpack.c.l.b16 %v1549
        %v2223 = vunpack.c.l.b16 %v1550
        %v2224 = vunpack.c.l.b16 %v1551
        %v2225 = vunpack.c.l.b16 %v1552
        %v2226 = vunpack.c.l.b16 %v1553
        %v2227 = vunpack.c.l.b16 %v1554
        %v2228 = vunpack.c.l.b16 %v1555
        %v2229 = vunpack.c.l.b16 %v1556
        %v2230 = vunpack.c.l.b16 %v1557
        %v2231 = vunpack.c.l.b16 %v1558
        %v2232 = vunpack.c.l.b16 %v1559
        %v2233 = vunpack.c.l.b16 %v1560
        %v2234 = vunpack.c.l.b16 %v1561
        %v2235 = vunpack.c.l.b16 %v1562
        %v2236 = vunpack.c.l.b16 %v1563
        %v2237 = vunpack.c.l.b16 %v1564
        %v2238 = vunpack.c.l.b16 %v1565
        %v2239 = vunpack.c.l.b16 %v1566
        %v2240 = vunpack.c.l.b16 %v1567
        %v2241 = vunpack.c.l.b16 %v1568
        %v2242 = vunpack.c.l.b16 %v1569
        %v2243 = vunpack.c.l.b16 %v1570
        %v2244 = vunpack.c.l.b16 %v1571
        %v2245 = vunpack.c.l.b16 %v1572
        %v2246 = vunpack.c.l.b16 %v1573
        %v2247 = vunpack.c.l.b16 %v1574
        %v2248 = vunpack.c.l.b16 %v1575
        %v2249 = vunpack.c.l.b16 %v1576
        %v2250 = vunpack.c.l.b16 %v1577
        %v2251 = vunpack.c.l.b16 %v1578
        %v2252 = vunpack.c.l.b16 %v1579
        %v2253 = vunpack.c.l.b16 %v1580
        %v2254 = vunpack.c.l.b16 %v1581
        %v2255 = vunpack.c.l.b16 %v1582
        %v2256 = vunpack.c.l.b16 %v1583
        %v2257 = vunpack.c.l.b16 %v1584
        %v2258 = vunpack.c.l.b16 %v1585
        %v2259 = vunpack.c.l.b16 %v1586
        %v2260 = vunpack.c.l.b16 %v1587
        %v2261 = vunpack.c.l.b16 %v1588
        %v2262 = vunpack.c.l.b16 %v1589
        %v2263 = vunpack.c.l.b16 %v1590
        %v2264 = vunpack.c.l.b16 %v1591
        %v2265 = vunpack.c.l.b16 %v1592
        %v2266 = vunpack.c.l.b16 %v1593
        %v2267 = vunpack.c.l.b16 %v1594
        %v2268 = vunpack.c.l.b16 %v1595
        %v2269 = vunpack.c.l.b16 %v1596
        %v2270 = vunpack.c.l.b16 %v1597
        %v2271 = vunpack.c.l.b16 %v1598
        %v2272 = vunpack.c.l.b16 %v1599
        %v2273 = vunpack.c.l.b16 %v1600
        %v2274 = vunpack.c.l.b16 %v1601
        %v2275 = vunpack.c.l.b16 %v1602
        %v2276 = vunpack.c.l.b16 %v1603
        %v2277 = vunpack.c.l.b16 %v1604
        %v2278 = vunpack.c.l.b16 %v1605
        %v2279 = vunpack.c.l.b16 %v1606
        %v2280 = vunpack.c.l.b16 %v1607
        %v2281 = vunpack.c.l.b16 %v1608
        %v2282 = vunpack.c.l.b16 %v1609
        %v2283 = vunpack.c.l.b16 %v1610
        %v2284 = vunpack.c.l.b16 %v1611
        %v2285 = vunpack.c.l.b16 %v1612
        %v2286 = vunpack.c.l.b16 %v1613
        %v2287 = vunpack.c.l.b16 %v1614
        %v2288 = vunpack.c.l.b16 %v1615
        %v2289 = vunpack.c.l.b16 %v1616
        %v2290 = vunpack.c.l.b16 %v1617
        %v2291 = vunpack.c.l.b16 %v1618
        %v2292 = vunpack.c.l.b16 %v1619
        %v2293 = vunpack.c.l.b16 %v1620
        %v2294 = vunpack.c.l.b16 %v1621
        %v2295 = vunpack.c.l.b16 %v1622
        %v2296 = vunpack.c.l.b16 %v1623
        %v2297 = vunpack.c.l.b16 %v1624
        %v2298 = vunpack.c.l.b16 %v1625
        %v2299 = vunpack.c.l.b16 %v1626
        %v2300 = vunpack.c.l.b16 %v1627
        %v2301 = vunpack.c.l.b16 %v1628
        %v2302 = vunpack.c.l.b16 %v1629
        %v2303 = vunpack.c.l.b16 %v1630
        %v2304 = vunpack.c.l.b16 %v1631
        %v2305 = vunpack.c.l.b16 %v1632
        %v2306 = vunpack.c.l.b16 %v1633
        %v2307 = vunpack.c.l.b16 %v1634
        %v2308 = vunpack.c.l.b16 %v1635
        %v2309 = vunpack.c.l.b16 %v1636
        %v2310 = vunpack.c.l.b16 %v1637
        %v2311 = vunpack.c.l.b16 %v1638
        %v2312 = vunpack.c.l.b16 %v1639
        %v2313 = vunpack.c.l.b16 %v1640
        %v2314 = vunpack.c.l.b16 %v1641
        %v2315 = vunpack.c.l.b16 %v1642
        %v2316 = vunpack.c.l.b16 %v1643
        %v2317 = vunpack.c.l.b16 %v1644
        %v2318 = vunpack.c.l.b16 %v1645
        %v2319 = vunpack.c.l.b16 %v1646
        %v2320 = vunpack.c.l.b16 %v1647
        %v2321 = vunpack.c.l.b16 %v1648
        %v2322 = vunpack.c.l.b16 %v1649
        %v2323 = vunpack.c.l.b16 %v1650
        %v2324 = vunpack.c.l.b16 %v1651
        %v2325 = vunpack.c.l.b16 %v1652
        %v2326 = vunpack.c.l.b16 %v1653
        %v2327 = vunpack.c.l.b16 %v1654
        %v2328 = vunpack.c.l.b16 %v1655
        %v2329 = vunpack.c.l.b16 %v1656
        %v2330 = vunpack.c.l.b16 %v1657
        %v2331 = vunpack.c.l.b16 %v1658
        %v2332 = vunpack.c.l.b16 %v1659
        %v2333 = vunpack.c.l.b16 %v1660
        %v2334 = vunpack.c.l.b16 %v1661
        %v2335 = vunpack.c.l.b16 %v1662
        %v2336 = vunpack.c.l.b16 %v1663
        %v2337 = vunpack.c.l.b16 %v1664
        %v2338 = vunpack.c.l.b16 %v1665
        %v2339 = vunpack.c.l.b16 %v1666
        %v2340 = vunpack.c.l.b16 %v1667
        %v2341 = vunpack.c.l.b16 %v1668
        %v2342 = vunpack.c.l.b16 %v1669
        %v2343 = vunpack.c.l.b16 %v1670
        %v2344 = vunpack.c.l.b16 %v1671
        %v2345 = vunpack.c.l.b16 %v1672
        %v2346 = vunpack.c.l.b16 %v1673
        %v2347 = vunpack.c.l.b16 %v1674
        %v2348 = vunpack.c.l.b16 %v1675
        %v2349 = vunpack.c.l.b16 %v1676
        %v2350 = vunpack.c.l.b16 %v1677
        %v2351 = vunpack.c.l.b16 %v1678
        %v2352 = vunpack.c.l.b16 %v1679
        %v2353 = vunpack.c.l.b16 %v1680
        %v2354 = vunpack.c.l.b16 %v1681
        %v2355 = vunpack.c.l.b16 %v1682
        %v2356 = vunpack.c.l.b16 %v1683
        %v2357 = vunpack.c.l.b16 %v1684
        %v2358 = vunpack.c.l.b16 %v1685
        %v2359 = vunpack.c.l.b16 %v1686
        %v2360 = vunpack.c.l.b16 %v1687
        %v2361 = vunpack.c.l.b16 %v1688
        %v2362 = vunpack.c.l.b16 %v1689
        %v2363 = vunpack.c.l.b16 %v1690
        %v2364 = vunpack.c.l.b16 %v1691
        %v2365 = vunpack.c.l.b16 %v1692
        %v2366 = vunpack.c.l.b16 %v1693
        %v2367 = vunpack.c.l.b16 %v1694
        %v2368 = vunpack.c.l.b16 %v1695
        %v2369 = vunpack.c.l.b16 %v1696
        %v2370 = vunpack.c.l.b16 %v1697
        %v2371 = vunpack.c.l.b16 %v1698
        %v2372 = vunpack.c.l.b16 %v1699
        %v2373 = vunpack.c.l.b16 %v1700
        %v2374 = vunpack.c.l.b16 %v1701
        %v2375 = vunpack.c.l.b16 %v1702
        %v2376 = vunpack.c.l.b16 %v1703
        %v2377 = vunpack.c.l.b16 %v1704
        %v2378 = vunpack.c.l.b16 %v1705
        %v2379 = vunpack.c.l.b16 %v1706
        %v2380 = vunpack.c.l.b16 %v1707
        %v2381 = vunpack.c.l.b16 %v1708
        %v2382 = vunpack.c.l.b16 %v1709
        %v2383 = vunpack.c.l.b16 %v1710
        %v2384 = vunpack.c.l.b16 %v1711
        %v2385 = vunpack.c.l.b16 %v1712
        %v2386 = vunpack.c.l.b16 %v1713
        %v2387 = vunpack.c.l.b16 %v1714
        %v2388 = vunpack.c.l.b16 %v1715
        %v2389 = vunpack.c.l.b16 %v1716
        %v2390 = vunpack.c.l.b16 %v1717
        %v2391 = vpack.c.b16 %v2104, %v2103
        %v2392 = vpack.c.b16 %v2106, %v2105
        %v2393 = vpack.c.b16 %v2108, %v2107
        %v2394 = vpack.c.b16 %v2110, %v2109
        %v2395 = vpack.c.b16 %v2112, %v2111
        %v2396 = vpack.c.b16 %v2114, %v2113
        %v2397 = vpack.c.b16 %v2116, %v2115
        %v2398 = vpack.c.b16 %v2118, %v2117
        %v2399 = vpack.c.b16 %v2120, %v2119
        %v2400 = vpack.c.b16 %v2122, %v2121
        %v2401 = vpack.c.b16 %v2124, %v2123
        %v2402 = vpack.c.b16 %v2126, %v2125
        %v2403 = vpack.c.b16 %v2128, %v2127
        %v2404 = vpack.c.b16 %v2130, %v2129
        %v2405 = vpack.c.b16 %v2132, %v2131
        %v2406 = vpack.c.b16 %v2134, %v2133
        %v2407 = vpack.c.b16 %v2136, %v2135
        %v2408 = vpack.c.b16 %v2138, %v2137
        %v2409 = vpack.c.b16 %v2140, %v2139
        %v2410 = vpack.c.b16 %v2142, %v2141
        %v2411 = vpack.c.b16 %v2144, %v2143
        %v2412 = vpack.c.b16 %v2146, %v2145
        %v2413 = vpack.c.b16 %v2148, %v2147
        %v2414 = vpack.c.b16 %v2150, %v2149
        %v2415 = vpack.c.b16 %v2152, %v2151
        %v2416 = vpack.c.b16 %v2154, %v2153
        %v2417 = vpack.c.b16 %v2156, %v2155
        %v2418 = vpack.c.b16 %v2158, %v2157
        %v2419 = vpack.c.b16 %v2160, %v2159
        %v2420 = vpack.c.b16 %v2162, %v2161
        %v2421 = vpack.c.b16 %v2164, %v2163
        %v2422 = vpack.c.b16 %v2166, %v2165
        %v2423 = vpack.c.b16 %v2168, %v2167
        %v2424 = vpack.c.b16 %v2170, %v2169
        %v2425 = vpack.c.b16 %v2172, %v2171
        %v2426 = vpack.c.b16 %v2174, %v2173
        %v2427 = vpack.c.b16 %v2176, %v2175
        %v2428 = vpack.c.b16 %v2178, %v2177
        %v2429 = vpack.c.b16 %v2180, %v2179
        %v2430 = vpack.c.b16 %v2182, %v2181
        %v2431 = vpack.c.b16 %v2184, %v2183
        %v2432 = vpack.c.b16 %v2186, %v2185
        %v2433 = vpack.c.b16 %v2188, %v2187
        %v2434 = vpack.c.b16 %v2190, %v2189
        %v2435 = vpack.c.b16 %v2192, %v2191
        %v2436 = vpack.c.b16 %v2194, %v2193
        %v2437 = vpack.c.b16 %v2196, %v2195
        %v2438 = vpack.c.b16 %v2198, %v2197
        %v2439 = vpack.c.b16 %v2200, %v2199
        %v2440 = vpack.c.b16 %v2202, %v2201
        %v2441 = vpack.c.b16 %v2204, %v2203
        %v2442 = vpack.c.b16 %v2206, %v2205
        %v2443 = vpack.c.b16 %v2208, %v2207
        %v2444 = vpack.c.b16 %v2210, %v2209
        %v2445 = vpack.c.b16 %v2212, %v2211
        %v2446 = vpack.c.b16 %v2214, %v2213
        %v2447 = vpack.c.b16 %v2216, %v2215
        %v2448 = vpack.c.b16 %v2218, %v2217
        %v2449 = vpack.c.b16 %v2220, %v2219
        %v2450 = vpack.c.b16 %v2222, %v2221
        %v2451 = vpack.c.b16 %v2224, %v2223
        %v2452 = vpack.c.b16 %v2226, %v2225
        %v2453 = vpack.c.b16 %v2228, %v2227
        %v2454 = vpack.c.b16 %v2230, %v2229
        %v2455 = vpack.c.b16 %v2232, %v2231
        %v2456 = vpack.c.b16 %v2234, %v2233
        %v2457 = vpack.c.b16 %v2236, %v2235
        %v2458 = vpack.c.b16 %v2238, %v2237
        %v2459 = vpack.c.b16 %v2240, %v2239
        %v2460 = vpack.c.b16 %v2242, %v2241
        %v2461 = vpack.c.b16 %v2244, %v2243
        %v2462 = vpack.c.b16 %v2246, %v2245
        %v2463 = vpack.c.b16 %v2248, %v2247
        %v2464 = vpack.c.b16 %v2250, %v2249
        %v2465 = vpack.c.b16 %v2252, %v2251
        %v2466 = vpack.c.b16 %v2254, %v2253
        %v2467 = vpack.c.b16 %v2256, %v2255
        %v2468 = vpack.c.b16 %v2258, %v2257
        %v2469 = vpack.c.b16 %v2260, %v2259
        %v2470 = vpack.c.b16 %v2262, %v2261
        %v2471 = vpack.c.b16 %v2264, %v2263
        %v2472 = vpack.c.b16 %v2266, %v2265
        %v2473 = vpack.c.b16 %v2268, %v2267
        %v2474 = vpack.c.b16 %v2270, %v2269
        %v2475 = vpack.c.b16 %v2272, %v2271
        %v2476 = vpack.c.b16 %v2274, %v2273
        %v2477 = vpack.c.b16 %v2276, %v2275
        %v2478 = vpack.c.b16 %v2278, %v2277
        %v2479 = vpack.c.b16 %v2280, %v2279
        %v2480 = vpack.c.b16 %v2282, %v2281
        %v2481 = vpack.c.b16 %v2284, %v2283
        %v2482 = vpack.c.b16 %v2286, %v2285
        %v2483 = vpack.c.b16 %v2288, %v2287
        %v2484 = vpack.c.b16 %v2290, %v2289
        %v2485 = vpack.c.b16 %v2292, %v2291
        %v2486 = vpack.c.b16 %v2294, %v2293
        %v2487 = vpack.c.b16 %v2296, %v2295
        %v2488 = vpack.c.b16 %v2298, %v2297
        %v2489 = vpack.c.b16 %v2300, %v2299
        %v2490 = vpack.c.b16 %v2302, %v2301
        %v2491 = vpack.c.b16 %v2304, %v2303
        %v2492 = vpack.c.b16 %v2306, %v2305
        %v2493 = vpack.c.b16 %v2308, %v2307
        %v2494 = vpack.c.b16 %v2310, %v2309
        %v2495 = vpack.c.b16 %v2312, %v2311
        %v2496 = vpack.c.b16 %v2314, %v2313
        %v2497 = vpack.c.b16 %v2316, %v2315
        %v2498 = vpack.c.b16 %v2318, %v2317
        %v2499 = vpack.c.b16 %v2320, %v2319
        %v2500 = vpack.c.b16 %v2322, %v2321
        %v2501 = vpack.c.b16 %v2324, %v2323
        %v2502 = vpack.c.b16 %v2326, %v2325
        %v2503 = vpack.c.b16 %v2328, %v2327
        %v2504 = vpack.c.b16 %v2330, %v2329
        %v2505 = vpack.c.b16 %v2332, %v2331
        %v2506 = vpack.c.b16 %v2334, %v2333
        %v2507 = vpack.c.b16 %v2336, %v2335
        %v2508 = vpack.c.b16 %v2338, %v2337
        %v2509 = vpack.c.b16 %v2340, %v2339
        %v2510 = vpack.c.b16 %v2342, %v2341
        %v2511 = vpack.c.b16 %v2344, %v2343
        %v2512 = vpack.c.b16 %v2346, %v2345
        %v2513 = vpack.c.b16 %v2348, %v2347
        %v2514 = vpack.c.b16 %v2350, %v2349
        %v2515 = vpack.c.b16 %v2352, %v2351
        %v2516 = vpack.c.b16 %v2354, %v2353
        %v2517 = vpack.c.b16 %v2356, %v2355
        %v2518 = vpack.c.b16 %v2358, %v2357
        %v2519 = vpack.c.b16 %v2360, %v2359
        %v2520 = vpack.c.b16 %v2362, %v2361
        %v2521 = vpack.c.b16 %v2364, %v2363
        %v2522 = vpack.c.b16 %v2366, %v2365
        %v2523 = vpack.c.b16 %v2368, %v2367
        %v2524 = vpack.c.b16 %v2370, %v2369
        %v2525 = vpack.c.b16 %v2372, %v2371
        %v2526 = vpack.c.b16 %v2374, %v2373
        %v2527 = vpack.c.b16 %v2376, %v2375
        %v2528 = vpack.c.b16 %v2378, %v2377
        %v2529 = vpack.c.b16 %v2380, %v2379
        %v2530 = vpack.c.b16 %v2382, %v2381
        %v2531 = vpack.c.b16 %v2384, %v2383
        %v2532 = vpack.c.b16 %v2386, %v2385
        %v2533 = vpack.c.b16 %v2388, %v2387
        %v2534 = vpack.c.b16 %v2390, %v2389
        %2679 = vmatprep.subr.bf16.mxu0 0
        %2680 = vmatpush1.bf16.msra.mxu0 %v2391
        %2681 = vmatprep.subr.bf16.mxu0 0
        %2682 = vmatpush1.bf16.msra.mxu0 %v2392
        %2683 = vmatprep.subr.bf16.mxu0 0
        %2684 = vmatpush1.bf16.msra.mxu0 %v2393
        %2685 = vmatprep.subr.bf16.mxu0 0
        %2686 = vmatpush1.bf16.msra.mxu0 %v2394
        %2687 = vmatprep.subr.bf16.mxu0 0
        %2688 = vmatpush1.bf16.msra.mxu0 %v2395
        %2689 = vmatprep.subr.bf16.mxu0 0
        %2690 = vmatpush1.bf16.msra.mxu0 %v2396
        %2691 = vmatprep.subr.bf16.mxu0 0
        %2692 = vmatpush1.bf16.msra.mxu0 %v2397
        %2693 = vmatprep.subr.bf16.mxu0 0
        %2694 = vmatpush1.bf16.msra.mxu0 %v2398
        %2695 = vmatprep.subr.bf16.mxu0 0
        %2696 = vmatpush1.bf16.msra.mxu0 %v2399
        %2697 = vmatprep.subr.bf16.mxu0 0
        %2698 = vmatpush1.bf16.msra.mxu0 %v2400
        %2699 = vmatprep.subr.bf16.mxu0 0
        %2700 = vmatpush1.bf16.msra.mxu0 %v2401
        %2701 = vmatprep.subr.bf16.mxu0 0
        %2702 = vmatpush1.bf16.msra.mxu0 %v2402
        %2703 = vmatprep.subr.bf16.mxu0 0
        %2704 = vmatpush1.bf16.msra.mxu0 %v2403
        %2705 = vmatprep.subr.bf16.mxu0 0
        %2706 = vmatpush1.bf16.msra.mxu0 %v2404
        %2707 = vmatprep.subr.bf16.mxu0 0
        %2708 = vmatpush1.bf16.msra.mxu0 %v2405
        %2709 = vmatprep.subr.bf16.mxu0 0
        %2710 = vmatpush1.bf16.msra.mxu0 %v2406
        %2711 = vmatprep.mubr.bf16.mxu0 %v1780
        %2712 = vmatmul.mubr.bf16.gmra.mrb[0].mxu0 %v1779
        %v2713 = vpop.f32.mrb[0].mxu0
        %v2714 = vadd.f32 %v1723, %v2713
        %v2715 = vpop.f32.mrb[0].mxu0
        %v2716 = vpop.f32.mrb[0].mxu0
        %v2717 = vadd.f32 %v1723, %v2716
        %v2718 = vpop.f32.mrb[0].mxu0
        %2719 = vdwg.mxu0
        %2720 = vmatprep.subr.bf16.mxu0 0
        %2721 = vmatpush1.bf16.msra.mxu0 %v2407
        %2722 = vmatprep.subr.bf16.mxu0 0
        %2723 = vmatpush1.bf16.msra.mxu0 %v2408
        %2724 = vmatprep.subr.bf16.mxu0 0
        %2725 = vmatpush1.bf16.msra.mxu0 %v2409
        %2726 = vmatprep.subr.bf16.mxu0 0
        %2727 = vmatpush1.bf16.msra.mxu0 %v2410
        %2728 = vmatprep.subr.bf16.mxu0 0
        %2729 = vmatpush1.bf16.msra.mxu0 %v2411
        %2730 = vmatprep.subr.bf16.mxu0 0
        %2731 = vmatpush1.bf16.msra.mxu0 %v2412
        %2732 = vmatprep.subr.bf16.mxu0 0
        %2733 = vmatpush1.bf16.msra.mxu0 %v2413
        %2734 = vmatprep.subr.bf16.mxu0 0
        %2735 = vmatpush1.bf16.msra.mxu0 %v2414
        %2736 = vmatprep.subr.bf16.mxu0 0
        %2737 = vmatpush1.bf16.msra.mxu0 %v2415
        %2738 = vmatprep.subr.bf16.mxu0 0
        %2739 = vmatpush1.bf16.msra.mxu0 %v2416
        %2740 = vmatprep.subr.bf16.mxu0 0
        %2741 = vmatpush1.bf16.msra.mxu0 %v2417
        %2742 = vmatprep.subr.bf16.mxu0 0
        %2743 = vmatpush1.bf16.msra.mxu0 %v2418
        %2744 = vmatprep.subr.bf16.mxu0 0
        %2745 = vmatpush1.bf16.msra.mxu0 %v2419
        %2746 = vmatprep.subr.bf16.mxu0 0
        %2747 = vmatpush1.bf16.msra.mxu0 %v2420
        %2748 = vmatprep.subr.bf16.mxu0 0
        %2749 = vmatpush1.bf16.msra.mxu0 %v2421
        %2750 = vmatprep.subr.bf16.mxu0 0
        %2751 = vmatpush1.bf16.msra.mxu0 %v2422
        %2752 = vmatprep.mubr.bf16.mxu0 %v1782
        %2753 = vmatmul.mubr.bf16.gmra.mrb[0].mxu0 %v1781
        %v2754 = vpop.f32.mrb[0].mxu0
        %v2755 = vadd.f32 %v2714, %v2754
        %v2756 = vpop.f32.mrb[0].mxu0
        %v2757 = vpop.f32.mrb[0].mxu0
        %v2758 = vadd.f32 %v2717, %v2757
        %v2759 = vpop.f32.mrb[0].mxu0
        %2760 = vdwg.mxu0
        %2761 = vmatprep.subr.bf16.mxu0 0
        %2762 = vmatpush1.bf16.msra.mxu0 %v2423
        %2763 = vmatprep.subr.bf16.mxu0 0
        %2764 = vmatpush1.bf16.msra.mxu0 %v2424
        %2765 = vmatprep.subr.bf16.mxu0 0
        %2766 = vmatpush1.bf16.msra.mxu0 %v2425
        %2767 = vmatprep.subr.bf16.mxu0 0
        %2768 = vmatpush1.bf16.msra.mxu0 %v2426
        %2769 = vmatprep.subr.bf16.mxu0 0
        %2770 = vmatpush1.bf16.msra.mxu0 %v2427
        %2771 = vmatprep.subr.bf16.mxu0 0
        %2772 = vmatpush1.bf16.msra.mxu0 %v2428
        %2773 = vmatprep.subr.bf16.mxu0 0
        %2774 = vmatpush1.bf16.msra.mxu0 %v2429
        %2775 = vmatprep.subr.bf16.mxu0 0
        %2776 = vmatpush1.bf16.msra.mxu0 %v2430
        %2777 = vmatprep.subr.bf16.mxu0 0
        %2778 = vmatpush1.bf16.msra.mxu0 %v2431
        %2779 = vmatprep.subr.bf16.mxu0 0
        %2780 = vmatpush1.bf16.msra.mxu0 %v2432
        %2781 = vmatprep.subr.bf16.mxu0 0
        %2782 = vmatpush1.bf16.msra.mxu0 %v2433
        %2783 = vmatprep.subr.bf16.mxu0 0
        %2784 = vmatpush1.bf16.msra.mxu0 %v2434
        %2785 = vmatprep.subr.bf16.mxu0 0
        %2786 = vmatpush1.bf16.msra.mxu0 %v2435
        %2787 = vmatprep.subr.bf16.mxu0 0
        %2788 = vmatpush1.bf16.msra.mxu0 %v2436
        %2789 = vmatprep.subr.bf16.mxu0 0
        %2790 = vmatpush1.bf16.msra.mxu0 %v2437
        %2791 = vmatprep.subr.bf16.mxu0 0
        %2792 = vmatpush1.bf16.msra.mxu0 %v2438
        %2793 = vmatprep.mubr.bf16.mxu0 %v1784
        %2794 = vmatmul.mubr.bf16.gmra.mrb[0].mxu0 %v1783
        %v2795 = vpop.f32.mrb[0].mxu0
        %v2796 = vadd.f32 %v2755, %v2795
        %v2797 = vpop.f32.mrb[0].mxu0
        %v2798 = vpop.f32.mrb[0].mxu0
        %v2799 = vadd.f32 %v2758, %v2798
        %v2800 = vpop.f32.mrb[0].mxu0
        %2801 = vdwg.mxu0
        %2802 = vmatprep.subr.bf16.mxu0 0
        %2803 = vmatpush1.bf16.msra.mxu0 %v2439
        %2804 = vmatprep.subr.bf16.mxu0 0
        %2805 = vmatpush1.bf16.msra.mxu0 %v2440
        %2806 = vmatprep.subr.bf16.mxu0 0
        %2807 = vmatpush1.bf16.msra.mxu0 %v2441
        %2808 = vmatprep.subr.bf16.mxu0 0
        %2809 = vmatpush1.bf16.msra.mxu0 %v2442
        %2810 = vmatprep.subr.bf16.mxu0 0
        %2811 = vmatpush1.bf16.msra.mxu0 %v2443
        %2812 = vmatprep.subr.bf16.mxu0 0
        %2813 = vmatpush1.bf16.msra.mxu0 %v2444
        %2814 = vmatprep.subr.bf16.mxu0 0
        %2815 = vmatpush1.bf16.msra.mxu0 %v2445
        %2816 = vmatprep.subr.bf16.mxu0 0
        %2817 = vmatpush1.bf16.msra.mxu0 %v2446
        %2818 = vmatprep.subr.bf16.mxu0 0
        %2819 = vmatpush1.bf16.msra.mxu0 %v2447
        %2820 = vmatprep.subr.bf16.mxu0 0
        %2821 = vmatpush1.bf16.msra.mxu0 %v2448
        %2822 = vmatprep.subr.bf16.mxu0 0
        %2823 = vmatpush1.bf16.msra.mxu0 %v2449
        %2824 = vmatprep.subr.bf16.mxu0 0
        %2825 = vmatpush1.bf16.msra.mxu0 %v2450
        %2826 = vmatprep.subr.bf16.mxu0 0
        %2827 = vmatpush1.bf16.msra.mxu0 %v2451
        %2828 = vmatprep.subr.bf16.mxu0 0
        %2829 = vmatpush1.bf16.msra.mxu0 %v2452
        %2830 = vmatprep.subr.bf16.mxu0 0
        %2831 = vmatpush1.bf16.msra.mxu0 %v2453
        %2832 = vmatprep.subr.bf16.mxu0 0
        %2833 = vmatpush1.bf16.msra.mxu0 %v2454
        %2834 = vmatprep.mubr.bf16.mxu0 %v1786
        %2835 = vmatmul.mubr.bf16.gmra.mrb[0].mxu0 %v1785
        %v2836 = vpop.f32.mrb[0].mxu0
        %v2837 = vadd.f32 %v2796, %v2836
        %v2838 = vpop.f32.mrb[0].mxu0
        %v2839 = vpop.f32.mrb[0].mxu0
        %v2840 = vadd.f32 %v2799, %v2839
        %v2841 = vpop.f32.mrb[0].mxu0
        %2842 = vdwg.mxu0
        %2843 = vmatprep.subr.bf16.mxu0 0
        %2844 = vmatpush1.bf16.msra.mxu0 %v2455
        %2845 = vmatprep.subr.bf16.mxu0 0
        %2846 = vmatpush1.bf16.msra.mxu0 %v2456
        %2847 = vmatprep.subr.bf16.mxu0 0
        %2848 = vmatpush1.bf16.msra.mxu0 %v2457
        %2849 = vmatprep.subr.bf16.mxu0 0
        %2850 = vmatpush1.bf16.msra.mxu0 %v2458
        %2851 = vmatprep.subr.bf16.mxu0 0
        %2852 = vmatpush1.bf16.msra.mxu0 %v2459
        %2853 = vmatprep.subr.bf16.mxu0 0
        %2854 = vmatpush1.bf16.msra.mxu0 %v2460
        %2855 = vmatprep.subr.bf16.mxu0 0
        %2856 = vmatpush1.bf16.msra.mxu0 %v2461
        %2857 = vmatprep.subr.bf16.mxu0 0
        %2858 = vmatpush1.bf16.msra.mxu0 %v2462
        %2859 = vmatprep.subr.bf16.mxu0 0
        %2860 = vmatpush1.bf16.msra.mxu0 %v2463
        %2861 = vmatprep.subr.bf16.mxu0 0
        %2862 = vmatpush1.bf16.msra.mxu0 %v2464
        %2863 = vmatprep.subr.bf16.mxu0 0
        %2864 = vmatpush1.bf16.msra.mxu0 %v2465
        %2865 = vmatprep.subr.bf16.mxu0 0
        %2866 = vmatpush1.bf16.msra.mxu0 %v2466
        %2867 = vmatprep.subr.bf16.mxu0 0
        %2868 = vmatpush1.bf16.msra.mxu0 %v2467
        %2869 = vmatprep.subr.bf16.mxu0 0
        %2870 = vmatpush1.bf16.msra.mxu0 %v2468
        %2871 = vmatprep.subr.bf16.mxu0 0
        %2872 = vmatpush1.bf16.msra.mxu0 %v2469
        %2873 = vmatprep.subr.bf16.mxu0 0
        %2874 = vmatpush1.bf16.msra.mxu0 %v2470
        %2875 = vmatprep.mubr.bf16.mxu0 %v1788
        %2876 = vmatmul.mubr.bf16.gmra.mrb[0].mxu0 %v1787
        %v2877 = vpop.f32.mrb[0].mxu0
        %v2878 = vadd.f32 %v2837, %v2877
        %v2879 = vpop.f32.mrb[0].mxu0
        %v2880 = vpop.f32.mrb[0].mxu0
        %v2881 = vadd.f32 %v2840, %v2880
        %v2882 = vpop.f32.mrb[0].mxu0
        %2883 = vdwg.mxu0
        %2884 = vmatprep.subr.bf16.mxu0 0
        %2885 = vmatpush1.bf16.msra.mxu0 %v2471
        %2886 = vmatprep.subr.bf16.mxu0 0
        %2887 = vmatpush1.bf16.msra.mxu0 %v2472
        %2888 = vmatprep.subr.bf16.mxu0 0
        %2889 = vmatpush1.bf16.msra.mxu0 %v2473
        %2890 = vmatprep.subr.bf16.mxu0 0
        %2891 = vmatpush1.bf16.msra.mxu0 %v2474
        %2892 = vmatprep.subr.bf16.mxu0 0
        %2893 = vmatpush1.bf16.msra.mxu0 %v2475
        %2894 = vmatprep.subr.bf16.mxu0 0
        %2895 = vmatpush1.bf16.msra.mxu0 %v2476
        %2896 = vmatprep.subr.bf16.mxu0 0
        %2897 = vmatpush1.bf16.msra.mxu0 %v2477
        %2898 = vmatprep.subr.bf16.mxu0 0
        %2899 = vmatpush1.bf16.msra.mxu0 %v2478
        %2900 = vmatprep.subr.bf16.mxu0 0
        %2901 = vmatpush1.bf16.msra.mxu0 %v2479
        %2902 = vmatprep.subr.bf16.mxu0 0
        %2903 = vmatpush1.bf16.msra.mxu0 %v2480
        %2904 = vmatprep.subr.bf16.mxu0 0
        %2905 = vmatpush1.bf16.msra.mxu0 %v2481
        %2906 = vmatprep.subr.bf16.mxu0 0
        %2907 = vmatpush1.bf16.msra.mxu0 %v2482
        %2908 = vmatprep.subr.bf16.mxu0 0
        %2909 = vmatpush1.bf16.msra.mxu0 %v2483
        %2910 = vmatprep.subr.bf16.mxu0 0
        %2911 = vmatpush1.bf16.msra.mxu0 %v2484
        %2912 = vmatprep.subr.bf16.mxu0 0
        %2913 = vmatpush1.bf16.msra.mxu0 %v2485
        %2914 = vmatprep.subr.bf16.mxu0 0
        %2915 = vmatpush1.bf16.msra.mxu0 %v2486
        %2916 = vmatprep.mubr.bf16.mxu0 %v1790
        %2917 = vmatmul.mubr.bf16.gmra.mrb[0].mxu0 %v1789
        %v2918 = vpop.f32.mrb[0].mxu0
        %v2919 = vadd.f32 %v2878, %v2918
        %v2920 = vpop.f32.mrb[0].mxu0
        %v2921 = vpop.f32.mrb[0].mxu0
        %v2922 = vadd.f32 %v2881, %v2921
        %v2923 = vpop.f32.mrb[0].mxu0
        %2924 = vdwg.mxu0
        %2925 = vmatprep.subr.bf16.mxu0 0
        %2926 = vmatpush1.bf16.msra.mxu0 %v2487
        %2927 = vmatprep.subr.bf16.mxu0 0
        %2928 = vmatpush1.bf16.msra.mxu0 %v2488
        %2929 = vmatprep.subr.bf16.mxu0 0
        %2930 = vmatpush1.bf16.msra.mxu0 %v2489
        %2931 = vmatprep.subr.bf16.mxu0 0
        %2932 = vmatpush1.bf16.msra.mxu0 %v2490
        %2933 = vmatprep.subr.bf16.mxu0 0
        %2934 = vmatpush1.bf16.msra.mxu0 %v2491
        %2935 = vmatprep.subr.bf16.mxu0 0
        %2936 = vmatpush1.bf16.msra.mxu0 %v2492
        %2937 = vmatprep.subr.bf16.mxu0 0
        %2938 = vmatpush1.bf16.msra.mxu0 %v2493
        %2939 = vmatprep.subr.bf16.mxu0 0
        %2940 = vmatpush1.bf16.msra.mxu0 %v2494
        %2941 = vmatprep.subr.bf16.mxu0 0
        %2942 = vmatpush1.bf16.msra.mxu0 %v2495
        %2943 = vmatprep.subr.bf16.mxu0 0
        %2944 = vmatpush1.bf16.msra.mxu0 %v2496
        %2945 = vmatprep.subr.bf16.mxu0 0
        %2946 = vmatpush1.bf16.msra.mxu0 %v2497
        %2947 = vmatprep.subr.bf16.mxu0 0
        %2948 = vmatpush1.bf16.msra.mxu0 %v2498
        %2949 = vmatprep.subr.bf16.mxu0 0
        %2950 = vmatpush1.bf16.msra.mxu0 %v2499
        %2951 = vmatprep.subr.bf16.mxu0 0
        %2952 = vmatpush1.bf16.msra.mxu0 %v2500
        %2953 = vmatprep.subr.bf16.mxu0 0
        %2954 = vmatpush1.bf16.msra.mxu0 %v2501
        %2955 = vmatprep.subr.bf16.mxu0 0
        %2956 = vmatpush1.bf16.msra.mxu0 %v2502
        %2957 = vmatprep.mubr.bf16.mxu0 %v1792
        %2958 = vmatmul.mubr.bf16.gmra.mrb[0].mxu0 %v1791
        %v2959 = vpop.f32.mrb[0].mxu0
        %v2960 = vadd.f32 %v2919, %v2959
        %v2961 = vpop.f32.mrb[0].mxu0
        %v2962 = vpop.f32.mrb[0].mxu0
        %v2963 = vadd.f32 %v2922, %v2962
        %v2964 = vpop.f32.mrb[0].mxu0
        %2965 = vdwg.mxu0
        %2966 = vmatprep.subr.bf16.mxu0 0
        %2967 = vmatpush1.bf16.msra.mxu0 %v2503
        %2968 = vmatprep.subr.bf16.mxu0 0
        %2969 = vmatpush1.bf16.msra.mxu0 %v2504
        %2970 = vmatprep.subr.bf16.mxu0 0
        %2971 = vmatpush1.bf16.msra.mxu0 %v2505
        %2972 = vmatprep.subr.bf16.mxu0 0
        %2973 = vmatpush1.bf16.msra.mxu0 %v2506
        %2974 = vmatprep.subr.bf16.mxu0 0
        %2975 = vmatpush1.bf16.msra.mxu0 %v2507
        %2976 = vmatprep.subr.bf16.mxu0 0
        %2977 = vmatpush1.bf16.msra.mxu0 %v2508
        %2978 = vmatprep.subr.bf16.mxu0 0
        %2979 = vmatpush1.bf16.msra.mxu0 %v2509
        %2980 = vmatprep.subr.bf16.mxu0 0
        %2981 = vmatpush1.bf16.msra.mxu0 %v2510
        %2982 = vmatprep.subr.bf16.mxu0 0
        %2983 = vmatpush1.bf16.msra.mxu0 %v2511
        %2984 = vmatprep.subr.bf16.mxu0 0
        %2985 = vmatpush1.bf16.msra.mxu0 %v2512
        %2986 = vmatprep.subr.bf16.mxu0 0
        %2987 = vmatpush1.bf16.msra.mxu0 %v2513
        %2988 = vmatprep.subr.bf16.mxu0 0
        %2989 = vmatpush1.bf16.msra.mxu0 %v2514
        %2990 = vmatprep.subr.bf16.mxu0 0
        %2991 = vmatpush1.bf16.msra.mxu0 %v2515
        %2992 = vmatprep.subr.bf16.mxu0 0
        %2993 = vmatpush1.bf16.msra.mxu0 %v2516
        %2994 = vmatprep.subr.bf16.mxu0 0
        %2995 = vmatpush1.bf16.msra.mxu0 %v2517
        %2996 = vmatprep.subr.bf16.mxu0 0
        %2997 = vmatpush1.bf16.msra.mxu0 %v2518
        %2998 = vmatprep.mubr.bf16.mxu0 %v1794
        %2999 = vmatmul.mubr.bf16.gmra.mrb[0].mxu0 %v1793
        %v3000 = vpop.f32.mrb[0].mxu0
        %v3001 = vadd.f32 %v2960, %v3000
        %v3002 = vpop.f32.mrb[0].mxu0
        %v3003 = vpop.f32.mrb[0].mxu0
        %v3004 = vadd.f32 %v2963, %v3003
        %v3005 = vpop.f32.mrb[0].mxu0
        %3006 = vdwg.mxu0
        %3007 = vmatprep.subr.bf16.mxu0 0
        %3008 = vmatpush1.bf16.msra.mxu0 %v2519
        %3009 = vmatprep.subr.bf16.mxu0 0
        %3010 = vmatpush1.bf16.msra.mxu0 %v2520
        %3011 = vmatprep.subr.bf16.mxu0 0
        %3012 = vmatpush1.bf16.msra.mxu0 %v2521
        %3013 = vmatprep.subr.bf16.mxu0 0
        %3014 = vmatpush1.bf16.msra.mxu0 %v2522
        %3015 = vmatprep.subr.bf16.mxu0 0
        %3016 = vmatpush1.bf16.msra.mxu0 %v2523
        %3017 = vmatprep.subr.bf16.mxu0 0
        %3018 = vmatpush1.bf16.msra.mxu0 %v2524
        %3019 = vmatprep.subr.bf16.mxu0 0
        %3020 = vmatpush1.bf16.msra.mxu0 %v2525
        %3021 = vmatprep.subr.bf16.mxu0 0
        %3022 = vmatpush1.bf16.msra.mxu0 %v2526
        %3023 = vmatprep.subr.bf16.mxu0 0
        %3024 = vmatpush1.bf16.msra.mxu0 %v2527
        %3025 = vmatprep.subr.bf16.mxu0 0
        %3026 = vmatpush1.bf16.msra.mxu0 %v2528
        %3027 = vmatprep.subr.bf16.mxu0 0
        %3028 = vmatpush1.bf16.msra.mxu0 %v2529
        %3029 = vmatprep.subr.bf16.mxu0 0
        %3030 = vmatpush1.bf16.msra.mxu0 %v2530
        %3031 = vmatprep.subr.bf16.mxu0 0
        %3032 = vmatpush1.bf16.msra.mxu0 %v2531
        %3033 = vmatprep.subr.bf16.mxu0 0
        %3034 = vmatpush1.bf16.msra.mxu0 %v2532
        %3035 = vmatprep.subr.bf16.mxu0 0
        %3036 = vmatpush1.bf16.msra.mxu0 %v2533
        %3037 = vmatprep.subr.bf16.mxu0 0
        %3038 = vmatpush1.bf16.msra.mxu0 %v2534
        %3039 = vmatprep.mubr.bf16.mxu0 %v1796
        %3040 = vmatmul.mubr.bf16.gmra.mrb[0].mxu0 %v1795
        %v3041 = vpop.f32.mrb[0].mxu0
        %v3042 = vadd.f32 %v3001, %v3041
        %v3043 = vpop.f32.mrb[0].mxu0
        %v3044 = vpop.f32.mrb[0].mxu0
        %v3045 = vadd.f32 %v3004, %v3044
        %v3046 = vpop.f32.mrb[0].mxu0
        %3047 = vdwg.mxu0
        %v3048 = vmax.f32 %v3042, 0.0
        %v3049 = vmax.f32 %v3045, 0.0
        %v3050 = vrot.slane %v3048, 4
        %v3051 = vmax.f32 %v3048, %v3050
        %v3052 = vrot.slane %v3051, 2
        %v3053 = vmax.f32 %v3051, %v3052
        %v3054 = vrot.slane %v3053, 1
        %v3055 = vmax.f32 %v3053, %v3054
        %v3056 = vrot.slane %v3049, 4
        %v3057 = vmax.f32 %v3049, %v3056
        %v3058 = vrot.slane %v3057, 2
        %v3059 = vmax.f32 %v3057, %v3058
        %v3060 = vrot.slane %v3059, 1
        %v3061 = vmax.f32 %v3059, %v3060
        %vm3064 = vcmask 1041409
        %v3065 = vsel %vm3064, %v3061, %v3055
        %3067 = vst [vmem:[%s1400] sm:$0x3] %v3065
        %s3068 = sand.u32 %s117, 1
        %s3069 = scalar_lea.sflag [#allocation4], %s3068
        %s3070 = sand.u32 %s117, 1
        %s3071 = smul.addr %s3070, 2
        %s3072 = scalar_lea.vmem [#allocation3], %s3071
        // Predicated region
        $region74: #{_lambda_.1} parent=68 // pred_check
          %p3073 = pneg %p127
        $region75: #{_lambda_.1} parent=68 // pred_check_branch
          %3075 = sbr.rel (%p3073) target = $region77
        $region76: #{_lambda_.1} parent=68 // pred_region
          %s3077 = ssub.s32 32, 32
          %3078 = vsyncadd %s3069, %s3077
          %s3079 = smul.addr %s21, 2
          %s3080 = sadd.s32 %s22, %s3079
          %s3081 = smul.addr %s3080, 32
          %s3082 = scalar_lea.hbm %s3, %s3081
          %s3084 = sshll.u32 %s3072, 4
          %s3085 = int_to_ptr.vmem [resolvable:$true] %s3084
          %3087 = dma.vmem_to_hbm [thread:$0]  %s3085, 32, %s3082, %s3069
        $region77: #{_lambda_.1} parent=68 // pred_fallthru
          _
      $region69: #{_lambda_.1} parent=5 // pred_fallthru
        _
      %p3088 = scmp.le.s32.totalorder 2, %s12
      // Predicated region
      $region78: #{_lambda_.1} parent=5 // pred_check
        %p3089 = pneg %p3088
      $region79: #{_lambda_.1} parent=5 // pred_check_branch
        %3091 = sbr.rel (%p3089) target = $region81
      $region80: #{_lambda_.1} parent=5 // pred_region
        %s3092 = ssub.s32 %s12, 2
        // Predicated region
        $region82: #{_lambda_.1} parent=80 // pred_check
          %p3093 = pneg %p133
        $region83: #{_lambda_.1} parent=80 // pred_check_branch
          %3095 = sbr.rel (%p3093) target = $region85
        $region84: #{_lambda_.1} parent=80 // pred_region
          %s3096 = sand.u32 %s118, 1
          %s3097 = scalar_lea.sflag [#allocation4], %s3096
          %s3098 = sand.u32 %s118, 1
          %s3099 = smul.addr %s3098, 2
          %s3100 = scalar_lea.vmem [#allocation3], %s3099
          %3101 = dma.done %s3097, 32
        $region85: #{_lambda_.1} parent=80 // pred_fallthru
          _
      $region81: #{_lambda_.1} parent=5 // pred_fallthru
        _
    $region6: #{_lambda_.1} parent=1 // loop_footer
      %s16 = sadd.s32 1, %s12
    $region7: #{_lambda_.1} parent=1 // loop_footer_branch
      %11 = sbr.rel target = $region3
    $region8: #{_lambda_.1} parent=1 // loop_exit
      _
    %3102 = vsyncpa [#allocation4], 1
    %s3103 = scalar_lea.sflag [#allocation4], 1
    %3104 = vsyncpa %s3103, 1

</llo_original>
